<compile_context>
chip_gen: v7x
topology: tpu7x:2x2x1
jax: 0.10.0
libtpu: 0.0.40
codegen_flags: <defaults>
</compile_context>

<pallas_src>
import functools
import math

import jax
import jax.numpy as jnp
import numpy as np
from jax.experimental import pallas as pl
from jax.experimental.pallas import tpu as pltpu

SCALES = (1, 2, 4, 8)
POOL_COLS = 128  # 1 + 4 + 16 + 64 = 85 real pooled columns, padded lane-dense.


# ---------------------------------------------------------------------------
# Static structure matrices (numpy, trace-time constants).
# ---------------------------------------------------------------------------
def _adaptive_pool_matrix(out_size, in_size):
    """(out_size, in_size) row-stochastic matrix == AdaptiveAvgPool1d(out_size)."""
    m = np.zeros((out_size, in_size), np.float32)
    for i in range(out_size):
        start = (i * in_size) // out_size
        end = -((-(i + 1) * in_size) // out_size)  # ceil
        m[i, start:end] = 1.0 / float(end - start)
    return m


def _bilinear_matrix(out_size, in_size):
    """(out_size, in_size) weights matching F.interpolate(bilinear, align_corners=False)."""
    m = np.zeros((out_size, in_size), np.float32)
    scale = in_size / out_size
    for o in range(out_size):
        src = (o + 0.5) * scale - 0.5
        if src < 0.0:
            src = 0.0
        i0 = min(int(math.floor(src)), in_size - 1)
        i1 = min(i0 + 1, in_size - 1)
        lam = src - i0
        m[o, i0] += 1.0 - lam
        m[o, i1] += lam
    return m


def _tap_masks(H, W):
    """(9, 1, P) 0/1 masks; tap k=(dh,dw) is valid where (h+dh, w+dw) is in-image."""
    P = H * W
    m = np.zeros((9, 1, P), np.float32)
    k = 0
    for dh in (-1, 0, 1):
        for dw in (-1, 0, 1):
            for h in range(H):
                for w in range(W):
                    if 0 <= h + dh < H and 0 <= w + dw < W:
                        m[k, 0, h * W + w] = 1.0
            k += 1
    return m


def _pool_interp_packed(H, W, scales, n_cols):
    """Pack all scales' adaptive-pool columns into one (P, n_cols) matrix and build
    per-scale (n_cols, P) upsample matrices (zero rows outside the scale's columns,
    1/n_scales averaging folded in)."""
    P = H * W
    pool_cat = np.zeros((P, n_cols), np.float32)
    interp = np.zeros((len(scales), n_cols, P), np.float32)
    off = 0
    for si, s in enumerate(scales):
        ph = _adaptive_pool_matrix(s, H)           # (s, H)
        pw = _adaptive_pool_matrix(s, W)           # (s, W)
        pool2d = np.kron(ph, pw)                   # (s*s, P)
        pool_cat[:, off:off + s * s] = pool2d.T
        wh = _bilinear_matrix(H, s)                # (H, s)
        ww = _bilinear_matrix(W, s)                # (W, s)
        up2d = np.kron(wh, ww)                     # (P, s*s)
        interp[si, off:off + s * s, :] = up2d.T / float(len(scales))
        off += s * s
    assert off <= n_cols
    return pool_cat, interp


# ---------------------------------------------------------------------------
# Kernel: one batch tile == (R = bt*C, P) rows (channel-major), matmul + VPU/EUP.
# ---------------------------------------------------------------------------
def _avif_kernel(x_ref, gt_ref, mask_ref,
                 wq1_ref, bq1_ref, wq2_ref, bq2_ref,
                 pool_ref, wa1_ref, ba1_ref, wa2_ref, ba2_ref, interp_ref,
                 wc1_ref, bc1_ref, wc2_ref, bc2_ref,
                 we1_ref, be1_ref, we2_ref, be2_ref,
                 wo_ref, bo_ref,
                 o_ref, t_ref, *, channels, batch_tile, width):
    f32 = jnp.float32
    x = x_ref[...]                                  # (R, P); rows = (c, b) c-major
    P = x.shape[1]
    bt = batch_tile

    def mm(a, b):
        return jnp.dot(a, b, preferred_element_type=f32)

    def relu(v):
        return jnp.maximum(v, 0.0)

    def sigmoid(v):
        # exp (EUP) + approximate reciprocal (EUP) instead of a VPU divide.
        return pl.reciprocal(1.0 + jnp.exp(-v), approx=True)

    def conv3x3(inp, w_ref, b_ref):
        # 3x3 zero-padded conv: per-tap channel mix (MXU) + lane roll (XLU) + mask.
        y = None
        k = 0
        for dh in (-1, 0, 1):
            for dw in (-1, 0, 1):
                mixed = mm(w_ref[k], inp)                        # (R_out, P)
                shift = (-(dh * width + dw)) % P
                rolled = pltpu.roll(mixed, shift, axis=1) if shift else mixed
                if dh == 0 and dw == 0:
                    term = rolled
                else:
                    term = rolled * mask_ref[k]                  # (1, P) boundary mask
                y = term if y is None else y + term
                k += 1
        return y + b_ref[...]

    # Stage 1: per-channel 8x8 block transform (contiguous row slices, no masks).
    for c in range(channels):
        t_ref[c * bt:(c + 1) * bt, :] = mm(x[c * bt:(c + 1) * bt, :], gt_ref[c])
    t = t_ref[...]

    # Stage 2: quantization gate; start the running 'enhanced' accumulator.
    hq = relu(mm(wq1_ref[...], t) + bq1_ref[...])
    acc = t * sigmoid(mm(wq2_ref[...], hq) + bq2_ref[...])       # = x_transformed

    # Stage 3: packed 4-scale attention (one lane-dense pooling matmul; junk
    # columns are killed by the zero rows of the per-scale interp matrices).
    pooled = mm(x, pool_ref[...])                                # (R, 128)
    attn = None
    for s in range(wa1_ref.shape[0]):
        h1 = relu(mm(wa1_ref[s], pooled) + ba1_ref[s])
        a2 = sigmoid(mm(wa2_ref[s], h1) + ba2_ref[s])
        up = mm(a2, interp_ref[s])                               # 1/n_scales folded in
        attn = up if attn is None else attn + up
    acc = acc * attn

    # Stage 4: color-consistency gate.
    hc = relu(mm(wc1_ref[...], x) + bc1_ref[...])
    acc = acc * sigmoid(mm(wc2_ref[...], hc) + bc2_ref[...])

    # Stage 5: edge-preserve gate (two 3x3 convs).
    e1 = relu(conv3x3(x, we1_ref, be1_ref))
    acc = acc * sigmoid(conv3x3(e1, we2_ref, be2_ref))

    # TODO(synk): compression_level boost branch (clamped color/edge scaling) is
    # not implemented; this is the default compression_level=None path.

    # Stage 6: output 3x3 conv on (x + enhanced), lane-dense store.
    o_ref[...] = conv3x3(x + acc, wo_ref, bo_ref).astype(o_ref.dtype)


# ---------------------------------------------------------------------------
# Wrapper: operator matrices, tiling, BlockSpecs, pallas_call.
# ---------------------------------------------------------------------------
def _pick_batch_tile(B, C, row_cap=512):
    """Largest batch tile with 8-aligned row count bt*C and bt*C <= row_cap
    (caps the kron(I_bt, W) blow-up), preferring >= 2 grid steps."""
    cands = [bt for bt in range(1, B + 1) if B % bt == 0 and (bt * C) % 8 == 0]
    if not cands:
        return B                      # single full-array tile: (8,128) rule waived
    good = [bt for bt in cands if bt * C <= row_cap] or [min(cands)]
    multi = [bt for bt in good if B // bt >= 2]
    return max(multi) if multi else max(good)


def _vmem_limit_bytes():
    try:
        cap = int(pltpu.get_tpu_info().vmem_capacity_bytes)
    except Exception:
        cap = 64 * 1024 * 1024        # conservative fallback (v7x-sized)
    return max(32 * 1024 * 1024, int(cap * 0.8))


@functools.partial(jax.jit, static_argnames=("block_size",))
def avif_freq_aware_block(x, params, block_size=8):
    B, C, H, W = x.shape
    if H % block_size or W % block_size:
        # TODO(synk): pad/crop path for H/W not divisible by block_size.
        raise ValueError("H and W must be multiples of block_size")
    P = H * W
    bt = _pick_batch_tile(B, C)
    R = bt * C
    n_tiles = B // bt
    f32 = jnp.float32

    eye_bt = jnp.eye(bt, dtype=f32)

    def kron_cm(w):                   # channel mix -> row mix for (c, b) row order
        return jnp.kron(w.astype(f32), eye_bt)

    def bias_col(b):                  # bias per row (c, b) -> column vector
        return jnp.repeat(b.astype(f32), bt).reshape(-1, 1)

    # Per-channel flattened block-transform operators: t_row = x_row @ gt[c].
    nbh, nbw = H // block_size, W // block_size
    eye_h = jnp.eye(nbh, dtype=f32)
    eye_w = jnp.eye(nbw, dtype=f32)
    tw = params["transform_weights"].astype(f32)          # (C, bs, bs)
    gt = jnp.stack([jnp.kron(jnp.kron(eye_h, tw[c]), jnp.kron(eye_w, tw[c])).T
                    for c in range(C)])                   # (C, P, P)
    # TODO(synk): gt/pool/interp could be stored in bf16 (halves VMEM/DMA); kept
    # f32 here to stay bit-close to the reference.

    mask = jnp.asarray(_tap_masks(H, W))                  # (9, 1, P)
    pool_np, interp_np = _pool_interp_packed(H, W, SCALES, POOL_COLS)
    pool_cat = jnp.asarray(pool_np)                       # (P, 128)
    interp = jnp.asarray(interp_np)                       # (S, 128, P)

    wq1 = kron_cm(params["q_w1"]); bq1 = bias_col(params["q_b1"])
    wq2 = kron_cm(params["q_w2"]); bq2 = bias_col(params["q_b2"])

    n_s = len(SCALES)
    wa1 = jnp.stack([kron_cm(params["attn_w1"][s]) for s in range(n_s)])
    ba1 = jnp.stack([bias_col(params["attn_b1"][s]) for s in range(n_s)])
    wa2 = jnp.stack([kron_cm(params["attn_w2"][s]) for s in range(n_s)])
    ba2 = jnp.stack([bias_col(params["attn_b2"][s]) for s in range(n_s)])

    wc1 = kron_cm(params["c_w1"]); bc1 = bias_col(params["c_b1"])
    wc2 = kron_cm(params["c_w2"]); bc2 = bias_col(params["c_b2"])

    def conv_taps(w):                 # (Cout, Cin, 3, 3) -> (9, bt*Cout, bt*Cin)
        mats = []
        for dh in (-1, 0, 1):
            for dw in (-1, 0, 1):
                mats.append(kron_cm(w[:, :, dh + 1, dw + 1]))
        return jnp.stack(mats)

    we1 = conv_taps(params["e_w1"]); be1 = bias_col(params["e_b1"])
    we2 = conv_taps(params["e_w2"]); be2 = bias_col(params["e_b2"])
    wo = conv_taps(params["o_w"]);   bo = bias_col(params["o_b"])

    # Channel-major row layout per batch tile: row = c*bt + b_local.
    x_cm = (x.astype(f32).reshape(n_tiles, bt, C, P)
            .transpose(0, 2, 1, 3).reshape(n_tiles * R, P))

    operands = (x_cm, gt, mask,
                wq1, bq1, wq2, bq2,
                pool_cat, wa1, ba1, wa2, ba2, interp,
                wc1, bc1, wc2, bc2,
                we1, be1, we2, be2,
                wo, bo)

    tile_spec = pl.BlockSpec((R, P), lambda i: (i, 0))

    def const_spec(a):                # resident weight: constant index map, 1 buffer
        zeros = (0,) * a.ndim
        idx = lambda i, _z=zeros: _z
        try:
            return pl.BlockSpec(a.shape, idx, pipeline_mode=pl.Buffered(1))
        except (AttributeError, TypeError):
            return pl.BlockSpec(a.shape, idx)

    in_specs = [tile_spec] + [const_spec(a) for a in operands[1:]]

    out_cm = pl.pallas_call(
        functools.partial(_avif_kernel, channels=C, batch_tile=bt, width=W),
        out_shape=jax.ShapeDtypeStruct((n_tiles * R, P), f32),
        grid=(n_tiles,),
        in_specs=in_specs,
        out_specs=tile_spec,
        scratch_shapes=[pltpu.VMEM((R, P), f32)],
        compiler_params=pltpu.CompilerParams(
            dimension_semantics=("parallel",),
            vmem_limit_bytes=_vmem_limit_bytes()),
    )(*operands)

    return (out_cm.reshape(n_tiles, C, bt, P)
            .transpose(0, 2, 1, 3).reshape(B, C, H, W))


# ---------------------------------------------------------------------------
# Deterministic synthetic parameters (shapes match the PyTorch module).
# ---------------------------------------------------------------------------
def make_params(channels, key, block_size=8):
    c4 = channels // 4
    c2 = channels // 2
    assert c4 >= 1 and c2 >= 1
    keys = iter(jax.random.split(key, 32))

    def uni(shape, fan_in):
        lim = 1.0 / math.sqrt(fan_in)
        return jax.random.uniform(next(keys), shape, jnp.float32, -lim, lim)

    p = {}
    p["transform_weights"] = (jax.random.normal(
        next(keys), (channels, block_size, block_size), jnp.float32)
        / math.sqrt(block_size))
    p["q_w1"] = uni((channels, channels), channels)
    p["q_b1"] = uni((channels,), channels)
    p["q_w2"] = uni((channels, channels), channels)
    p["q_b2"] = uni((channels,), channels)
    p["attn_w1"] = jnp.stack([uni((c4, channels), channels) for _ in SCALES])
    p["attn_b1"] = jnp.stack([uni((c4,), channels) for _ in SCALES])
    p["attn_w2"] = jnp.stack([uni((channels, c4), c4) for _ in SCALES])
    p["attn_b2"] = jnp.stack([uni((channels,), c4) for _ in SCALES])
    p["c_w1"] = uni((channels, channels), channels)
    p["c_b1"] = uni((channels,), channels)
    p["c_w2"] = uni((channels, channels), channels)
    p["c_b2"] = uni((channels,), channels)
    p["e_w1"] = uni((c2, channels, 3, 3), channels * 9)
    p["e_b1"] = uni((c2,), channels * 9)
    p["e_w2"] = uni((channels, c2, 3, 3), c2 * 9)
    p["e_b2"] = uni((channels,), c2 * 9)
    p["o_w"] = uni((channels, channels, 3, 3), channels * 9)
    p["o_b"] = uni((channels,), channels * 9)
    return p


# ---------------------------------------------------------------------------
# Pure-JAX (XLA) reference of the PyTorch forward, for correctness checking.
# ---------------------------------------------------------------------------
def reference_forward(x, params, block_size=8):
    B, C, H, W = x.shape
    bs = block_size
    hp = jax.lax.Precision.HIGHEST
    f32 = jnp.float32
    x = x.astype(f32)

    Tm = params["transform_weights"].astype(f32)
    nbh, nbw = H // bs, W // bs
    xb = x.reshape(B, C, nbh, bs, nbw, bs).transpose(0, 1, 2, 4, 3, 5)
    tb = jnp.einsum("cij,bcmnjk,clk->bcmnil", Tm, xb, Tm, precision=hp)
    t = tb.transpose(0, 1, 2, 4, 3, 5).reshape(B, C, H, W)

    def conv1x1(v, w, b):
        y = jnp.einsum("oc,bchw->bohw", w.astype(f32), v, precision=hp)
        return y + b.astype(f32)[None, :, None, None]

    def conv3x3(v, w, b):
        y = jax.lax.conv_general_dilated(
            v, w.astype(f32), (1, 1), "SAME",
            dimension_numbers=("NCHW", "OIHW", "NCHW"), precision=hp)
        return y + b.astype(f32)[None, :, None, None]

    q = jax.nn.sigmoid(conv1x1(jax.nn.relu(conv1x1(t, params["q_w1"], params["q_b1"])),
                               params["q_w2"], params["q_b2"]))
    x_transformed = t * q

    attn_sum = 0.0
    for si, s in enumerate(SCALES):
        pooled = x.reshape(B, C, s, H // s, s, W // s).mean(axis=(3, 5))
        a = jax.nn.relu(conv1x1(pooled, params["attn_w1"][si], params["attn_b1"][si]))
        a = jax.nn.sigmoid(conv1x1(a, params["attn_w2"][si], params["attn_b2"][si]))
        if (s, s) != (H, W):
            wh = jnp.asarray(_bilinear_matrix(H, s))
            ww = jnp.asarray(_bilinear_matrix(W, s))
            a = jnp.einsum("hi,bcij,wj->bchw", wh, a, ww, precision=hp)
        attn_sum = attn_sum + a
    attn_avg = attn_sum / float(len(SCALES))

    color_attn = jax.nn.sigmoid(conv1x1(jax.nn.relu(conv1x1(x, params["c_w1"], params["c_b1"])),
                                        params["c_w2"], params["c_b2"]))
    edge_attn = jax.nn.sigmoid(conv3x3(jax.nn.relu(conv3x3(x, params["e_w1"], params["e_b1"])),
                                       params["e_w2"], params["e_b2"]))
    enhanced = x_transformed * attn_avg * color_attn * edge_attn
    return conv3x3(x + enhanced, params["o_w"], params["o_b"])


if __name__ == "__main__":
    B, C, H, W = 2, 4, 16, 16
    key = jax.random.PRNGKey(0)
    kx, kp = jax.random.split(key)
    x = jax.random.normal(kx, (B, C, H, W), jnp.float32)
    params = make_params(C, kp)

    out = avif_freq_aware_block(x, params)
    out = jax.block_until_ready(out)

    ref = reference_forward(x, params)
    assert out.shape == (B, C, H, W), out.shape
    max_err = float(jnp.max(jnp.abs(out - ref)))
    assert jnp.allclose(out, ref, rtol=2e-2, atol=2e-2), f"max abs err {max_err}"

    print("KERNEL_OK")
</pallas_src>

<mosaic_0001>
module attributes {stable_mosaic.version = 11 : i64} {
  func.func @_avif_kernel(%arg0: i32, %arg1: memref<8x256xf32, #tpu.memory_space<vmem>>, %arg2: memref<4x256x256xf32, #tpu.memory_space<vmem>>, %arg3: memref<9x1x256xf32, #tpu.memory_space<vmem>>, %arg4: memref<8x8xf32, #tpu.memory_space<vmem>>, %arg5: memref<8x1xf32, #tpu.memory_space<vmem>>, %arg6: memref<8x8xf32, #tpu.memory_space<vmem>>, %arg7: memref<8x1xf32, #tpu.memory_space<vmem>>, %arg8: memref<256x128xf32, #tpu.memory_space<vmem>>, %arg9: memref<4x2x8xf32, #tpu.memory_space<vmem>>, %arg10: memref<4x2x1xf32, #tpu.memory_space<vmem>>, %arg11: memref<4x8x2xf32, #tpu.memory_space<vmem>>, %arg12: memref<4x8x1xf32, #tpu.memory_space<vmem>>, %arg13: memref<4x128x256xf32, #tpu.memory_space<vmem>>, %arg14: memref<8x8xf32, #tpu.memory_space<vmem>>, %arg15: memref<8x1xf32, #tpu.memory_space<vmem>>, %arg16: memref<8x8xf32, #tpu.memory_space<vmem>>, %arg17: memref<8x1xf32, #tpu.memory_space<vmem>>, %arg18: memref<9x4x8xf32, #tpu.memory_space<vmem>>, %arg19: memref<4x1xf32, #tpu.memory_space<vmem>>, %arg20: memref<9x8x4xf32, #tpu.memory_space<vmem>>, %arg21: memref<8x1xf32, #tpu.memory_space<vmem>>, %arg22: memref<9x8x8xf32, #tpu.memory_space<vmem>>, %arg23: memref<8x1xf32, #tpu.memory_space<vmem>>, %arg24: memref<8x256xf32, #tpu.memory_space<vmem>>, %arg25: memref<8x256xf32, #tpu.memory_space<vmem>>) attributes {dimension_semantics = [#tpu.dimension_semantics<parallel>], iteration_bounds = array<i64: 1>, scalar_prefetch = 0 : i64, scratch_operands = 1 : i64, tpu.core_type = #tpu.core_type<tc>, window_params = [{transform_indices = @transform_0, window_bounds = array<i64: 8, 256>}, {pipeline_mode = #tpu.pipeline_mode<synchronous>, transform_indices = @transform_1, window_bounds = array<i64: 4, 256, 256>}, {pipeline_mode = #tpu.pipeline_mode<synchronous>, transform_indices = @transform_2, window_bounds = array<i64: 9, 1, 256>}, {pipeline_mode = #tpu.pipeline_mode<synchronous>, transform_indices = @transform_3, window_bounds = array<i64: 8, 8>}, {pipeline_mode = #tpu.pipeline_mode<synchronous>, transform_indices = @transform_4, window_bounds = array<i64: 8, 1>}, {pipeline_mode = #tpu.pipeline_mode<synchronous>, transform_indices = @transform_5, window_bounds = array<i64: 8, 8>}, {pipeline_mode = #tpu.pipeline_mode<synchronous>, transform_indices = @transform_6, window_bounds = array<i64: 8, 1>}, {pipeline_mode = #tpu.pipeline_mode<synchronous>, transform_indices = @transform_7, window_bounds = array<i64: 256, 128>}, {pipeline_mode = #tpu.pipeline_mode<synchronous>, transform_indices = @transform_8, window_bounds = array<i64: 4, 2, 8>}, {pipeline_mode = #tpu.pipeline_mode<synchronous>, transform_indices = @transform_9, window_bounds = array<i64: 4, 2, 1>}, {pipeline_mode = #tpu.pipeline_mode<synchronous>, transform_indices = @transform_10, window_bounds = array<i64: 4, 8, 2>}, {pipeline_mode = #tpu.pipeline_mode<synchronous>, transform_indices = @transform_11, window_bounds = array<i64: 4, 8, 1>}, {pipeline_mode = #tpu.pipeline_mode<synchronous>, transform_indices = @transform_12, window_bounds = array<i64: 4, 128, 256>}, {pipeline_mode = #tpu.pipeline_mode<synchronous>, transform_indices = @transform_13, window_bounds = array<i64: 8, 8>}, {pipeline_mode = #tpu.pipeline_mode<synchronous>, transform_indices = @transform_14, window_bounds = array<i64: 8, 1>}, {pipeline_mode = #tpu.pipeline_mode<synchronous>, transform_indices = @transform_15, window_bounds = array<i64: 8, 8>}, {pipeline_mode = #tpu.pipeline_mode<synchronous>, transform_indices = @transform_16, window_bounds = array<i64: 8, 1>}, {pipeline_mode = #tpu.pipeline_mode<synchronous>, transform_indices = @transform_17, window_bounds = array<i64: 9, 4, 8>}, {pipeline_mode = #tpu.pipeline_mode<synchronous>, transform_indices = @transform_18, window_bounds = array<i64: 4, 1>}, {pipeline_mode = #tpu.pipeline_mode<synchronous>, transform_indices = @transform_19, window_bounds = array<i64: 9, 8, 4>}, {pipeline_mode = #tpu.pipeline_mode<synchronous>, transform_indices = @transform_20, window_bounds = array<i64: 8, 1>}, {pipeline_mode = #tpu.pipeline_mode<synchronous>, transform_indices = @transform_21, window_bounds = array<i64: 9, 8, 8>}, {pipeline_mode = #tpu.pipeline_mode<synchronous>, transform_indices = @transform_22, window_bounds = array<i64: 8, 1>}, {transform_indices = @transform_23, window_bounds = array<i64: 8, 256>}]} {
    %c0 = arith.constant 0 : index
    %c0_0 = arith.constant 0 : index
    %0 = vector.load %arg1[%c0, %c0_0] : memref<8x256xf32, #tpu.memory_space<vmem>>, vector<8x256xf32>
    %1 = vector.extract_strided_slice %0 {offsets = [0, 0], sizes = [2, 256], strides = [1, 1]} : vector<8x256xf32> to vector<2x256xf32>
    %c0_1 = arith.constant 0 : index
    %c0_2 = arith.constant 0 : index
    %c0_3 = arith.constant 0 : index
    %2 = vector.load %arg2[%c0_1, %c0_2, %c0_3] : memref<4x256x256xf32, #tpu.memory_space<vmem>>, vector<1x256x256xf32>
    %3 = vector.shape_cast %2 : vector<1x256x256xf32> to vector<256x256xf32>
    %cst = arith.constant dense<0.000000e+00> : vector<2x256xf32>
    %4 = tpu.matmul %1, %3, %cst {dimension_numbers = #tpu.dot_dimension_numbers<[1], [0], [0], [1], [0, 0, 1, 1], [], []>} : vector<2x256xf32>, vector<256x256xf32>, vector<2x256xf32> -> vector<2x256xf32>
    %c0_4 = arith.constant 0 : index
    %c0_5 = arith.constant 0 : index
    %5 = vector.load %arg25[%c0_4, %c0_5] : memref<8x256xf32, #tpu.memory_space<vmem>>, vector<2x256xf32>
    tpu.vector_store %arg25[%c0_4, %c0_5], %4 {strides = array<i32>} : memref<8x256xf32, #tpu.memory_space<vmem>>, vector<2x256xf32>,
    %6 = vector.extract_strided_slice %0 {offsets = [2, 0], sizes = [2, 256], strides = [1, 1]} : vector<8x256xf32> to vector<2x256xf32>
    %c1 = arith.constant 1 : index
    %c0_6 = arith.constant 0 : index
    %c0_7 = arith.constant 0 : index
    %7 = vector.load %arg2[%c1, %c0_6, %c0_7] : memref<4x256x256xf32, #tpu.memory_space<vmem>>, vector<1x256x256xf32>
    %8 = vector.shape_cast %7 : vector<1x256x256xf32> to vector<256x256xf32>
    %cst_8 = arith.constant dense<0.000000e+00> : vector<2x256xf32>
    %9 = tpu.matmul %6, %8, %cst_8 {dimension_numbers = #tpu.dot_dimension_numbers<[1], [0], [0], [1], [0, 0, 1, 1], [], []>} : vector<2x256xf32>, vector<256x256xf32>, vector<2x256xf32> -> vector<2x256xf32>
    %c2 = arith.constant 2 : index
    %c0_9 = arith.constant 0 : index
    %10 = vector.load %arg25[%c2, %c0_9] : memref<8x256xf32, #tpu.memory_space<vmem>>, vector<2x256xf32>
    tpu.vector_store %arg25[%c2, %c0_9], %9 {strides = array<i32>} : memref<8x256xf32, #tpu.memory_space<vmem>>, vector<2x256xf32>,
    %11 = vector.extract_strided_slice %0 {offsets = [4, 0], sizes = [2, 256], strides = [1, 1]} : vector<8x256xf32> to vector<2x256xf32>
    %c2_10 = arith.constant 2 : index
    %c0_11 = arith.constant 0 : index
    %c0_12 = arith.constant 0 : index
    %12 = vector.load %arg2[%c2_10, %c0_11, %c0_12] : memref<4x256x256xf32, #tpu.memory_space<vmem>>, vector<1x256x256xf32>
    %13 = vector.shape_cast %12 : vector<1x256x256xf32> to vector<256x256xf32>
    %cst_13 = arith.constant dense<0.000000e+00> : vector<2x256xf32>
    %14 = tpu.matmul %11, %13, %cst_13 {dimension_numbers = #tpu.dot_dimension_numbers<[1], [0], [0], [1], [0, 0, 1, 1], [], []>} : vector<2x256xf32>, vector<256x256xf32>, vector<2x256xf32> -> vector<2x256xf32>
    %c4 = arith.constant 4 : index
    %c0_14 = arith.constant 0 : index
    %15 = vector.load %arg25[%c4, %c0_14] : memref<8x256xf32, #tpu.memory_space<vmem>>, vector<2x256xf32>
    tpu.vector_store %arg25[%c4, %c0_14], %14 {strides = array<i32>} : memref<8x256xf32, #tpu.memory_space<vmem>>, vector<2x256xf32>,
    %16 = vector.extract_strided_slice %0 {offsets = [6, 0], sizes = [2, 256], strides = [1, 1]} : vector<8x256xf32> to vector<2x256xf32>
    %c3 = arith.constant 3 : index
    %c0_15 = arith.constant 0 : index
    %c0_16 = arith.constant 0 : index
    %17 = vector.load %arg2[%c3, %c0_15, %c0_16] : memref<4x256x256xf32, #tpu.memory_space<vmem>>, vector<1x256x256xf32>
    %18 = vector.shape_cast %17 : vector<1x256x256xf32> to vector<256x256xf32>
    %cst_17 = arith.constant dense<0.000000e+00> : vector<2x256xf32>
    %19 = tpu.matmul %16, %18, %cst_17 {dimension_numbers = #tpu.dot_dimension_numbers<[1], [0], [0], [1], [0, 0, 1, 1], [], []>} : vector<2x256xf32>, vector<256x256xf32>, vector<2x256xf32> -> vector<2x256xf32>
    %c6 = arith.constant 6 : index
    %c0_18 = arith.constant 0 : index
    %20 = vector.load %arg25[%c6, %c0_18] : memref<8x256xf32, #tpu.memory_space<vmem>>, vector<2x256xf32>
    tpu.vector_store %arg25[%c6, %c0_18], %19 {strides = array<i32>} : memref<8x256xf32, #tpu.memory_space<vmem>>, vector<2x256xf32>,
    %c0_19 = arith.constant 0 : index
    %c0_20 = arith.constant 0 : index
    %21 = vector.load %arg25[%c0_19, %c0_20] : memref<8x256xf32, #tpu.memory_space<vmem>>, vector<8x256xf32>
    %c0_21 = arith.constant 0 : index
    %c0_22 = arith.constant 0 : index
    %22 = vector.load %arg4[%c0_21, %c0_22] : memref<8x8xf32, #tpu.memory_space<vmem>>, vector<8x8xf32>
    %cst_23 = arith.constant dense<0.000000e+00> : vector<8x256xf32>
    %23 = tpu.matmul %22, %21, %cst_23 {dimension_numbers = #tpu.dot_dimension_numbers<[1], [0], [0], [1], [0, 0, 1, 1], [], []>} : vector<8x8xf32>, vector<8x256xf32>, vector<8x256xf32> -> vector<8x256xf32>
    %c0_24 = arith.constant 0 : index
    %c0_25 = arith.constant 0 : index
    %24 = vector.load %arg5[%c0_24, %c0_25] : memref<8x1xf32, #tpu.memory_space<vmem>>, vector<8x1xf32>
    %25 = vector.broadcast %24 : vector<8x1xf32> to vector<8x256xf32>
    %26 = arith.addf %23, %25 : vector<8x256xf32>
    %cst_26 = arith.constant 0.000000e+00 : f32
    %27 = vector.broadcast %cst_26 : f32 to vector<8x256xf32>
    %28 = arith.maximumf %26, %27 : vector<8x256xf32>
    %c0_27 = arith.constant 0 : index
    %c0_28 = arith.constant 0 : index
    %29 = vector.load %arg6[%c0_27, %c0_28] : memref<8x8xf32, #tpu.memory_space<vmem>>, vector<8x8xf32>
    %cst_29 = arith.constant dense<0.000000e+00> : vector<8x256xf32>
    %30 = tpu.matmul %29, %28, %cst_29 {dimension_numbers = #tpu.dot_dimension_numbers<[1], [0], [0], [1], [0, 0, 1, 1], [], []>} : vector<8x8xf32>, vector<8x256xf32>, vector<8x256xf32> -> vector<8x256xf32>
    %c0_30 = arith.constant 0 : index
    %c0_31 = arith.constant 0 : index
    %31 = vector.load %arg7[%c0_30, %c0_31] : memref<8x1xf32, #tpu.memory_space<vmem>>, vector<8x1xf32>
    %32 = vector.broadcast %31 : vector<8x1xf32> to vector<8x256xf32>
    %33 = arith.addf %30, %32 : vector<8x256xf32>
    %cst_32 = arith.constant 0.000000e+00 : f32
    %34 = vector.broadcast %cst_32 : f32 to vector<8x256xf32>
    %35 = arith.subf %34, %33 : vector<8x256xf32>
    %36 = math.exp %35 : vector<8x256xf32>
    %cst_33 = arith.constant 1.000000e+00 : f32
    %37 = vector.broadcast %cst_33 : f32 to vector<8x256xf32>
    %38 = arith.addf %37, %36 : vector<8x256xf32>
    %39 = tpu.reciprocal %38 {approx = true} : vector<8x256xf32> -> vector<8x256xf32>
    %40 = arith.mulf %21, %39 : vector<8x256xf32>
    %c0_34 = arith.constant 0 : index
    %c0_35 = arith.constant 0 : index
    %41 = vector.load %arg8[%c0_34, %c0_35] : memref<256x128xf32, #tpu.memory_space<vmem>>, vector<256x128xf32>
    %cst_36 = arith.constant dense<0.000000e+00> : vector<8x128xf32>
    %42 = tpu.matmul %0, %41, %cst_36 {dimension_numbers = #tpu.dot_dimension_numbers<[1], [0], [0], [1], [0, 0, 1, 1], [], []>} : vector<8x256xf32>, vector<256x128xf32>, vector<8x128xf32> -> vector<8x128xf32>
    %c0_37 = arith.constant 0 : index
    %c0_38 = arith.constant 0 : index
    %c0_39 = arith.constant 0 : index
    %43 = vector.load %arg9[%c0_37, %c0_38, %c0_39] : memref<4x2x8xf32, #tpu.memory_space<vmem>>, vector<1x2x8xf32>
    %44 = vector.shape_cast %43 : vector<1x2x8xf32> to vector<2x8xf32>
    %cst_40 = arith.constant dense<0.000000e+00> : vector<2x128xf32>
    %45 = tpu.matmul %44, %42, %cst_40 {dimension_numbers = #tpu.dot_dimension_numbers<[1], [0], [0], [1], [0, 0, 1, 1], [], []>} : vector<2x8xf32>, vector<8x128xf32>, vector<2x128xf32> -> vector<2x128xf32>
    %c0_41 = arith.constant 0 : index
    %c0_42 = arith.constant 0 : index
    %c0_43 = arith.constant 0 : index
    %46 = vector.load %arg10[%c0_41, %c0_42, %c0_43] : memref<4x2x1xf32, #tpu.memory_space<vmem>>, vector<1x2x1xf32>
    %47 = vector.shape_cast %46 : vector<1x2x1xf32> to vector<2x1xf32>
    %48 = vector.broadcast %47 : vector<2x1xf32> to vector<2x128xf32>
    %49 = arith.addf %45, %48 : vector<2x128xf32>
    %cst_44 = arith.constant 0.000000e+00 : f32
    %50 = vector.broadcast %cst_44 : f32 to vector<2x128xf32>
    %51 = arith.maximumf %49, %50 : vector<2x128xf32>
    %c0_45 = arith.constant 0 : index
    %c0_46 = arith.constant 0 : index
    %c0_47 = arith.constant 0 : index
    %52 = vector.load %arg11[%c0_45, %c0_46, %c0_47] : memref<4x8x2xf32, #tpu.memory_space<vmem>>, vector<1x8x2xf32>
    %53 = vector.shape_cast %52 : vector<1x8x2xf32> to vector<8x2xf32>
    %cst_48 = arith.constant dense<0.000000e+00> : vector<8x128xf32>
    %54 = tpu.matmul %53, %51, %cst_48 {dimension_numbers = #tpu.dot_dimension_numbers<[1], [0], [0], [1], [0, 0, 1, 1], [], []>} : vector<8x2xf32>, vector<2x128xf32>, vector<8x128xf32> -> vector<8x128xf32>
    %c0_49 = arith.constant 0 : index
    %c0_50 = arith.constant 0 : index
    %c0_51 = arith.constant 0 : index
    %55 = vector.load %arg12[%c0_49, %c0_50, %c0_51] : memref<4x8x1xf32, #tpu.memory_space<vmem>>, vector<1x8x1xf32>
    %56 = vector.shape_cast %55 : vector<1x8x1xf32> to vector<8x1xf32>
    %57 = vector.broadcast %56 : vector<8x1xf32> to vector<8x128xf32>
    %58 = arith.addf %54, %57 : vector<8x128xf32>
    %cst_52 = arith.constant 0.000000e+00 : f32
    %59 = vector.broadcast %cst_52 : f32 to vector<8x128xf32>
    %60 = arith.subf %59, %58 : vector<8x128xf32>
    %61 = math.exp %60 : vector<8x128xf32>
    %cst_53 = arith.constant 1.000000e+00 : f32
    %62 = vector.broadcast %cst_53 : f32 to vector<8x128xf32>
    %63 = arith.addf %62, %61 : vector<8x128xf32>
    %64 = tpu.reciprocal %63 {approx = true} : vector<8x128xf32> -> vector<8x128xf32>
    %c0_54 = arith.constant 0 : index
    %c0_55 = arith.constant 0 : index
    %c0_56 = arith.constant 0 : index
    %65 = vector.load %arg13[%c0_54, %c0_55, %c0_56] : memref<4x128x256xf32, #tpu.memory_space<vmem>>, vector<1x128x256xf32>
    %66 = vector.shape_cast %65 : vector<1x128x256xf32> to vector<128x256xf32>
    %cst_57 = arith.constant dense<0.000000e+00> : vector<8x256xf32>
    %67 = tpu.matmul %64, %66, %cst_57 {dimension_numbers = #tpu.dot_dimension_numbers<[1], [0], [0], [1], [0, 0, 1, 1], [], []>} : vector<8x128xf32>, vector<128x256xf32>, vector<8x256xf32> -> vector<8x256xf32>
    %c1_58 = arith.constant 1 : index
    %c0_59 = arith.constant 0 : index
    %c0_60 = arith.constant 0 : index
    %68 = vector.load %arg9[%c1_58, %c0_59, %c0_60] : memref<4x2x8xf32, #tpu.memory_space<vmem>>, vector<1x2x8xf32>
    %69 = vector.shape_cast %68 : vector<1x2x8xf32> to vector<2x8xf32>
    %cst_61 = arith.constant dense<0.000000e+00> : vector<2x128xf32>
    %70 = tpu.matmul %69, %42, %cst_61 {dimension_numbers = #tpu.dot_dimension_numbers<[1], [0], [0], [1], [0, 0, 1, 1], [], []>} : vector<2x8xf32>, vector<8x128xf32>, vector<2x128xf32> -> vector<2x128xf32>
    %c1_62 = arith.constant 1 : index
    %c0_63 = arith.constant 0 : index
    %c0_64 = arith.constant 0 : index
    %71 = vector.load %arg10[%c1_62, %c0_63, %c0_64] : memref<4x2x1xf32, #tpu.memory_space<vmem>>, vector<1x2x1xf32>
    %72 = vector.shape_cast %71 : vector<1x2x1xf32> to vector<2x1xf32>
    %73 = vector.broadcast %72 : vector<2x1xf32> to vector<2x128xf32>
    %74 = arith.addf %70, %73 : vector<2x128xf32>
    %cst_65 = arith.constant 0.000000e+00 : f32
    %75 = vector.broadcast %cst_65 : f32 to vector<2x128xf32>
    %76 = arith.maximumf %74, %75 : vector<2x128xf32>
    %c1_66 = arith.constant 1 : index
    %c0_67 = arith.constant 0 : index
    %c0_68 = arith.constant 0 : index
    %77 = vector.load %arg11[%c1_66, %c0_67, %c0_68] : memref<4x8x2xf32, #tpu.memory_space<vmem>>, vector<1x8x2xf32>
    %78 = vector.shape_cast %77 : vector<1x8x2xf32> to vector<8x2xf32>
    %cst_69 = arith.constant dense<0.000000e+00> : vector<8x128xf32>
    %79 = tpu.matmul %78, %76, %cst_69 {dimension_numbers = #tpu.dot_dimension_numbers<[1], [0], [0], [1], [0, 0, 1, 1], [], []>} : vector<8x2xf32>, vector<2x128xf32>, vector<8x128xf32> -> vector<8x128xf32>
    %c1_70 = arith.constant 1 : index
    %c0_71 = arith.constant 0 : index
    %c0_72 = arith.constant 0 : index
    %80 = vector.load %arg12[%c1_70, %c0_71, %c0_72] : memref<4x8x1xf32, #tpu.memory_space<vmem>>, vector<1x8x1xf32>
    %81 = vector.shape_cast %80 : vector<1x8x1xf32> to vector<8x1xf32>
    %82 = vector.broadcast %81 : vector<8x1xf32> to vector<8x128xf32>
    %83 = arith.addf %79, %82 : vector<8x128xf32>
    %cst_73 = arith.constant 0.000000e+00 : f32
    %84 = vector.broadcast %cst_73 : f32 to vector<8x128xf32>
    %85 = arith.subf %84, %83 : vector<8x128xf32>
    %86 = math.exp %85 : vector<8x128xf32>
    %cst_74 = arith.constant 1.000000e+00 : f32
    %87 = vector.broadcast %cst_74 : f32 to vector<8x128xf32>
    %88 = arith.addf %87, %86 : vector<8x128xf32>
    %89 = tpu.reciprocal %88 {approx = true} : vector<8x128xf32> -> vector<8x128xf32>
    %c1_75 = arith.constant 1 : index
    %c0_76 = arith.constant 0 : index
    %c0_77 = arith.constant 0 : index
    %90 = vector.load %arg13[%c1_75, %c0_76, %c0_77] : memref<4x128x256xf32, #tpu.memory_space<vmem>>, vector<1x128x256xf32>
    %91 = vector.shape_cast %90 : vector<1x128x256xf32> to vector<128x256xf32>
    %cst_78 = arith.constant dense<0.000000e+00> : vector<8x256xf32>
    %92 = tpu.matmul %89, %91, %cst_78 {dimension_numbers = #tpu.dot_dimension_numbers<[1], [0], [0], [1], [0, 0, 1, 1], [], []>} : vector<8x128xf32>, vector<128x256xf32>, vector<8x256xf32> -> vector<8x256xf32>
    %93 = arith.addf %67, %92 : vector<8x256xf32>
    %c2_79 = arith.constant 2 : index
    %c0_80 = arith.constant 0 : index
    %c0_81 = arith.constant 0 : index
    %94 = vector.load %arg9[%c2_79, %c0_80, %c0_81] : memref<4x2x8xf32, #tpu.memory_space<vmem>>, vector<1x2x8xf32>
    %95 = vector.shape_cast %94 : vector<1x2x8xf32> to vector<2x8xf32>
    %cst_82 = arith.constant dense<0.000000e+00> : vector<2x128xf32>
    %96 = tpu.matmul %95, %42, %cst_82 {dimension_numbers = #tpu.dot_dimension_numbers<[1], [0], [0], [1], [0, 0, 1, 1], [], []>} : vector<2x8xf32>, vector<8x128xf32>, vector<2x128xf32> -> vector<2x128xf32>
    %c2_83 = arith.constant 2 : index
    %c0_84 = arith.constant 0 : index
    %c0_85 = arith.constant 0 : index
    %97 = vector.load %arg10[%c2_83, %c0_84, %c0_85] : memref<4x2x1xf32, #tpu.memory_space<vmem>>, vector<1x2x1xf32>
    %98 = vector.shape_cast %97 : vector<1x2x1xf32> to vector<2x1xf32>
    %99 = vector.broadcast %98 : vector<2x1xf32> to vector<2x128xf32>
    %100 = arith.addf %96, %99 : vector<2x128xf32>
    %cst_86 = arith.constant 0.000000e+00 : f32
    %101 = vector.broadcast %cst_86 : f32 to vector<2x128xf32>
    %102 = arith.maximumf %100, %101 : vector<2x128xf32>
    %c2_87 = arith.constant 2 : index
    %c0_88 = arith.constant 0 : index
    %c0_89 = arith.constant 0 : index
    %103 = vector.load %arg11[%c2_87, %c0_88, %c0_89] : memref<4x8x2xf32, #tpu.memory_space<vmem>>, vector<1x8x2xf32>
    %104 = vector.shape_cast %103 : vector<1x8x2xf32> to vector<8x2xf32>
    %cst_90 = arith.constant dense<0.000000e+00> : vector<8x128xf32>
    %105 = tpu.matmul %104, %102, %cst_90 {dimension_numbers = #tpu.dot_dimension_numbers<[1], [0], [0], [1], [0, 0, 1, 1], [], []>} : vector<8x2xf32>, vector<2x128xf32>, vector<8x128xf32> -> vector<8x128xf32>
    %c2_91 = arith.constant 2 : index
    %c0_92 = arith.constant 0 : index
    %c0_93 = arith.constant 0 : index
    %106 = vector.load %arg12[%c2_91, %c0_92, %c0_93] : memref<4x8x1xf32, #tpu.memory_space<vmem>>, vector<1x8x1xf32>
    %107 = vector.shape_cast %106 : vector<1x8x1xf32> to vector<8x1xf32>
    %108 = vector.broadcast %107 : vector<8x1xf32> to vector<8x128xf32>
    %109 = arith.addf %105, %108 : vector<8x128xf32>
    %cst_94 = arith.constant 0.000000e+00 : f32
    %110 = vector.broadcast %cst_94 : f32 to vector<8x128xf32>
    %111 = arith.subf %110, %109 : vector<8x128xf32>
    %112 = math.exp %111 : vector<8x128xf32>
    %cst_95 = arith.constant 1.000000e+00 : f32
    %113 = vector.broadcast %cst_95 : f32 to vector<8x128xf32>
    %114 = arith.addf %113, %112 : vector<8x128xf32>
    %115 = tpu.reciprocal %114 {approx = true} : vector<8x128xf32> -> vector<8x128xf32>
    %c2_96 = arith.constant 2 : index
    %c0_97 = arith.constant 0 : index
    %c0_98 = arith.constant 0 : index
    %116 = vector.load %arg13[%c2_96, %c0_97, %c0_98] : memref<4x128x256xf32, #tpu.memory_space<vmem>>, vector<1x128x256xf32>
    %117 = vector.shape_cast %116 : vector<1x128x256xf32> to vector<128x256xf32>
    %cst_99 = arith.constant dense<0.000000e+00> : vector<8x256xf32>
    %118 = tpu.matmul %115, %117, %cst_99 {dimension_numbers = #tpu.dot_dimension_numbers<[1], [0], [0], [1], [0, 0, 1, 1], [], []>} : vector<8x128xf32>, vector<128x256xf32>, vector<8x256xf32> -> vector<8x256xf32>
    %119 = arith.addf %93, %118 : vector<8x256xf32>
    %c3_100 = arith.constant 3 : index
    %c0_101 = arith.constant 0 : index
    %c0_102 = arith.constant 0 : index
    %120 = vector.load %arg9[%c3_100, %c0_101, %c0_102] : memref<4x2x8xf32, #tpu.memory_space<vmem>>, vector<1x2x8xf32>
    %121 = vector.shape_cast %120 : vector<1x2x8xf32> to vector<2x8xf32>
    %cst_103 = arith.constant dense<0.000000e+00> : vector<2x128xf32>
    %122 = tpu.matmul %121, %42, %cst_103 {dimension_numbers = #tpu.dot_dimension_numbers<[1], [0], [0], [1], [0, 0, 1, 1], [], []>} : vector<2x8xf32>, vector<8x128xf32>, vector<2x128xf32> -> vector<2x128xf32>
    %c3_104 = arith.constant 3 : index
    %c0_105 = arith.constant 0 : index
    %c0_106 = arith.constant 0 : index
    %123 = vector.load %arg10[%c3_104, %c0_105, %c0_106] : memref<4x2x1xf32, #tpu.memory_space<vmem>>, vector<1x2x1xf32>
    %124 = vector.shape_cast %123 : vector<1x2x1xf32> to vector<2x1xf32>
    %125 = vector.broadcast %124 : vector<2x1xf32> to vector<2x128xf32>
    %126 = arith.addf %122, %125 : vector<2x128xf32>
    %cst_107 = arith.constant 0.000000e+00 : f32
    %127 = vector.broadcast %cst_107 : f32 to vector<2x128xf32>
    %128 = arith.maximumf %126, %127 : vector<2x128xf32>
    %c3_108 = arith.constant 3 : index
    %c0_109 = arith.constant 0 : index
    %c0_110 = arith.constant 0 : index
    %129 = vector.load %arg11[%c3_108, %c0_109, %c0_110] : memref<4x8x2xf32, #tpu.memory_space<vmem>>, vector<1x8x2xf32>
    %130 = vector.shape_cast %129 : vector<1x8x2xf32> to vector<8x2xf32>
    %cst_111 = arith.constant dense<0.000000e+00> : vector<8x128xf32>
    %131 = tpu.matmul %130, %128, %cst_111 {dimension_numbers = #tpu.dot_dimension_numbers<[1], [0], [0], [1], [0, 0, 1, 1], [], []>} : vector<8x2xf32>, vector<2x128xf32>, vector<8x128xf32> -> vector<8x128xf32>
    %c3_112 = arith.constant 3 : index
    %c0_113 = arith.constant 0 : index
    %c0_114 = arith.constant 0 : index
    %132 = vector.load %arg12[%c3_112, %c0_113, %c0_114] : memref<4x8x1xf32, #tpu.memory_space<vmem>>, vector<1x8x1xf32>
    %133 = vector.shape_cast %132 : vector<1x8x1xf32> to vector<8x1xf32>
    %134 = vector.broadcast %133 : vector<8x1xf32> to vector<8x128xf32>
    %135 = arith.addf %131, %134 : vector<8x128xf32>
    %cst_115 = arith.constant 0.000000e+00 : f32
    %136 = vector.broadcast %cst_115 : f32 to vector<8x128xf32>
    %137 = arith.subf %136, %135 : vector<8x128xf32>
    %138 = math.exp %137 : vector<8x128xf32>
    %cst_116 = arith.constant 1.000000e+00 : f32
    %139 = vector.broadcast %cst_116 : f32 to vector<8x128xf32>
    %140 = arith.addf %139, %138 : vector<8x128xf32>
    %141 = tpu.reciprocal %140 {approx = true} : vector<8x128xf32> -> vector<8x128xf32>
    %c3_117 = arith.constant 3 : index
    %c0_118 = arith.constant 0 : index
    %c0_119 = arith.constant 0 : index
    %142 = vector.load %arg13[%c3_117, %c0_118, %c0_119] : memref<4x128x256xf32, #tpu.memory_space<vmem>>, vector<1x128x256xf32>
    %143 = vector.shape_cast %142 : vector<1x128x256xf32> to vector<128x256xf32>
    %cst_120 = arith.constant dense<0.000000e+00> : vector<8x256xf32>
    %144 = tpu.matmul %141, %143, %cst_120 {dimension_numbers = #tpu.dot_dimension_numbers<[1], [0], [0], [1], [0, 0, 1, 1], [], []>} : vector<8x128xf32>, vector<128x256xf32>, vector<8x256xf32> -> vector<8x256xf32>
    %145 = arith.addf %119, %144 : vector<8x256xf32>
    %146 = arith.mulf %40, %145 : vector<8x256xf32>
    %c0_121 = arith.constant 0 : index
    %c0_122 = arith.constant 0 : index
    %147 = vector.load %arg14[%c0_121, %c0_122] : memref<8x8xf32, #tpu.memory_space<vmem>>, vector<8x8xf32>
    %cst_123 = arith.constant dense<0.000000e+00> : vector<8x256xf32>
    %148 = tpu.matmul %147, %0, %cst_123 {dimension_numbers = #tpu.dot_dimension_numbers<[1], [0], [0], [1], [0, 0, 1, 1], [], []>} : vector<8x8xf32>, vector<8x256xf32>, vector<8x256xf32> -> vector<8x256xf32>
    %c0_124 = arith.constant 0 : index
    %c0_125 = arith.constant 0 : index
    %149 = vector.load %arg15[%c0_124, %c0_125] : memref<8x1xf32, #tpu.memory_space<vmem>>, vector<8x1xf32>
    %150 = vector.broadcast %149 : vector<8x1xf32> to vector<8x256xf32>
    %151 = arith.addf %148, %150 : vector<8x256xf32>
    %cst_126 = arith.constant 0.000000e+00 : f32
    %152 = vector.broadcast %cst_126 : f32 to vector<8x256xf32>
    %153 = arith.maximumf %151, %152 : vector<8x256xf32>
    %c0_127 = arith.constant 0 : index
    %c0_128 = arith.constant 0 : index
    %154 = vector.load %arg16[%c0_127, %c0_128] : memref<8x8xf32, #tpu.memory_space<vmem>>, vector<8x8xf32>
    %cst_129 = arith.constant dense<0.000000e+00> : vector<8x256xf32>
    %155 = tpu.matmul %154, %153, %cst_129 {dimension_numbers = #tpu.dot_dimension_numbers<[1], [0], [0], [1], [0, 0, 1, 1], [], []>} : vector<8x8xf32>, vector<8x256xf32>, vector<8x256xf32> -> vector<8x256xf32>
    %c0_130 = arith.constant 0 : index
    %c0_131 = arith.constant 0 : index
    %156 = vector.load %arg17[%c0_130, %c0_131] : memref<8x1xf32, #tpu.memory_space<vmem>>, vector<8x1xf32>
    %157 = vector.broadcast %156 : vector<8x1xf32> to vector<8x256xf32>
    %158 = arith.addf %155, %157 : vector<8x256xf32>
    %cst_132 = arith.constant 0.000000e+00 : f32
    %159 = vector.broadcast %cst_132 : f32 to vector<8x256xf32>
    %160 = arith.subf %159, %158 : vector<8x256xf32>
    %161 = math.exp %160 : vector<8x256xf32>
    %cst_133 = arith.constant 1.000000e+00 : f32
    %162 = vector.broadcast %cst_133 : f32 to vector<8x256xf32>
    %163 = arith.addf %162, %161 : vector<8x256xf32>
    %164 = tpu.reciprocal %163 {approx = true} : vector<8x256xf32> -> vector<8x256xf32>
    %165 = arith.mulf %146, %164 : vector<8x256xf32>
    %c0_134 = arith.constant 0 : index
    %c0_135 = arith.constant 0 : index
    %c0_136 = arith.constant 0 : index
    %166 = vector.load %arg18[%c0_134, %c0_135, %c0_136] : memref<9x4x8xf32, #tpu.memory_space<vmem>>, vector<1x4x8xf32>
    %167 = vector.shape_cast %166 : vector<1x4x8xf32> to vector<4x8xf32>
    %cst_137 = arith.constant dense<0.000000e+00> : vector<4x256xf32>
    %168 = tpu.matmul %167, %0, %cst_137 {dimension_numbers = #tpu.dot_dimension_numbers<[1], [0], [0], [1], [0, 0, 1, 1], [], []>} : vector<4x8xf32>, vector<8x256xf32>, vector<4x256xf32> -> vector<4x256xf32>
    %c17_i32 = arith.constant 17 : i32
    %169 = tpu.dynamic_rotate %168 by %c17_i32 dim 1 : vector<4x256xf32>, i32 -> vector<4x256xf32>
    %c0_138 = arith.constant 0 : index
    %c0_139 = arith.constant 0 : index
    %c0_140 = arith.constant 0 : index
    %170 = vector.load %arg3[%c0_138, %c0_139, %c0_140] : memref<9x1x256xf32, #tpu.memory_space<vmem>>, vector<1x1x256xf32>
    %171 = vector.shape_cast %170 : vector<1x1x256xf32> to vector<1x256xf32>
    %172 = vector.broadcast %171 : vector<1x256xf32> to vector<4x256xf32>
    %173 = arith.mulf %169, %172 : vector<4x256xf32>
    %c1_141 = arith.constant 1 : index
    %c0_142 = arith.constant 0 : index
    %c0_143 = arith.constant 0 : index
    %174 = vector.load %arg18[%c1_141, %c0_142, %c0_143] : memref<9x4x8xf32, #tpu.memory_space<vmem>>, vector<1x4x8xf32>
    %175 = vector.shape_cast %174 : vector<1x4x8xf32> to vector<4x8xf32>
    %cst_144 = arith.constant dense<0.000000e+00> : vector<4x256xf32>
    %176 = tpu.matmul %175, %0, %cst_144 {dimension_numbers = #tpu.dot_dimension_numbers<[1], [0], [0], [1], [0, 0, 1, 1], [], []>} : vector<4x8xf32>, vector<8x256xf32>, vector<4x256xf32> -> vector<4x256xf32>
    %c16_i32 = arith.constant 16 : i32
    %177 = tpu.dynamic_rotate %176 by %c16_i32 dim 1 : vector<4x256xf32>, i32 -> vector<4x256xf32>
    %c1_145 = arith.constant 1 : index
    %c0_146 = arith.constant 0 : index
    %c0_147 = arith.constant 0 : index
    %178 = vector.load %arg3[%c1_145, %c0_146, %c0_147] : memref<9x1x256xf32, #tpu.memory_space<vmem>>, vector<1x1x256xf32>
    %179 = vector.shape_cast %178 : vector<1x1x256xf32> to vector<1x256xf32>
    %180 = vector.broadcast %179 : vector<1x256xf32> to vector<4x256xf32>
    %181 = arith.mulf %177, %180 : vector<4x256xf32>
    %182 = arith.addf %173, %181 : vector<4x256xf32>
    %c2_148 = arith.constant 2 : index
    %c0_149 = arith.constant 0 : index
    %c0_150 = arith.constant 0 : index
    %183 = vector.load %arg18[%c2_148, %c0_149, %c0_150] : memref<9x4x8xf32, #tpu.memory_space<vmem>>, vector<1x4x8xf32>
    %184 = vector.shape_cast %183 : vector<1x4x8xf32> to vector<4x8xf32>
    %cst_151 = arith.constant dense<0.000000e+00> : vector<4x256xf32>
    %185 = tpu.matmul %184, %0, %cst_151 {dimension_numbers = #tpu.dot_dimension_numbers<[1], [0], [0], [1], [0, 0, 1, 1], [], []>} : vector<4x8xf32>, vector<8x256xf32>, vector<4x256xf32> -> vector<4x256xf32>
    %c15_i32 = arith.constant 15 : i32
    %186 = tpu.dynamic_rotate %185 by %c15_i32 dim 1 : vector<4x256xf32>, i32 -> vector<4x256xf32>
    %c2_152 = arith.constant 2 : index
    %c0_153 = arith.constant 0 : index
    %c0_154 = arith.constant 0 : index
    %187 = vector.load %arg3[%c2_152, %c0_153, %c0_154] : memref<9x1x256xf32, #tpu.memory_space<vmem>>, vector<1x1x256xf32>
    %188 = vector.shape_cast %187 : vector<1x1x256xf32> to vector<1x256xf32>
    %189 = vector.broadcast %188 : vector<1x256xf32> to vector<4x256xf32>
    %190 = arith.mulf %186, %189 : vector<4x256xf32>
    %191 = arith.addf %182, %190 : vector<4x256xf32>
    %c3_155 = arith.constant 3 : index
    %c0_156 = arith.constant 0 : index
    %c0_157 = arith.constant 0 : index
    %192 = vector.load %arg18[%c3_155, %c0_156, %c0_157] : memref<9x4x8xf32, #tpu.memory_space<vmem>>, vector<1x4x8xf32>
    %193 = vector.shape_cast %192 : vector<1x4x8xf32> to vector<4x8xf32>
    %cst_158 = arith.constant dense<0.000000e+00> : vector<4x256xf32>
    %194 = tpu.matmul %193, %0, %cst_158 {dimension_numbers = #tpu.dot_dimension_numbers<[1], [0], [0], [1], [0, 0, 1, 1], [], []>} : vector<4x8xf32>, vector<8x256xf32>, vector<4x256xf32> -> vector<4x256xf32>
    %c1_i32 = arith.constant 1 : i32
    %195 = tpu.dynamic_rotate %194 by %c1_i32 dim 1 : vector<4x256xf32>, i32 -> vector<4x256xf32>
    %c3_159 = arith.constant 3 : index
    %c0_160 = arith.constant 0 : index
    %c0_161 = arith.constant 0 : index
    %196 = vector.load %arg3[%c3_159, %c0_160, %c0_161] : memref<9x1x256xf32, #tpu.memory_space<vmem>>, vector<1x1x256xf32>
    %197 = vector.shape_cast %196 : vector<1x1x256xf32> to vector<1x256xf32>
    %198 = vector.broadcast %197 : vector<1x256xf32> to vector<4x256xf32>
    %199 = arith.mulf %195, %198 : vector<4x256xf32>
    %200 = arith.addf %191, %199 : vector<4x256xf32>
    %c4_162 = arith.constant 4 : index
    %c0_163 = arith.constant 0 : index
    %c0_164 = arith.constant 0 : index
    %201 = vector.load %arg18[%c4_162, %c0_163, %c0_164] : memref<9x4x8xf32, #tpu.memory_space<vmem>>, vector<1x4x8xf32>
    %202 = vector.shape_cast %201 : vector<1x4x8xf32> to vector<4x8xf32>
    %cst_165 = arith.constant dense<0.000000e+00> : vector<4x256xf32>
    %203 = tpu.matmul %202, %0, %cst_165 {dimension_numbers = #tpu.dot_dimension_numbers<[1], [0], [0], [1], [0, 0, 1, 1], [], []>} : vector<4x8xf32>, vector<8x256xf32>, vector<4x256xf32> -> vector<4x256xf32>
    %204 = arith.addf %200, %203 : vector<4x256xf32>
    %c5 = arith.constant 5 : index
    %c0_166 = arith.constant 0 : index
    %c0_167 = arith.constant 0 : index
    %205 = vector.load %arg18[%c5, %c0_166, %c0_167] : memref<9x4x8xf32, #tpu.memory_space<vmem>>, vector<1x4x8xf32>
    %206 = vector.shape_cast %205 : vector<1x4x8xf32> to vector<4x8xf32>
    %cst_168 = arith.constant dense<0.000000e+00> : vector<4x256xf32>
    %207 = tpu.matmul %206, %0, %cst_168 {dimension_numbers = #tpu.dot_dimension_numbers<[1], [0], [0], [1], [0, 0, 1, 1], [], []>} : vector<4x8xf32>, vector<8x256xf32>, vector<4x256xf32> -> vector<4x256xf32>
    %c255_i32 = arith.constant 255 : i32
    %208 = tpu.dynamic_rotate %207 by %c255_i32 dim 1 : vector<4x256xf32>, i32 -> vector<4x256xf32>
    %c5_169 = arith.constant 5 : index
    %c0_170 = arith.constant 0 : index
    %c0_171 = arith.constant 0 : index
    %209 = vector.load %arg3[%c5_169, %c0_170, %c0_171] : memref<9x1x256xf32, #tpu.memory_space<vmem>>, vector<1x1x256xf32>
    %210 = vector.shape_cast %209 : vector<1x1x256xf32> to vector<1x256xf32>
    %211 = vector.broadcast %210 : vector<1x256xf32> to vector<4x256xf32>
    %212 = arith.mulf %208, %211 : vector<4x256xf32>
    %213 = arith.addf %204, %212 : vector<4x256xf32>
    %c6_172 = arith.constant 6 : index
    %c0_173 = arith.constant 0 : index
    %c0_174 = arith.constant 0 : index
    %214 = vector.load %arg18[%c6_172, %c0_173, %c0_174] : memref<9x4x8xf32, #tpu.memory_space<vmem>>, vector<1x4x8xf32>
    %215 = vector.shape_cast %214 : vector<1x4x8xf32> to vector<4x8xf32>
    %cst_175 = arith.constant dense<0.000000e+00> : vector<4x256xf32>
    %216 = tpu.matmul %215, %0, %cst_175 {dimension_numbers = #tpu.dot_dimension_numbers<[1], [0], [0], [1], [0, 0, 1, 1], [], []>} : vector<4x8xf32>, vector<8x256xf32>, vector<4x256xf32> -> vector<4x256xf32>
    %c241_i32 = arith.constant 241 : i32
    %217 = tpu.dynamic_rotate %216 by %c241_i32 dim 1 : vector<4x256xf32>, i32 -> vector<4x256xf32>
    %c6_176 = arith.constant 6 : index
    %c0_177 = arith.constant 0 : index
    %c0_178 = arith.constant 0 : index
    %218 = vector.load %arg3[%c6_176, %c0_177, %c0_178] : memref<9x1x256xf32, #tpu.memory_space<vmem>>, vector<1x1x256xf32>
    %219 = vector.shape_cast %218 : vector<1x1x256xf32> to vector<1x256xf32>
    %220 = vector.broadcast %219 : vector<1x256xf32> to vector<4x256xf32>
    %221 = arith.mulf %217, %220 : vector<4x256xf32>
    %222 = arith.addf %213, %221 : vector<4x256xf32>
    %c7 = arith.constant 7 : index
    %c0_179 = arith.constant 0 : index
    %c0_180 = arith.constant 0 : index
    %223 = vector.load %arg18[%c7, %c0_179, %c0_180] : memref<9x4x8xf32, #tpu.memory_space<vmem>>, vector<1x4x8xf32>
    %224 = vector.shape_cast %223 : vector<1x4x8xf32> to vector<4x8xf32>
    %cst_181 = arith.constant dense<0.000000e+00> : vector<4x256xf32>
    %225 = tpu.matmul %224, %0, %cst_181 {dimension_numbers = #tpu.dot_dimension_numbers<[1], [0], [0], [1], [0, 0, 1, 1], [], []>} : vector<4x8xf32>, vector<8x256xf32>, vector<4x256xf32> -> vector<4x256xf32>
    %c240_i32 = arith.constant 240 : i32
    %226 = tpu.dynamic_rotate %225 by %c240_i32 dim 1 : vector<4x256xf32>, i32 -> vector<4x256xf32>
    %c7_182 = arith.constant 7 : index
    %c0_183 = arith.constant 0 : index
    %c0_184 = arith.constant 0 : index
    %227 = vector.load %arg3[%c7_182, %c0_183, %c0_184] : memref<9x1x256xf32, #tpu.memory_space<vmem>>, vector<1x1x256xf32>
    %228 = vector.shape_cast %227 : vector<1x1x256xf32> to vector<1x256xf32>
    %229 = vector.broadcast %228 : vector<1x256xf32> to vector<4x256xf32>
    %230 = arith.mulf %226, %229 : vector<4x256xf32>
    %231 = arith.addf %222, %230 : vector<4x256xf32>
    %c8 = arith.constant 8 : index
    %c0_185 = arith.constant 0 : index
    %c0_186 = arith.constant 0 : index
    %232 = vector.load %arg18[%c8, %c0_185, %c0_186] : memref<9x4x8xf32, #tpu.memory_space<vmem>>, vector<1x4x8xf32>
    %233 = vector.shape_cast %232 : vector<1x4x8xf32> to vector<4x8xf32>
    %cst_187 = arith.constant dense<0.000000e+00> : vector<4x256xf32>
    %234 = tpu.matmul %233, %0, %cst_187 {dimension_numbers = #tpu.dot_dimension_numbers<[1], [0], [0], [1], [0, 0, 1, 1], [], []>} : vector<4x8xf32>, vector<8x256xf32>, vector<4x256xf32> -> vector<4x256xf32>
    %c239_i32 = arith.constant 239 : i32
    %235 = tpu.dynamic_rotate %234 by %c239_i32 dim 1 : vector<4x256xf32>, i32 -> vector<4x256xf32>
    %c8_188 = arith.constant 8 : index
    %c0_189 = arith.constant 0 : index
    %c0_190 = arith.constant 0 : index
    %236 = vector.load %arg3[%c8_188, %c0_189, %c0_190] : memref<9x1x256xf32, #tpu.memory_space<vmem>>, vector<1x1x256xf32>
    %237 = vector.shape_cast %236 : vector<1x1x256xf32> to vector<1x256xf32>
    %238 = vector.broadcast %237 : vector<1x256xf32> to vector<4x256xf32>
    %239 = arith.mulf %235, %238 : vector<4x256xf32>
    %240 = arith.addf %231, %239 : vector<4x256xf32>
    %c0_191 = arith.constant 0 : index
    %c0_192 = arith.constant 0 : index
    %241 = vector.load %arg19[%c0_191, %c0_192] : memref<4x1xf32, #tpu.memory_space<vmem>>, vector<4x1xf32>
    %242 = vector.broadcast %241 : vector<4x1xf32> to vector<4x256xf32>
    %243 = arith.addf %240, %242 : vector<4x256xf32>
    %cst_193 = arith.constant 0.000000e+00 : f32
    %244 = vector.broadcast %cst_193 : f32 to vector<4x256xf32>
    %245 = arith.maximumf %243, %244 : vector<4x256xf32>
    %c0_194 = arith.constant 0 : index
    %c0_195 = arith.constant 0 : index
    %c0_196 = arith.constant 0 : index
    %246 = vector.load %arg20[%c0_194, %c0_195, %c0_196] : memref<9x8x4xf32, #tpu.memory_space<vmem>>, vector<1x8x4xf32>
    %247 = vector.shape_cast %246 : vector<1x8x4xf32> to vector<8x4xf32>
    %cst_197 = arith.constant dense<0.000000e+00> : vector<8x256xf32>
    %248 = tpu.matmul %247, %245, %cst_197 {dimension_numbers = #tpu.dot_dimension_numbers<[1], [0], [0], [1], [0, 0, 1, 1], [], []>} : vector<8x4xf32>, vector<4x256xf32>, vector<8x256xf32> -> vector<8x256xf32>
    %c17_i32_198 = arith.constant 17 : i32
    %249 = tpu.dynamic_rotate %248 by %c17_i32_198 dim 1 : vector<8x256xf32>, i32 -> vector<8x256xf32>
    %c0_199 = arith.constant 0 : index
    %c0_200 = arith.constant 0 : index
    %c0_201 = arith.constant 0 : index
    %250 = vector.load %arg3[%c0_199, %c0_200, %c0_201] : memref<9x1x256xf32, #tpu.memory_space<vmem>>, vector<1x1x256xf32>
    %251 = vector.shape_cast %250 : vector<1x1x256xf32> to vector<1x256xf32>
    %252 = vector.broadcast %251 : vector<1x256xf32> to vector<8x256xf32>
    %253 = arith.mulf %249, %252 : vector<8x256xf32>
    %c1_202 = arith.constant 1 : index
    %c0_203 = arith.constant 0 : index
    %c0_204 = arith.constant 0 : index
    %254 = vector.load %arg20[%c1_202, %c0_203, %c0_204] : memref<9x8x4xf32, #tpu.memory_space<vmem>>, vector<1x8x4xf32>
    %255 = vector.shape_cast %254 : vector<1x8x4xf32> to vector<8x4xf32>
    %cst_205 = arith.constant dense<0.000000e+00> : vector<8x256xf32>
    %256 = tpu.matmul %255, %245, %cst_205 {dimension_numbers = #tpu.dot_dimension_numbers<[1], [0], [0], [1], [0, 0, 1, 1], [], []>} : vector<8x4xf32>, vector<4x256xf32>, vector<8x256xf32> -> vector<8x256xf32>
    %c16_i32_206 = arith.constant 16 : i32
    %257 = tpu.dynamic_rotate %256 by %c16_i32_206 dim 1 : vector<8x256xf32>, i32 -> vector<8x256xf32>
    %c1_207 = arith.constant 1 : index
    %c0_208 = arith.constant 0 : index
    %c0_209 = arith.constant 0 : index
    %258 = vector.load %arg3[%c1_207, %c0_208, %c0_209] : memref<9x1x256xf32, #tpu.memory_space<vmem>>, vector<1x1x256xf32>
    %259 = vector.shape_cast %258 : vector<1x1x256xf32> to vector<1x256xf32>
    %260 = vector.broadcast %259 : vector<1x256xf32> to vector<8x256xf32>
    %261 = arith.mulf %257, %260 : vector<8x256xf32>
    %262 = arith.addf %253, %261 : vector<8x256xf32>
    %c2_210 = arith.constant 2 : index
    %c0_211 = arith.constant 0 : index
    %c0_212 = arith.constant 0 : index
    %263 = vector.load %arg20[%c2_210, %c0_211, %c0_212] : memref<9x8x4xf32, #tpu.memory_space<vmem>>, vector<1x8x4xf32>
    %264 = vector.shape_cast %263 : vector<1x8x4xf32> to vector<8x4xf32>
    %cst_213 = arith.constant dense<0.000000e+00> : vector<8x256xf32>
    %265 = tpu.matmul %264, %245, %cst_213 {dimension_numbers = #tpu.dot_dimension_numbers<[1], [0], [0], [1], [0, 0, 1, 1], [], []>} : vector<8x4xf32>, vector<4x256xf32>, vector<8x256xf32> -> vector<8x256xf32>
    %c15_i32_214 = arith.constant 15 : i32
    %266 = tpu.dynamic_rotate %265 by %c15_i32_214 dim 1 : vector<8x256xf32>, i32 -> vector<8x256xf32>
    %c2_215 = arith.constant 2 : index
    %c0_216 = arith.constant 0 : index
    %c0_217 = arith.constant 0 : index
    %267 = vector.load %arg3[%c2_215, %c0_216, %c0_217] : memref<9x1x256xf32, #tpu.memory_space<vmem>>, vector<1x1x256xf32>
    %268 = vector.shape_cast %267 : vector<1x1x256xf32> to vector<1x256xf32>
    %269 = vector.broadcast %268 : vector<1x256xf32> to vector<8x256xf32>
    %270 = arith.mulf %266, %269 : vector<8x256xf32>
    %271 = arith.addf %262, %270 : vector<8x256xf32>
    %c3_218 = arith.constant 3 : index
    %c0_219 = arith.constant 0 : index
    %c0_220 = arith.constant 0 : index
    %272 = vector.load %arg20[%c3_218, %c0_219, %c0_220] : memref<9x8x4xf32, #tpu.memory_space<vmem>>, vector<1x8x4xf32>
    %273 = vector.shape_cast %272 : vector<1x8x4xf32> to vector<8x4xf32>
    %cst_221 = arith.constant dense<0.000000e+00> : vector<8x256xf32>
    %274 = tpu.matmul %273, %245, %cst_221 {dimension_numbers = #tpu.dot_dimension_numbers<[1], [0], [0], [1], [0, 0, 1, 1], [], []>} : vector<8x4xf32>, vector<4x256xf32>, vector<8x256xf32> -> vector<8x256xf32>
    %c1_i32_222 = arith.constant 1 : i32
    %275 = tpu.dynamic_rotate %274 by %c1_i32_222 dim 1 : vector<8x256xf32>, i32 -> vector<8x256xf32>
    %c3_223 = arith.constant 3 : index
    %c0_224 = arith.constant 0 : index
    %c0_225 = arith.constant 0 : index
    %276 = vector.load %arg3[%c3_223, %c0_224, %c0_225] : memref<9x1x256xf32, #tpu.memory_space<vmem>>, vector<1x1x256xf32>
    %277 = vector.shape_cast %276 : vector<1x1x256xf32> to vector<1x256xf32>
    %278 = vector.broadcast %277 : vector<1x256xf32> to vector<8x256xf32>
    %279 = arith.mulf %275, %278 : vector<8x256xf32>
    %280 = arith.addf %271, %279 : vector<8x256xf32>
    %c4_226 = arith.constant 4 : index
    %c0_227 = arith.constant 0 : index
    %c0_228 = arith.constant 0 : index
    %281 = vector.load %arg20[%c4_226, %c0_227, %c0_228] : memref<9x8x4xf32, #tpu.memory_space<vmem>>, vector<1x8x4xf32>
    %282 = vector.shape_cast %281 : vector<1x8x4xf32> to vector<8x4xf32>
    %cst_229 = arith.constant dense<0.000000e+00> : vector<8x256xf32>
    %283 = tpu.matmul %282, %245, %cst_229 {dimension_numbers = #tpu.dot_dimension_numbers<[1], [0], [0], [1], [0, 0, 1, 1], [], []>} : vector<8x4xf32>, vector<4x256xf32>, vector<8x256xf32> -> vector<8x256xf32>
    %284 = arith.addf %280, %283 : vector<8x256xf32>
    %c5_230 = arith.constant 5 : index
    %c0_231 = arith.constant 0 : index
    %c0_232 = arith.constant 0 : index
    %285 = vector.load %arg20[%c5_230, %c0_231, %c0_232] : memref<9x8x4xf32, #tpu.memory_space<vmem>>, vector<1x8x4xf32>
    %286 = vector.shape_cast %285 : vector<1x8x4xf32> to vector<8x4xf32>
    %cst_233 = arith.constant dense<0.000000e+00> : vector<8x256xf32>
    %287 = tpu.matmul %286, %245, %cst_233 {dimension_numbers = #tpu.dot_dimension_numbers<[1], [0], [0], [1], [0, 0, 1, 1], [], []>} : vector<8x4xf32>, vector<4x256xf32>, vector<8x256xf32> -> vector<8x256xf32>
    %c255_i32_234 = arith.constant 255 : i32
    %288 = tpu.dynamic_rotate %287 by %c255_i32_234 dim 1 : vector<8x256xf32>, i32 -> vector<8x256xf32>
    %c5_235 = arith.constant 5 : index
    %c0_236 = arith.constant 0 : index
    %c0_237 = arith.constant 0 : index
    %289 = vector.load %arg3[%c5_235, %c0_236, %c0_237] : memref<9x1x256xf32, #tpu.memory_space<vmem>>, vector<1x1x256xf32>
    %290 = vector.shape_cast %289 : vector<1x1x256xf32> to vector<1x256xf32>
    %291 = vector.broadcast %290 : vector<1x256xf32> to vector<8x256xf32>
    %292 = arith.mulf %288, %291 : vector<8x256xf32>
    %293 = arith.addf %284, %292 : vector<8x256xf32>
    %c6_238 = arith.constant 6 : index
    %c0_239 = arith.constant 0 : index
    %c0_240 = arith.constant 0 : index
    %294 = vector.load %arg20[%c6_238, %c0_239, %c0_240] : memref<9x8x4xf32, #tpu.memory_space<vmem>>, vector<1x8x4xf32>
    %295 = vector.shape_cast %294 : vector<1x8x4xf32> to vector<8x4xf32>
    %cst_241 = arith.constant dense<0.000000e+00> : vector<8x256xf32>
    %296 = tpu.matmul %295, %245, %cst_241 {dimension_numbers = #tpu.dot_dimension_numbers<[1], [0], [0], [1], [0, 0, 1, 1], [], []>} : vector<8x4xf32>, vector<4x256xf32>, vector<8x256xf32> -> vector<8x256xf32>
    %c241_i32_242 = arith.constant 241 : i32
    %297 = tpu.dynamic_rotate %296 by %c241_i32_242 dim 1 : vector<8x256xf32>, i32 -> vector<8x256xf32>
    %c6_243 = arith.constant 6 : index
    %c0_244 = arith.constant 0 : index
    %c0_245 = arith.constant 0 : index
    %298 = vector.load %arg3[%c6_243, %c0_244, %c0_245] : memref<9x1x256xf32, #tpu.memory_space<vmem>>, vector<1x1x256xf32>
    %299 = vector.shape_cast %298 : vector<1x1x256xf32> to vector<1x256xf32>
    %300 = vector.broadcast %299 : vector<1x256xf32> to vector<8x256xf32>
    %301 = arith.mulf %297, %300 : vector<8x256xf32>
    %302 = arith.addf %293, %301 : vector<8x256xf32>
    %c7_246 = arith.constant 7 : index
    %c0_247 = arith.constant 0 : index
    %c0_248 = arith.constant 0 : index
    %303 = vector.load %arg20[%c7_246, %c0_247, %c0_248] : memref<9x8x4xf32, #tpu.memory_space<vmem>>, vector<1x8x4xf32>
    %304 = vector.shape_cast %303 : vector<1x8x4xf32> to vector<8x4xf32>
    %cst_249 = arith.constant dense<0.000000e+00> : vector<8x256xf32>
    %305 = tpu.matmul %304, %245, %cst_249 {dimension_numbers = #tpu.dot_dimension_numbers<[1], [0], [0], [1], [0, 0, 1, 1], [], []>} : vector<8x4xf32>, vector<4x256xf32>, vector<8x256xf32> -> vector<8x256xf32>
    %c240_i32_250 = arith.constant 240 : i32
    %306 = tpu.dynamic_rotate %305 by %c240_i32_250 dim 1 : vector<8x256xf32>, i32 -> vector<8x256xf32>
    %c7_251 = arith.constant 7 : index
    %c0_252 = arith.constant 0 : index
    %c0_253 = arith.constant 0 : index
    %307 = vector.load %arg3[%c7_251, %c0_252, %c0_253] : memref<9x1x256xf32, #tpu.memory_space<vmem>>, vector<1x1x256xf32>
    %308 = vector.shape_cast %307 : vector<1x1x256xf32> to vector<1x256xf32>
    %309 = vector.broadcast %308 : vector<1x256xf32> to vector<8x256xf32>
    %310 = arith.mulf %306, %309 : vector<8x256xf32>
    %311 = arith.addf %302, %310 : vector<8x256xf32>
    %c8_254 = arith.constant 8 : index
    %c0_255 = arith.constant 0 : index
    %c0_256 = arith.constant 0 : index
    %312 = vector.load %arg20[%c8_254, %c0_255, %c0_256] : memref<9x8x4xf32, #tpu.memory_space<vmem>>, vector<1x8x4xf32>
    %313 = vector.shape_cast %312 : vector<1x8x4xf32> to vector<8x4xf32>
    %cst_257 = arith.constant dense<0.000000e+00> : vector<8x256xf32>
    %314 = tpu.matmul %313, %245, %cst_257 {dimension_numbers = #tpu.dot_dimension_numbers<[1], [0], [0], [1], [0, 0, 1, 1], [], []>} : vector<8x4xf32>, vector<4x256xf32>, vector<8x256xf32> -> vector<8x256xf32>
    %c239_i32_258 = arith.constant 239 : i32
    %315 = tpu.dynamic_rotate %314 by %c239_i32_258 dim 1 : vector<8x256xf32>, i32 -> vector<8x256xf32>
    %c8_259 = arith.constant 8 : index
    %c0_260 = arith.constant 0 : index
    %c0_261 = arith.constant 0 : index
    %316 = vector.load %arg3[%c8_259, %c0_260, %c0_261] : memref<9x1x256xf32, #tpu.memory_space<vmem>>, vector<1x1x256xf32>
    %317 = vector.shape_cast %316 : vector<1x1x256xf32> to vector<1x256xf32>
    %318 = vector.broadcast %317 : vector<1x256xf32> to vector<8x256xf32>
    %319 = arith.mulf %315, %318 : vector<8x256xf32>
    %320 = arith.addf %311, %319 : vector<8x256xf32>
    %c0_262 = arith.constant 0 : index
    %c0_263 = arith.constant 0 : index
    %321 = vector.load %arg21[%c0_262, %c0_263] : memref<8x1xf32, #tpu.memory_space<vmem>>, vector<8x1xf32>
    %322 = vector.broadcast %321 : vector<8x1xf32> to vector<8x256xf32>
    %323 = arith.addf %320, %322 : vector<8x256xf32>
    %cst_264 = arith.constant 0.000000e+00 : f32
    %324 = vector.broadcast %cst_264 : f32 to vector<8x256xf32>
    %325 = arith.subf %324, %323 : vector<8x256xf32>
    %326 = math.exp %325 : vector<8x256xf32>
    %cst_265 = arith.constant 1.000000e+00 : f32
    %327 = vector.broadcast %cst_265 : f32 to vector<8x256xf32>
    %328 = arith.addf %327, %326 : vector<8x256xf32>
    %329 = tpu.reciprocal %328 {approx = true} : vector<8x256xf32> -> vector<8x256xf32>
    %330 = arith.mulf %165, %329 : vector<8x256xf32>
    %331 = arith.addf %0, %330 : vector<8x256xf32>
    %c0_266 = arith.constant 0 : index
    %c0_267 = arith.constant 0 : index
    %c0_268 = arith.constant 0 : index
    %332 = vector.load %arg22[%c0_266, %c0_267, %c0_268] : memref<9x8x8xf32, #tpu.memory_space<vmem>>, vector<1x8x8xf32>
    %333 = vector.shape_cast %332 : vector<1x8x8xf32> to vector<8x8xf32>
    %cst_269 = arith.constant dense<0.000000e+00> : vector<8x256xf32>
    %334 = tpu.matmul %333, %331, %cst_269 {dimension_numbers = #tpu.dot_dimension_numbers<[1], [0], [0], [1], [0, 0, 1, 1], [], []>} : vector<8x8xf32>, vector<8x256xf32>, vector<8x256xf32> -> vector<8x256xf32>
    %c17_i32_270 = arith.constant 17 : i32
    %335 = tpu.dynamic_rotate %334 by %c17_i32_270 dim 1 : vector<8x256xf32>, i32 -> vector<8x256xf32>
    %c0_271 = arith.constant 0 : index
    %c0_272 = arith.constant 0 : index
    %c0_273 = arith.constant 0 : index
    %336 = vector.load %arg3[%c0_271, %c0_272, %c0_273] : memref<9x1x256xf32, #tpu.memory_space<vmem>>, vector<1x1x256xf32>
    %337 = vector.shape_cast %336 : vector<1x1x256xf32> to vector<1x256xf32>
    %338 = vector.broadcast %337 : vector<1x256xf32> to vector<8x256xf32>
    %339 = arith.mulf %335, %338 : vector<8x256xf32>
    %c1_274 = arith.constant 1 : index
    %c0_275 = arith.constant 0 : index
    %c0_276 = arith.constant 0 : index
    %340 = vector.load %arg22[%c1_274, %c0_275, %c0_276] : memref<9x8x8xf32, #tpu.memory_space<vmem>>, vector<1x8x8xf32>
    %341 = vector.shape_cast %340 : vector<1x8x8xf32> to vector<8x8xf32>
    %cst_277 = arith.constant dense<0.000000e+00> : vector<8x256xf32>
    %342 = tpu.matmul %341, %331, %cst_277 {dimension_numbers = #tpu.dot_dimension_numbers<[1], [0], [0], [1], [0, 0, 1, 1], [], []>} : vector<8x8xf32>, vector<8x256xf32>, vector<8x256xf32> -> vector<8x256xf32>
    %c16_i32_278 = arith.constant 16 : i32
    %343 = tpu.dynamic_rotate %342 by %c16_i32_278 dim 1 : vector<8x256xf32>, i32 -> vector<8x256xf32>
    %c1_279 = arith.constant 1 : index
    %c0_280 = arith.constant 0 : index
    %c0_281 = arith.constant 0 : index
    %344 = vector.load %arg3[%c1_279, %c0_280, %c0_281] : memref<9x1x256xf32, #tpu.memory_space<vmem>>, vector<1x1x256xf32>
    %345 = vector.shape_cast %344 : vector<1x1x256xf32> to vector<1x256xf32>
    %346 = vector.broadcast %345 : vector<1x256xf32> to vector<8x256xf32>
    %347 = arith.mulf %343, %346 : vector<8x256xf32>
    %348 = arith.addf %339, %347 : vector<8x256xf32>
    %c2_282 = arith.constant 2 : index
    %c0_283 = arith.constant 0 : index
    %c0_284 = arith.constant 0 : index
    %349 = vector.load %arg22[%c2_282, %c0_283, %c0_284] : memref<9x8x8xf32, #tpu.memory_space<vmem>>, vector<1x8x8xf32>
    %350 = vector.shape_cast %349 : vector<1x8x8xf32> to vector<8x8xf32>
    %cst_285 = arith.constant dense<0.000000e+00> : vector<8x256xf32>
    %351 = tpu.matmul %350, %331, %cst_285 {dimension_numbers = #tpu.dot_dimension_numbers<[1], [0], [0], [1], [0, 0, 1, 1], [], []>} : vector<8x8xf32>, vector<8x256xf32>, vector<8x256xf32> -> vector<8x256xf32>
    %c15_i32_286 = arith.constant 15 : i32
    %352 = tpu.dynamic_rotate %351 by %c15_i32_286 dim 1 : vector<8x256xf32>, i32 -> vector<8x256xf32>
    %c2_287 = arith.constant 2 : index
    %c0_288 = arith.constant 0 : index
    %c0_289 = arith.constant 0 : index
    %353 = vector.load %arg3[%c2_287, %c0_288, %c0_289] : memref<9x1x256xf32, #tpu.memory_space<vmem>>, vector<1x1x256xf32>
    %354 = vector.shape_cast %353 : vector<1x1x256xf32> to vector<1x256xf32>
    %355 = vector.broadcast %354 : vector<1x256xf32> to vector<8x256xf32>
    %356 = arith.mulf %352, %355 : vector<8x256xf32>
    %357 = arith.addf %348, %356 : vector<8x256xf32>
    %c3_290 = arith.constant 3 : index
    %c0_291 = arith.constant 0 : index
    %c0_292 = arith.constant 0 : index
    %358 = vector.load %arg22[%c3_290, %c0_291, %c0_292] : memref<9x8x8xf32, #tpu.memory_space<vmem>>, vector<1x8x8xf32>
    %359 = vector.shape_cast %358 : vector<1x8x8xf32> to vector<8x8xf32>
    %cst_293 = arith.constant dense<0.000000e+00> : vector<8x256xf32>
    %360 = tpu.matmul %359, %331, %cst_293 {dimension_numbers = #tpu.dot_dimension_numbers<[1], [0], [0], [1], [0, 0, 1, 1], [], []>} : vector<8x8xf32>, vector<8x256xf32>, vector<8x256xf32> -> vector<8x256xf32>
    %c1_i32_294 = arith.constant 1 : i32
    %361 = tpu.dynamic_rotate %360 by %c1_i32_294 dim 1 : vector<8x256xf32>, i32 -> vector<8x256xf32>
    %c3_295 = arith.constant 3 : index
    %c0_296 = arith.constant 0 : index
    %c0_297 = arith.constant 0 : index
    %362 = vector.load %arg3[%c3_295, %c0_296, %c0_297] : memref<9x1x256xf32, #tpu.memory_space<vmem>>, vector<1x1x256xf32>
    %363 = vector.shape_cast %362 : vector<1x1x256xf32> to vector<1x256xf32>
    %364 = vector.broadcast %363 : vector<1x256xf32> to vector<8x256xf32>
    %365 = arith.mulf %361, %364 : vector<8x256xf32>
    %366 = arith.addf %357, %365 : vector<8x256xf32>
    %c4_298 = arith.constant 4 : index
    %c0_299 = arith.constant 0 : index
    %c0_300 = arith.constant 0 : index
    %367 = vector.load %arg22[%c4_298, %c0_299, %c0_300] : memref<9x8x8xf32, #tpu.memory_space<vmem>>, vector<1x8x8xf32>
    %368 = vector.shape_cast %367 : vector<1x8x8xf32> to vector<8x8xf32>
    %cst_301 = arith.constant dense<0.000000e+00> : vector<8x256xf32>
    %369 = tpu.matmul %368, %331, %cst_301 {dimension_numbers = #tpu.dot_dimension_numbers<[1], [0], [0], [1], [0, 0, 1, 1], [], []>} : vector<8x8xf32>, vector<8x256xf32>, vector<8x256xf32> -> vector<8x256xf32>
    %370 = arith.addf %366, %369 : vector<8x256xf32>
    %c5_302 = arith.constant 5 : index
    %c0_303 = arith.constant 0 : index
    %c0_304 = arith.constant 0 : index
    %371 = vector.load %arg22[%c5_302, %c0_303, %c0_304] : memref<9x8x8xf32, #tpu.memory_space<vmem>>, vector<1x8x8xf32>
    %372 = vector.shape_cast %371 : vector<1x8x8xf32> to vector<8x8xf32>
    %cst_305 = arith.constant dense<0.000000e+00> : vector<8x256xf32>
    %373 = tpu.matmul %372, %331, %cst_305 {dimension_numbers = #tpu.dot_dimension_numbers<[1], [0], [0], [1], [0, 0, 1, 1], [], []>} : vector<8x8xf32>, vector<8x256xf32>, vector<8x256xf32> -> vector<8x256xf32>
    %c255_i32_306 = arith.constant 255 : i32
    %374 = tpu.dynamic_rotate %373 by %c255_i32_306 dim 1 : vector<8x256xf32>, i32 -> vector<8x256xf32>
    %c5_307 = arith.constant 5 : index
    %c0_308 = arith.constant 0 : index
    %c0_309 = arith.constant 0 : index
    %375 = vector.load %arg3[%c5_307, %c0_308, %c0_309] : memref<9x1x256xf32, #tpu.memory_space<vmem>>, vector<1x1x256xf32>
    %376 = vector.shape_cast %375 : vector<1x1x256xf32> to vector<1x256xf32>
    %377 = vector.broadcast %376 : vector<1x256xf32> to vector<8x256xf32>
    %378 = arith.mulf %374, %377 : vector<8x256xf32>
    %379 = arith.addf %370, %378 : vector<8x256xf32>
    %c6_310 = arith.constant 6 : index
    %c0_311 = arith.constant 0 : index
    %c0_312 = arith.constant 0 : index
    %380 = vector.load %arg22[%c6_310, %c0_311, %c0_312] : memref<9x8x8xf32, #tpu.memory_space<vmem>>, vector<1x8x8xf32>
    %381 = vector.shape_cast %380 : vector<1x8x8xf32> to vector<8x8xf32>
    %cst_313 = arith.constant dense<0.000000e+00> : vector<8x256xf32>
    %382 = tpu.matmul %381, %331, %cst_313 {dimension_numbers = #tpu.dot_dimension_numbers<[1], [0], [0], [1], [0, 0, 1, 1], [], []>} : vector<8x8xf32>, vector<8x256xf32>, vector<8x256xf32> -> vector<8x256xf32>
    %c241_i32_314 = arith.constant 241 : i32
    %383 = tpu.dynamic_rotate %382 by %c241_i32_314 dim 1 : vector<8x256xf32>, i32 -> vector<8x256xf32>
    %c6_315 = arith.constant 6 : index
    %c0_316 = arith.constant 0 : index
    %c0_317 = arith.constant 0 : index
    %384 = vector.load %arg3[%c6_315, %c0_316, %c0_317] : memref<9x1x256xf32, #tpu.memory_space<vmem>>, vector<1x1x256xf32>
    %385 = vector.shape_cast %384 : vector<1x1x256xf32> to vector<1x256xf32>
    %386 = vector.broadcast %385 : vector<1x256xf32> to vector<8x256xf32>
    %387 = arith.mulf %383, %386 : vector<8x256xf32>
    %388 = arith.addf %379, %387 : vector<8x256xf32>
    %c7_318 = arith.constant 7 : index
    %c0_319 = arith.constant 0 : index
    %c0_320 = arith.constant 0 : index
    %389 = vector.load %arg22[%c7_318, %c0_319, %c0_320] : memref<9x8x8xf32, #tpu.memory_space<vmem>>, vector<1x8x8xf32>
    %390 = vector.shape_cast %389 : vector<1x8x8xf32> to vector<8x8xf32>
    %cst_321 = arith.constant dense<0.000000e+00> : vector<8x256xf32>
    %391 = tpu.matmul %390, %331, %cst_321 {dimension_numbers = #tpu.dot_dimension_numbers<[1], [0], [0], [1], [0, 0, 1, 1], [], []>} : vector<8x8xf32>, vector<8x256xf32>, vector<8x256xf32> -> vector<8x256xf32>
    %c240_i32_322 = arith.constant 240 : i32
    %392 = tpu.dynamic_rotate %391 by %c240_i32_322 dim 1 : vector<8x256xf32>, i32 -> vector<8x256xf32>
    %c7_323 = arith.constant 7 : index
    %c0_324 = arith.constant 0 : index
    %c0_325 = arith.constant 0 : index
    %393 = vector.load %arg3[%c7_323, %c0_324, %c0_325] : memref<9x1x256xf32, #tpu.memory_space<vmem>>, vector<1x1x256xf32>
    %394 = vector.shape_cast %393 : vector<1x1x256xf32> to vector<1x256xf32>
    %395 = vector.broadcast %394 : vector<1x256xf32> to vector<8x256xf32>
    %396 = arith.mulf %392, %395 : vector<8x256xf32>
    %397 = arith.addf %388, %396 : vector<8x256xf32>
    %c8_326 = arith.constant 8 : index
    %c0_327 = arith.constant 0 : index
    %c0_328 = arith.constant 0 : index
    %398 = vector.load %arg22[%c8_326, %c0_327, %c0_328] : memref<9x8x8xf32, #tpu.memory_space<vmem>>, vector<1x8x8xf32>
    %399 = vector.shape_cast %398 : vector<1x8x8xf32> to vector<8x8xf32>
    %cst_329 = arith.constant dense<0.000000e+00> : vector<8x256xf32>
    %400 = tpu.matmul %399, %331, %cst_329 {dimension_numbers = #tpu.dot_dimension_numbers<[1], [0], [0], [1], [0, 0, 1, 1], [], []>} : vector<8x8xf32>, vector<8x256xf32>, vector<8x256xf32> -> vector<8x256xf32>
    %c239_i32_330 = arith.constant 239 : i32
    %401 = tpu.dynamic_rotate %400 by %c239_i32_330 dim 1 : vector<8x256xf32>, i32 -> vector<8x256xf32>
    %c8_331 = arith.constant 8 : index
    %c0_332 = arith.constant 0 : index
    %c0_333 = arith.constant 0 : index
    %402 = vector.load %arg3[%c8_331, %c0_332, %c0_333] : memref<9x1x256xf32, #tpu.memory_space<vmem>>, vector<1x1x256xf32>
    %403 = vector.shape_cast %402 : vector<1x1x256xf32> to vector<1x256xf32>
    %404 = vector.broadcast %403 : vector<1x256xf32> to vector<8x256xf32>
    %405 = arith.mulf %401, %404 : vector<8x256xf32>
    %406 = arith.addf %397, %405 : vector<8x256xf32>
    %c0_334 = arith.constant 0 : index
    %c0_335 = arith.constant 0 : index
    %407 = vector.load %arg23[%c0_334, %c0_335] : memref<8x1xf32, #tpu.memory_space<vmem>>, vector<8x1xf32>
    %408 = vector.broadcast %407 : vector<8x1xf32> to vector<8x256xf32>
    %409 = arith.addf %406, %408 : vector<8x256xf32>
    %c0_336 = arith.constant 0 : index
    %c0_337 = arith.constant 0 : index
    %410 = vector.load %arg24[%c0_336, %c0_337] : memref<8x256xf32, #tpu.memory_space<vmem>>, vector<8x256xf32>
    tpu.vector_store %arg24[%c0_336, %c0_337], %409 {strides = array<i32>} : memref<8x256xf32, #tpu.memory_space<vmem>>, vector<8x256xf32>,
    return
  }
  func.func @transform_0(%arg0: i32) -> (i32, i32) {
    %c0_i32 = arith.constant 0 : i32
    %c0_i32_0 = arith.constant 0 : i32
    return %arg0, %c0_i32 : i32, i32
  }
  func.func @transform_1(%arg0: i32) -> (i32, i32, i32) {
    %c0_i32 = arith.constant 0 : i32
    %c0_i32_0 = arith.constant 0 : i32
    %c0_i32_1 = arith.constant 0 : i32
    %c0_i32_2 = arith.constant 0 : i32
    return %c0_i32, %c0_i32_0, %c0_i32_1 : i32, i32, i32
  }
  func.func @transform_2(%arg0: i32) -> (i32, i32, i32) {
    %c0_i32 = arith.constant 0 : i32
    %c0_i32_0 = arith.constant 0 : i32
    %c0_i32_1 = arith.constant 0 : i32
    %c0_i32_2 = arith.constant 0 : i32
    return %c0_i32, %c0_i32_0, %c0_i32_1 : i32, i32, i32
  }
  func.func @transform_3(%arg0: i32) -> (i32, i32) {
    %c0_i32 = arith.constant 0 : i32
    %c0_i32_0 = arith.constant 0 : i32
    %c0_i32_1 = arith.constant 0 : i32
    return %c0_i32, %c0_i32_0 : i32, i32
  }
  func.func @transform_4(%arg0: i32) -> (i32, i32) {
    %c0_i32 = arith.constant 0 : i32
    %c0_i32_0 = arith.constant 0 : i32
    %c0_i32_1 = arith.constant 0 : i32
    return %c0_i32, %c0_i32_0 : i32, i32
  }
  func.func @transform_5(%arg0: i32) -> (i32, i32) {
    %c0_i32 = arith.constant 0 : i32
    %c0_i32_0 = arith.constant 0 : i32
    %c0_i32_1 = arith.constant 0 : i32
    return %c0_i32, %c0_i32_0 : i32, i32
  }
  func.func @transform_6(%arg0: i32) -> (i32, i32) {
    %c0_i32 = arith.constant 0 : i32
    %c0_i32_0 = arith.constant 0 : i32
    %c0_i32_1 = arith.constant 0 : i32
    return %c0_i32, %c0_i32_0 : i32, i32
  }
  func.func @transform_7(%arg0: i32) -> (i32, i32) {
    %c0_i32 = arith.constant 0 : i32
    %c0_i32_0 = arith.constant 0 : i32
    %c0_i32_1 = arith.constant 0 : i32
    return %c0_i32, %c0_i32_0 : i32, i32
  }
  func.func @transform_8(%arg0: i32) -> (i32, i32, i32) {
    %c0_i32 = arith.constant 0 : i32
    %c0_i32_0 = arith.constant 0 : i32
    %c0_i32_1 = arith.constant 0 : i32
    %c0_i32_2 = arith.constant 0 : i32
    return %c0_i32, %c0_i32_0, %c0_i32_1 : i32, i32, i32
  }
  func.func @transform_9(%arg0: i32) -> (i32, i32, i32) {
    %c0_i32 = arith.constant 0 : i32
    %c0_i32_0 = arith.constant 0 : i32
    %c0_i32_1 = arith.constant 0 : i32
    %c0_i32_2 = arith.constant 0 : i32
    return %c0_i32, %c0_i32_0, %c0_i32_1 : i32, i32, i32
  }
  func.func @transform_10(%arg0: i32) -> (i32, i32, i32) {
    %c0_i32 = arith.constant 0 : i32
    %c0_i32_0 = arith.constant 0 : i32
    %c0_i32_1 = arith.constant 0 : i32
    %c0_i32_2 = arith.constant 0 : i32
    return %c0_i32, %c0_i32_0, %c0_i32_1 : i32, i32, i32
  }
  func.func @transform_11(%arg0: i32) -> (i32, i32, i32) {
    %c0_i32 = arith.constant 0 : i32
    %c0_i32_0 = arith.constant 0 : i32
    %c0_i32_1 = arith.constant 0 : i32
    %c0_i32_2 = arith.constant 0 : i32
    return %c0_i32, %c0_i32_0, %c0_i32_1 : i32, i32, i32
  }
  func.func @transform_12(%arg0: i32) -> (i32, i32, i32) {
    %c0_i32 = arith.constant 0 : i32
    %c0_i32_0 = arith.constant 0 : i32
    %c0_i32_1 = arith.constant 0 : i32
    %c0_i32_2 = arith.constant 0 : i32
    return %c0_i32, %c0_i32_0, %c0_i32_1 : i32, i32, i32
  }
  func.func @transform_13(%arg0: i32) -> (i32, i32) {
    %c0_i32 = arith.constant 0 : i32
    %c0_i32_0 = arith.constant 0 : i32
    %c0_i32_1 = arith.constant 0 : i32
    return %c0_i32, %c0_i32_0 : i32, i32
  }
  func.func @transform_14(%arg0: i32) -> (i32, i32) {
    %c0_i32 = arith.constant 0 : i32
    %c0_i32_0 = arith.constant 0 : i32
    %c0_i32_1 = arith.constant 0 : i32
    return %c0_i32, %c0_i32_0 : i32, i32
  }
  func.func @transform_15(%arg0: i32) -> (i32, i32) {
    %c0_i32 = arith.constant 0 : i32
    %c0_i32_0 = arith.constant 0 : i32
    %c0_i32_1 = arith.constant 0 : i32
    return %c0_i32, %c0_i32_0 : i32, i32
  }
  func.func @transform_16(%arg0: i32) -> (i32, i32) {
    %c0_i32 = arith.constant 0 : i32
    %c0_i32_0 = arith.constant 0 : i32
    %c0_i32_1 = arith.constant 0 : i32
    return %c0_i32, %c0_i32_0 : i32, i32
  }
  func.func @transform_17(%arg0: i32) -> (i32, i32, i32) {
    %c0_i32 = arith.constant 0 : i32
    %c0_i32_0 = arith.constant 0 : i32
    %c0_i32_1 = arith.constant 0 : i32
    %c0_i32_2 = arith.constant 0 : i32
    return %c0_i32, %c0_i32_0, %c0_i32_1 : i32, i32, i32
  }
  func.func @transform_18(%arg0: i32) -> (i32, i32) {
    %c0_i32 = arith.constant 0 : i32
    %c0_i32_0 = arith.constant 0 : i32
    %c0_i32_1 = arith.constant 0 : i32
    return %c0_i32, %c0_i32_0 : i32, i32
  }
  func.func @transform_19(%arg0: i32) -> (i32, i32, i32) {
    %c0_i32 = arith.constant 0 : i32
    %c0_i32_0 = arith.constant 0 : i32
    %c0_i32_1 = arith.constant 0 : i32
    %c0_i32_2 = arith.constant 0 : i32
    return %c0_i32, %c0_i32_0, %c0_i32_1 : i32, i32, i32
  }
  func.func @transform_20(%arg0: i32) -> (i32, i32) {
    %c0_i32 = arith.constant 0 : i32
    %c0_i32_0 = arith.constant 0 : i32
    %c0_i32_1 = arith.constant 0 : i32
    return %c0_i32, %c0_i32_0 : i32, i32
  }
  func.func @transform_21(%arg0: i32) -> (i32, i32, i32) {
    %c0_i32 = arith.constant 0 : i32
    %c0_i32_0 = arith.constant 0 : i32
    %c0_i32_1 = arith.constant 0 : i32
    %c0_i32_2 = arith.constant 0 : i32
    return %c0_i32, %c0_i32_0, %c0_i32_1 : i32, i32, i32
  }
  func.func @transform_22(%arg0: i32) -> (i32, i32) {
    %c0_i32 = arith.constant 0 : i32
    %c0_i32_0 = arith.constant 0 : i32
    %c0_i32_1 = arith.constant 0 : i32
    return %c0_i32, %c0_i32_0 : i32, i32
  }
  func.func @transform_23(%arg0: i32) -> (i32, i32) {
    %c0_i32 = arith.constant 0 : i32
    %c0_i32_0 = arith.constant 0 : i32
    return %arg0, %c0_i32 : i32, i32
  }
}

</mosaic_0001>

<llo_original>
// kernel: avif_freq_aware_block.1
$region0: #{avif_freq_aware_block.1}
  #allocation0 [shape = 'u32[]', space=smem, size = 0x4, offset = 0x4, fixed_abs, tag = 'smem constant byte address 0x4 - core index']
  #allocation1 [shape = 'u32[144,128]{1,0:T(1,128)}', space=vmem, size = 0x12000, scoped, tag = 'internal scratch']
  #allocation2 [shape = 'f32[8,256]{1,0:T(8,128)}', space=vmem, size = 0x2000, scoped, tag = 'scratch operand']
  %s0 = inlined_call_operand.vmem [shape: f32[8,256], index: 0, kind: input, shape index: {}]
  %s1 = inlined_call_operand.vmem [shape: f32[4,256,256], index: 1, kind: input, shape index: {}]
  %s2 = inlined_call_operand.vmem [shape: f32[9,1,256], index: 2, kind: input, shape index: {}]
  %s3 = inlined_call_operand.vmem [shape: f32[8,8], index: 3, kind: input, shape index: {}]
  %s4 = inlined_call_operand.vmem [shape: f32[8,1], index: 4, kind: input, shape index: {}]
  %s5 = inlined_call_operand.vmem [shape: f32[8,8], index: 5, kind: input, shape index: {}]
  %s6 = inlined_call_operand.vmem [shape: f32[8,1], index: 6, kind: input, shape index: {}]
  %s7 = inlined_call_operand.vmem [shape: f32[256,128], index: 7, kind: input, shape index: {}]
  %s8 = inlined_call_operand.vmem [shape: f32[4,2,8], index: 8, kind: input, shape index: {}]
  %s9 = inlined_call_operand.vmem [shape: f32[4,2,1], index: 9, kind: input, shape index: {}]
  %s10 = inlined_call_operand.vmem [shape: f32[4,8,2], index: 10, kind: input, shape index: {}]
  %s11 = inlined_call_operand.vmem [shape: f32[4,8,1], index: 11, kind: input, shape index: {}]
  %s12 = inlined_call_operand.vmem [shape: f32[4,128,256], index: 12, kind: input, shape index: {}]
  %s13 = inlined_call_operand.vmem [shape: f32[8,8], index: 13, kind: input, shape index: {}]
  %s14 = inlined_call_operand.vmem [shape: f32[8,1], index: 14, kind: input, shape index: {}]
  %s15 = inlined_call_operand.vmem [shape: f32[8,8], index: 15, kind: input, shape index: {}]
  %s16 = inlined_call_operand.vmem [shape: f32[8,1], index: 16, kind: input, shape index: {}]
  %s17 = inlined_call_operand.vmem [shape: f32[9,4,8], index: 17, kind: input, shape index: {}]
  %s18 = inlined_call_operand.vmem [shape: f32[4,1], index: 18, kind: input, shape index: {}]
  %s19 = inlined_call_operand.vmem [shape: f32[9,8,4], index: 19, kind: input, shape index: {}]
  %s20 = inlined_call_operand.vmem [shape: f32[8,1], index: 20, kind: input, shape index: {}]
  %s21 = inlined_call_operand.vmem [shape: f32[9,8,8], index: 21, kind: input, shape index: {}]
  %s22 = inlined_call_operand.vmem [shape: f32[8,1], index: 22, kind: input, shape index: {}]
  %s23 = inlined_call_operand.vmem [shape: f32[8,256], index: 23, kind: output, shape index: {}]
  %s24 = sld [smem:[#allocation0]]
  $region102: #{avif_freq_aware_block.1} parent=0
    _
  %s26 = ssub.s32 1, %s24
  %s27 = scalar_select 0, %s26, %s24
  // Predicated region
  $region2: #{avif_freq_aware_block.1} parent=0 // pred_check
    _
  $region3: #{avif_freq_aware_block.1} parent=0 // pred_check_branch
    %29 = sbr.rel (0) target = $region5
  $region4: #{avif_freq_aware_block.1} parent=0 // pred_region
    _
  $region5: #{avif_freq_aware_block.1} parent=0 // pred_fallthru
    _
  // Predicated region
  $region6: #{avif_freq_aware_block.1} parent=0 // pred_check
    _
  $region7: #{avif_freq_aware_block.1} parent=0 // pred_check_branch
    %31 = sbr.rel (0) target = $region9
  $region8: #{avif_freq_aware_block.1} parent=0 // pred_region
    _
  $region9: #{avif_freq_aware_block.1} parent=0 // pred_fallthru
    _
  // Predicated region
  $region10: #{avif_freq_aware_block.1} parent=0 // pred_check
    _
  $region11: #{avif_freq_aware_block.1} parent=0 // pred_check_branch
    %33 = sbr.rel (0) target = $region13
  $region12: #{avif_freq_aware_block.1} parent=0 // pred_region
    _
  $region13: #{avif_freq_aware_block.1} parent=0 // pred_fallthru
    _
  // Predicated region
  $region14: #{avif_freq_aware_block.1} parent=0 // pred_check
    _
  $region15: #{avif_freq_aware_block.1} parent=0 // pred_check_branch
    %35 = sbr.rel (0) target = $region17
  $region16: #{avif_freq_aware_block.1} parent=0 // pred_region
    _
  $region17: #{avif_freq_aware_block.1} parent=0 // pred_fallthru
    _
  // Predicated region
  $region18: #{avif_freq_aware_block.1} parent=0 // pred_check
    _
  $region19: #{avif_freq_aware_block.1} parent=0 // pred_check_branch
    %37 = sbr.rel (0) target = $region21
  $region20: #{avif_freq_aware_block.1} parent=0 // pred_region
    _
  $region21: #{avif_freq_aware_block.1} parent=0 // pred_fallthru
    _
  // Predicated region
  $region22: #{avif_freq_aware_block.1} parent=0 // pred_check
    _
  $region23: #{avif_freq_aware_block.1} parent=0 // pred_check_branch
    %39 = sbr.rel (0) target = $region25
  $region24: #{avif_freq_aware_block.1} parent=0 // pred_region
    _
  $region25: #{avif_freq_aware_block.1} parent=0 // pred_fallthru
    _
  // Predicated region
  $region26: #{avif_freq_aware_block.1} parent=0 // pred_check
    _
  $region27: #{avif_freq_aware_block.1} parent=0 // pred_check_branch
    %41 = sbr.rel (0) target = $region29
  $region28: #{avif_freq_aware_block.1} parent=0 // pred_region
    _
  $region29: #{avif_freq_aware_block.1} parent=0 // pred_fallthru
    _
  // Predicated region
  $region30: #{avif_freq_aware_block.1} parent=0 // pred_check
    _
  $region31: #{avif_freq_aware_block.1} parent=0 // pred_check_branch
    %43 = sbr.rel (0) target = $region33
  $region32: #{avif_freq_aware_block.1} parent=0 // pred_region
    _
  $region33: #{avif_freq_aware_block.1} parent=0 // pred_fallthru
    _
  // Predicated region
  $region34: #{avif_freq_aware_block.1} parent=0 // pred_check
    _
  $region35: #{avif_freq_aware_block.1} parent=0 // pred_check_branch
    %45 = sbr.rel (0) target = $region37
  $region36: #{avif_freq_aware_block.1} parent=0 // pred_region
    _
  $region37: #{avif_freq_aware_block.1} parent=0 // pred_fallthru
    _
  // Predicated region
  $region38: #{avif_freq_aware_block.1} parent=0 // pred_check
    _
  $region39: #{avif_freq_aware_block.1} parent=0 // pred_check_branch
    %47 = sbr.rel (0) target = $region41
  $region40: #{avif_freq_aware_block.1} parent=0 // pred_region
    _
  $region41: #{avif_freq_aware_block.1} parent=0 // pred_fallthru
    _
  // Predicated region
  $region42: #{avif_freq_aware_block.1} parent=0 // pred_check
    _
  $region43: #{avif_freq_aware_block.1} parent=0 // pred_check_branch
    %49 = sbr.rel (0) target = $region45
  $region44: #{avif_freq_aware_block.1} parent=0 // pred_region
    _
  $region45: #{avif_freq_aware_block.1} parent=0 // pred_fallthru
    _
  // Predicated region
  $region46: #{avif_freq_aware_block.1} parent=0 // pred_check
    _
  $region47: #{avif_freq_aware_block.1} parent=0 // pred_check_branch
    %51 = sbr.rel (0) target = $region49
  $region48: #{avif_freq_aware_block.1} parent=0 // pred_region
    _
  $region49: #{avif_freq_aware_block.1} parent=0 // pred_fallthru
    _
  // Predicated region
  $region50: #{avif_freq_aware_block.1} parent=0 // pred_check
    _
  $region51: #{avif_freq_aware_block.1} parent=0 // pred_check_branch
    %53 = sbr.rel (0) target = $region53
  $region52: #{avif_freq_aware_block.1} parent=0 // pred_region
    _
  $region53: #{avif_freq_aware_block.1} parent=0 // pred_fallthru
    _
  // Predicated region
  $region54: #{avif_freq_aware_block.1} parent=0 // pred_check
    _
  $region55: #{avif_freq_aware_block.1} parent=0 // pred_check_branch
    %55 = sbr.rel (0) target = $region57
  $region56: #{avif_freq_aware_block.1} parent=0 // pred_region
    _
  $region57: #{avif_freq_aware_block.1} parent=0 // pred_fallthru
    _
  // Predicated region
  $region58: #{avif_freq_aware_block.1} parent=0 // pred_check
    _
  $region59: #{avif_freq_aware_block.1} parent=0 // pred_check_branch
    %57 = sbr.rel (0) target = $region61
  $region60: #{avif_freq_aware_block.1} parent=0 // pred_region
    _
  $region61: #{avif_freq_aware_block.1} parent=0 // pred_fallthru
    _
  // Predicated region
  $region62: #{avif_freq_aware_block.1} parent=0 // pred_check
    _
  $region63: #{avif_freq_aware_block.1} parent=0 // pred_check_branch
    %59 = sbr.rel (0) target = $region65
  $region64: #{avif_freq_aware_block.1} parent=0 // pred_region
    _
  $region65: #{avif_freq_aware_block.1} parent=0 // pred_fallthru
    _
  // Predicated region
  $region66: #{avif_freq_aware_block.1} parent=0 // pred_check
    _
  $region67: #{avif_freq_aware_block.1} parent=0 // pred_check_branch
    %61 = sbr.rel (0) target = $region69
  $region68: #{avif_freq_aware_block.1} parent=0 // pred_region
    _
  $region69: #{avif_freq_aware_block.1} parent=0 // pred_fallthru
    _
  // Predicated region
  $region70: #{avif_freq_aware_block.1} parent=0 // pred_check
    _
  $region71: #{avif_freq_aware_block.1} parent=0 // pred_check_branch
    %63 = sbr.rel (0) target = $region73
  $region72: #{avif_freq_aware_block.1} parent=0 // pred_region
    _
  $region73: #{avif_freq_aware_block.1} parent=0 // pred_fallthru
    _
  // Predicated region
  $region74: #{avif_freq_aware_block.1} parent=0 // pred_check
    _
  $region75: #{avif_freq_aware_block.1} parent=0 // pred_check_branch
    %65 = sbr.rel (0) target = $region77
  $region76: #{avif_freq_aware_block.1} parent=0 // pred_region
    _
  $region77: #{avif_freq_aware_block.1} parent=0 // pred_fallthru
    _
  // Predicated region
  $region78: #{avif_freq_aware_block.1} parent=0 // pred_check
    _
  $region79: #{avif_freq_aware_block.1} parent=0 // pred_check_branch
    %67 = sbr.rel (0) target = $region81
  $region80: #{avif_freq_aware_block.1} parent=0 // pred_region
    _
  $region81: #{avif_freq_aware_block.1} parent=0 // pred_fallthru
    _
  // Predicated region
  $region82: #{avif_freq_aware_block.1} parent=0 // pred_check
    _
  $region83: #{avif_freq_aware_block.1} parent=0 // pred_check_branch
    %69 = sbr.rel (0) target = $region85
  $region84: #{avif_freq_aware_block.1} parent=0 // pred_region
    _
  $region85: #{avif_freq_aware_block.1} parent=0 // pred_fallthru
    _
  // Predicated region
  $region86: #{avif_freq_aware_block.1} parent=0 // pred_check
    _
  $region87: #{avif_freq_aware_block.1} parent=0 // pred_check_branch
    %71 = sbr.rel (0) target = $region89
  $region88: #{avif_freq_aware_block.1} parent=0 // pred_region
    _
  $region89: #{avif_freq_aware_block.1} parent=0 // pred_fallthru
    _
  // Predicated region
  $region90: #{avif_freq_aware_block.1} parent=0 // pred_check
    _
  $region91: #{avif_freq_aware_block.1} parent=0 // pred_check_branch
    %73 = sbr.rel (0) target = $region93
  $region92: #{avif_freq_aware_block.1} parent=0 // pred_region
    _
  $region93: #{avif_freq_aware_block.1} parent=0 // pred_fallthru
    _
  %v74 = vld [vmem:[%s0] sm:$0xff]
  %v75 = vld [vmem:[%s0 + $0x8] sm:$0xff]
  %v76 = vld [vmem:[%s1] sm:$0xff]
  %v77 = vld [vmem:[%s1 + $0x8] sm:$0xff]
  %v78 = vld [vmem:[%s1 + $0x10] sm:$0xff]
  %v79 = vld [vmem:[%s1 + $0x18] sm:$0xff]
  %v80 = vld [vmem:[%s1 + $0x20] sm:$0xff]
  %v81 = vld [vmem:[%s1 + $0x28] sm:$0xff]
  %v82 = vld [vmem:[%s1 + $0x30] sm:$0xff]
  %v83 = vld [vmem:[%s1 + $0x38] sm:$0xff]
  %v84 = vld [vmem:[%s1 + $0x40] sm:$0xff]
  %v85 = vld [vmem:[%s1 + $0x48] sm:$0xff]
  %v86 = vld [vmem:[%s1 + $0x50] sm:$0xff]
  %v87 = vld [vmem:[%s1 + $0x58] sm:$0xff]
  %v88 = vld [vmem:[%s1 + $0x60] sm:$0xff]
  %v89 = vld [vmem:[%s1 + $0x68] sm:$0xff]
  %v90 = vld [vmem:[%s1 + $0x70] sm:$0xff]
  %v91 = vld [vmem:[%s1 + $0x78] sm:$0xff]
  %v92 = vld [vmem:[%s1 + $0x80] sm:$0xff]
  %v93 = vld [vmem:[%s1 + $0x88] sm:$0xff]
  %v94 = vld [vmem:[%s1 + $0x90] sm:$0xff]
  %v95 = vld [vmem:[%s1 + $0x98] sm:$0xff]
  %v96 = vld [vmem:[%s1 + $0xa0] sm:$0xff]
  %v97 = vld [vmem:[%s1 + $0xa8] sm:$0xff]
  %v98 = vld [vmem:[%s1 + $0xb0] sm:$0xff]
  %v99 = vld [vmem:[%s1 + $0xb8] sm:$0xff]
  %v100 = vld [vmem:[%s1 + $0xc0] sm:$0xff]
  %v101 = vld [vmem:[%s1 + $0xc8] sm:$0xff]
  %v102 = vld [vmem:[%s1 + $0xd0] sm:$0xff]
  %v103 = vld [vmem:[%s1 + $0xd8] sm:$0xff]
  %v104 = vld [vmem:[%s1 + $0xe0] sm:$0xff]
  %v105 = vld [vmem:[%s1 + $0xe8] sm:$0xff]
  %v106 = vld [vmem:[%s1 + $0xf0] sm:$0xff]
  %v107 = vld [vmem:[%s1 + $0xf8] sm:$0xff]
  %v108 = vld [vmem:[%s1 + $0x100] sm:$0xff]
  %v109 = vld [vmem:[%s1 + $0x108] sm:$0xff]
  %v110 = vld [vmem:[%s1 + $0x110] sm:$0xff]
  %v111 = vld [vmem:[%s1 + $0x118] sm:$0xff]
  %v112 = vld [vmem:[%s1 + $0x120] sm:$0xff]
  %v113 = vld [vmem:[%s1 + $0x128] sm:$0xff]
  %v114 = vld [vmem:[%s1 + $0x130] sm:$0xff]
  %v115 = vld [vmem:[%s1 + $0x138] sm:$0xff]
  %v116 = vld [vmem:[%s1 + $0x140] sm:$0xff]
  %v117 = vld [vmem:[%s1 + $0x148] sm:$0xff]
  %v118 = vld [vmem:[%s1 + $0x150] sm:$0xff]
  %v119 = vld [vmem:[%s1 + $0x158] sm:$0xff]
  %v120 = vld [vmem:[%s1 + $0x160] sm:$0xff]
  %v121 = vld [vmem:[%s1 + $0x168] sm:$0xff]
  %v122 = vld [vmem:[%s1 + $0x170] sm:$0xff]
  %v123 = vld [vmem:[%s1 + $0x178] sm:$0xff]
  %v124 = vld [vmem:[%s1 + $0x180] sm:$0xff]
  %v125 = vld [vmem:[%s1 + $0x188] sm:$0xff]
  %v126 = vld [vmem:[%s1 + $0x190] sm:$0xff]
  %v127 = vld [vmem:[%s1 + $0x198] sm:$0xff]
  %v128 = vld [vmem:[%s1 + $0x1a0] sm:$0xff]
  %v129 = vld [vmem:[%s1 + $0x1a8] sm:$0xff]
  %v130 = vld [vmem:[%s1 + $0x1b0] sm:$0xff]
  %v131 = vld [vmem:[%s1 + $0x1b8] sm:$0xff]
  %v132 = vld [vmem:[%s1 + $0x1c0] sm:$0xff]
  %v133 = vld [vmem:[%s1 + $0x1c8] sm:$0xff]
  %v134 = vld [vmem:[%s1 + $0x1d0] sm:$0xff]
  %v135 = vld [vmem:[%s1 + $0x1d8] sm:$0xff]
  %v136 = vld [vmem:[%s1 + $0x1e0] sm:$0xff]
  %v137 = vld [vmem:[%s1 + $0x1e8] sm:$0xff]
  %v138 = vld [vmem:[%s1 + $0x1f0] sm:$0xff]
  %v139 = vld [vmem:[%s1 + $0x1f8] sm:$0xff]
  %140 = vmatprep.subr.mxu0 %v77
  %141 = vmatpush1.msra.mxu0 %v76
  %142 = vmatprep.subr.mxu0 %v79
  %143 = vmatpush1.msra.mxu0 %v78
  %144 = vmatprep.subr.mxu0 %v81
  %145 = vmatpush1.msra.mxu0 %v80
  %146 = vmatprep.subr.mxu0 %v83
  %147 = vmatpush1.msra.mxu0 %v82
  %148 = vmatprep.subr.mxu0 %v85
  %149 = vmatpush1.msra.mxu0 %v84
  %150 = vmatprep.subr.mxu0 %v87
  %151 = vmatpush1.msra.mxu0 %v86
  %152 = vmatprep.subr.mxu0 %v89
  %153 = vmatpush1.msra.mxu0 %v88
  %154 = vmatprep.subr.mxu0 %v91
  %155 = vmatpush1.msra.mxu0 %v90
  %156 = vmatprep.subr.mxu0 %v93
  %157 = vmatpush1.msra.mxu0 %v92
  %158 = vmatprep.subr.mxu0 %v95
  %159 = vmatpush1.msra.mxu0 %v94
  %160 = vmatprep.subr.mxu0 %v97
  %161 = vmatpush1.msra.mxu0 %v96
  %162 = vmatprep.subr.mxu0 %v99
  %163 = vmatpush1.msra.mxu0 %v98
  %164 = vmatprep.subr.mxu0 %v101
  %165 = vmatpush1.msra.mxu0 %v100
  %166 = vmatprep.subr.mxu0 %v103
  %167 = vmatpush1.msra.mxu0 %v102
  %168 = vmatprep.subr.mxu0 %v105
  %169 = vmatpush1.msra.mxu0 %v104
  %170 = vmatprep.subr.mxu0 %v107
  %171 = vmatpush1.msra.mxu0 %v106
  %172 = vmatprep.subr.mxu0 %v109
  %173 = vmatpush1.msra.mxu0 %v108
  %174 = vmatprep.subr.mxu0 %v111
  %175 = vmatpush1.msra.mxu0 %v110
  %176 = vmatprep.subr.mxu0 %v113
  %177 = vmatpush1.msra.mxu0 %v112
  %178 = vmatprep.subr.mxu0 %v115
  %179 = vmatpush1.msra.mxu0 %v114
  %180 = vmatprep.subr.mxu0 %v117
  %181 = vmatpush1.msra.mxu0 %v116
  %182 = vmatprep.subr.mxu0 %v119
  %183 = vmatpush1.msra.mxu0 %v118
  %184 = vmatprep.subr.mxu0 %v121
  %185 = vmatpush1.msra.mxu0 %v120
  %186 = vmatprep.subr.mxu0 %v123
  %187 = vmatpush1.msra.mxu0 %v122
  %188 = vmatprep.subr.mxu0 %v125
  %189 = vmatpush1.msra.mxu0 %v124
  %190 = vmatprep.subr.mxu0 %v127
  %191 = vmatpush1.msra.mxu0 %v126
  %192 = vmatprep.subr.mxu0 %v129
  %193 = vmatpush1.msra.mxu0 %v128
  %194 = vmatprep.subr.mxu0 %v131
  %195 = vmatpush1.msra.mxu0 %v130
  %196 = vmatprep.subr.mxu0 %v133
  %197 = vmatpush1.msra.mxu0 %v132
  %198 = vmatprep.subr.mxu0 %v135
  %199 = vmatpush1.msra.mxu0 %v134
  %200 = vmatprep.subr.mxu0 %v137
  %201 = vmatpush1.msra.mxu0 %v136
  %202 = vmatprep.subr.mxu0 %v139
  %203 = vmatpush1.msra.mxu0 %v138
  %204 = vmatprep.mubr.f32.mxu0 %v75
  %205 = vmatmul.mubr.f32.gmra.mrb[0].mxu0 %v74
  %v206 = vpop.f32.mrb[0].mxu0
  %v207 = vadd.f32 0.0, %v206
  %v208 = vpop.f32.mrb[0].mxu0
  %v209 = vadd.f32 0.0, %v208
  %210 = vdwg.mxu0
  %211 = vst [vmem:[#allocation2] sm:$0x3] %v207
  %212 = vst [vmem:[#allocation2 + $0x8] sm:$0x3] %v209
  %s213 = scalar_lea.vmem %s1, 512
  %v214 = vld [vmem:[%s213] sm:$0xff]
  %v215 = vld [vmem:[%s213 + $0x8] sm:$0xff]
  %v216 = vld [vmem:[%s213 + $0x10] sm:$0xff]
  %v217 = vld [vmem:[%s213 + $0x18] sm:$0xff]
  %v218 = vld [vmem:[%s213 + $0x20] sm:$0xff]
  %v219 = vld [vmem:[%s213 + $0x28] sm:$0xff]
  %v220 = vld [vmem:[%s213 + $0x30] sm:$0xff]
  %v221 = vld [vmem:[%s213 + $0x38] sm:$0xff]
  %v222 = vld [vmem:[%s213 + $0x40] sm:$0xff]
  %v223 = vld [vmem:[%s213 + $0x48] sm:$0xff]
  %v224 = vld [vmem:[%s213 + $0x50] sm:$0xff]
  %v225 = vld [vmem:[%s213 + $0x58] sm:$0xff]
  %v226 = vld [vmem:[%s213 + $0x60] sm:$0xff]
  %v227 = vld [vmem:[%s213 + $0x68] sm:$0xff]
  %v228 = vld [vmem:[%s213 + $0x70] sm:$0xff]
  %v229 = vld [vmem:[%s213 + $0x78] sm:$0xff]
  %v230 = vld [vmem:[%s213 + $0x80] sm:$0xff]
  %v231 = vld [vmem:[%s213 + $0x88] sm:$0xff]
  %v232 = vld [vmem:[%s213 + $0x90] sm:$0xff]
  %v233 = vld [vmem:[%s213 + $0x98] sm:$0xff]
  %v234 = vld [vmem:[%s213 + $0xa0] sm:$0xff]
  %v235 = vld [vmem:[%s213 + $0xa8] sm:$0xff]
  %v236 = vld [vmem:[%s213 + $0xb0] sm:$0xff]
  %v237 = vld [vmem:[%s213 + $0xb8] sm:$0xff]
  %v238 = vld [vmem:[%s213 + $0xc0] sm:$0xff]
  %v239 = vld [vmem:[%s213 + $0xc8] sm:$0xff]
  %v240 = vld [vmem:[%s213 + $0xd0] sm:$0xff]
  %v241 = vld [vmem:[%s213 + $0xd8] sm:$0xff]
  %v242 = vld [vmem:[%s213 + $0xe0] sm:$0xff]
  %v243 = vld [vmem:[%s213 + $0xe8] sm:$0xff]
  %v244 = vld [vmem:[%s213 + $0xf0] sm:$0xff]
  %v245 = vld [vmem:[%s213 + $0xf8] sm:$0xff]
  %v246 = vld [vmem:[%s213 + $0x100] sm:$0xff]
  %v247 = vld [vmem:[%s213 + $0x108] sm:$0xff]
  %v248 = vld [vmem:[%s213 + $0x110] sm:$0xff]
  %v249 = vld [vmem:[%s213 + $0x118] sm:$0xff]
  %v250 = vld [vmem:[%s213 + $0x120] sm:$0xff]
  %v251 = vld [vmem:[%s213 + $0x128] sm:$0xff]
  %v252 = vld [vmem:[%s213 + $0x130] sm:$0xff]
  %v253 = vld [vmem:[%s213 + $0x138] sm:$0xff]
  %v254 = vld [vmem:[%s213 + $0x140] sm:$0xff]
  %v255 = vld [vmem:[%s213 + $0x148] sm:$0xff]
  %v256 = vld [vmem:[%s213 + $0x150] sm:$0xff]
  %v257 = vld [vmem:[%s213 + $0x158] sm:$0xff]
  %v258 = vld [vmem:[%s213 + $0x160] sm:$0xff]
  %v259 = vld [vmem:[%s213 + $0x168] sm:$0xff]
  %v260 = vld [vmem:[%s213 + $0x170] sm:$0xff]
  %v261 = vld [vmem:[%s213 + $0x178] sm:$0xff]
  %v262 = vld [vmem:[%s213 + $0x180] sm:$0xff]
  %v263 = vld [vmem:[%s213 + $0x188] sm:$0xff]
  %v264 = vld [vmem:[%s213 + $0x190] sm:$0xff]
  %v265 = vld [vmem:[%s213 + $0x198] sm:$0xff]
  %v266 = vld [vmem:[%s213 + $0x1a0] sm:$0xff]
  %v267 = vld [vmem:[%s213 + $0x1a8] sm:$0xff]
  %v268 = vld [vmem:[%s213 + $0x1b0] sm:$0xff]
  %v269 = vld [vmem:[%s213 + $0x1b8] sm:$0xff]
  %v270 = vld [vmem:[%s213 + $0x1c0] sm:$0xff]
  %v271 = vld [vmem:[%s213 + $0x1c8] sm:$0xff]
  %v272 = vld [vmem:[%s213 + $0x1d0] sm:$0xff]
  %v273 = vld [vmem:[%s213 + $0x1d8] sm:$0xff]
  %v274 = vld [vmem:[%s213 + $0x1e0] sm:$0xff]
  %v275 = vld [vmem:[%s213 + $0x1e8] sm:$0xff]
  %v276 = vld [vmem:[%s213 + $0x1f0] sm:$0xff]
  %v277 = vld [vmem:[%s213 + $0x1f8] sm:$0xff]
  %v280 = vrot.slane %v74, 2
  %v281 = vrot.slane %v75, 2
  %284 = vmatprep.subr.mxu0 %v215
  %285 = vmatpush1.msra.mxu0 %v214
  %286 = vmatprep.subr.mxu0 %v217
  %287 = vmatpush1.msra.mxu0 %v216
  %288 = vmatprep.subr.mxu0 %v219
  %289 = vmatpush1.msra.mxu0 %v218
  %290 = vmatprep.subr.mxu0 %v221
  %291 = vmatpush1.msra.mxu0 %v220
  %292 = vmatprep.subr.mxu0 %v223
  %293 = vmatpush1.msra.mxu0 %v222
  %294 = vmatprep.subr.mxu0 %v225
  %295 = vmatpush1.msra.mxu0 %v224
  %296 = vmatprep.subr.mxu0 %v227
  %297 = vmatpush1.msra.mxu0 %v226
  %298 = vmatprep.subr.mxu0 %v229
  %299 = vmatpush1.msra.mxu0 %v228
  %300 = vmatprep.subr.mxu0 %v231
  %301 = vmatpush1.msra.mxu0 %v230
  %302 = vmatprep.subr.mxu0 %v233
  %303 = vmatpush1.msra.mxu0 %v232
  %304 = vmatprep.subr.mxu0 %v235
  %305 = vmatpush1.msra.mxu0 %v234
  %306 = vmatprep.subr.mxu0 %v237
  %307 = vmatpush1.msra.mxu0 %v236
  %308 = vmatprep.subr.mxu0 %v239
  %309 = vmatpush1.msra.mxu0 %v238
  %310 = vmatprep.subr.mxu0 %v241
  %311 = vmatpush1.msra.mxu0 %v240
  %312 = vmatprep.subr.mxu0 %v243
  %313 = vmatpush1.msra.mxu0 %v242
  %314 = vmatprep.subr.mxu0 %v245
  %315 = vmatpush1.msra.mxu0 %v244
  %316 = vmatprep.subr.mxu0 %v247
  %317 = vmatpush1.msra.mxu0 %v246
  %318 = vmatprep.subr.mxu0 %v249
  %319 = vmatpush1.msra.mxu0 %v248
  %320 = vmatprep.subr.mxu0 %v251
  %321 = vmatpush1.msra.mxu0 %v250
  %322 = vmatprep.subr.mxu0 %v253
  %323 = vmatpush1.msra.mxu0 %v252
  %324 = vmatprep.subr.mxu0 %v255
  %325 = vmatpush1.msra.mxu0 %v254
  %326 = vmatprep.subr.mxu0 %v257
  %327 = vmatpush1.msra.mxu0 %v256
  %328 = vmatprep.subr.mxu0 %v259
  %329 = vmatpush1.msra.mxu0 %v258
  %330 = vmatprep.subr.mxu0 %v261
  %331 = vmatpush1.msra.mxu0 %v260
  %332 = vmatprep.subr.mxu0 %v263
  %333 = vmatpush1.msra.mxu0 %v262
  %334 = vmatprep.subr.mxu0 %v265
  %335 = vmatpush1.msra.mxu0 %v264
  %336 = vmatprep.subr.mxu0 %v267
  %337 = vmatpush1.msra.mxu0 %v266
  %338 = vmatprep.subr.mxu0 %v269
  %339 = vmatpush1.msra.mxu0 %v268
  %340 = vmatprep.subr.mxu0 %v271
  %341 = vmatpush1.msra.mxu0 %v270
  %342 = vmatprep.subr.mxu0 %v273
  %343 = vmatpush1.msra.mxu0 %v272
  %344 = vmatprep.subr.mxu0 %v275
  %345 = vmatpush1.msra.mxu0 %v274
  %346 = vmatprep.subr.mxu0 %v277
  %347 = vmatpush1.msra.mxu0 %v276
  %348 = vmatprep.mubr.f32.mxu0 %v281
  %349 = vmatmul.mubr.f32.gmra.mrb[0].mxu0 %v280
  %v350 = vpop.f32.mrb[0].mxu0
  %v351 = vadd.f32 0.0, %v350
  %v352 = vpop.f32.mrb[0].mxu0
  %v353 = vadd.f32 0.0, %v352
  %354 = vdwg.mxu0
  %v357 = vrot.slane %v351, 6
  %v358 = vrot.slane %v353, 6
  %361 = vst [vmem:[#allocation2] sm:$0xc] %v357
  %362 = vst [vmem:[#allocation2 + $0x8] sm:$0xc] %v358
  %s363 = scalar_lea.vmem %s1, 1024
  %v364 = vld [vmem:[%s363] sm:$0xff]
  %v365 = vld [vmem:[%s363 + $0x8] sm:$0xff]
  %v366 = vld [vmem:[%s363 + $0x10] sm:$0xff]
  %v367 = vld [vmem:[%s363 + $0x18] sm:$0xff]
  %v368 = vld [vmem:[%s363 + $0x20] sm:$0xff]
  %v369 = vld [vmem:[%s363 + $0x28] sm:$0xff]
  %v370 = vld [vmem:[%s363 + $0x30] sm:$0xff]
  %v371 = vld [vmem:[%s363 + $0x38] sm:$0xff]
  %v372 = vld [vmem:[%s363 + $0x40] sm:$0xff]
  %v373 = vld [vmem:[%s363 + $0x48] sm:$0xff]
  %v374 = vld [vmem:[%s363 + $0x50] sm:$0xff]
  %v375 = vld [vmem:[%s363 + $0x58] sm:$0xff]
  %v376 = vld [vmem:[%s363 + $0x60] sm:$0xff]
  %v377 = vld [vmem:[%s363 + $0x68] sm:$0xff]
  %v378 = vld [vmem:[%s363 + $0x70] sm:$0xff]
  %v379 = vld [vmem:[%s363 + $0x78] sm:$0xff]
  %v380 = vld [vmem:[%s363 + $0x80] sm:$0xff]
  %v381 = vld [vmem:[%s363 + $0x88] sm:$0xff]
  %v382 = vld [vmem:[%s363 + $0x90] sm:$0xff]
  %v383 = vld [vmem:[%s363 + $0x98] sm:$0xff]
  %v384 = vld [vmem:[%s363 + $0xa0] sm:$0xff]
  %v385 = vld [vmem:[%s363 + $0xa8] sm:$0xff]
  %v386 = vld [vmem:[%s363 + $0xb0] sm:$0xff]
  %v387 = vld [vmem:[%s363 + $0xb8] sm:$0xff]
  %v388 = vld [vmem:[%s363 + $0xc0] sm:$0xff]
  %v389 = vld [vmem:[%s363 + $0xc8] sm:$0xff]
  %v390 = vld [vmem:[%s363 + $0xd0] sm:$0xff]
  %v391 = vld [vmem:[%s363 + $0xd8] sm:$0xff]
  %v392 = vld [vmem:[%s363 + $0xe0] sm:$0xff]
  %v393 = vld [vmem:[%s363 + $0xe8] sm:$0xff]
  %v394 = vld [vmem:[%s363 + $0xf0] sm:$0xff]
  %v395 = vld [vmem:[%s363 + $0xf8] sm:$0xff]
  %v396 = vld [vmem:[%s363 + $0x100] sm:$0xff]
  %v397 = vld [vmem:[%s363 + $0x108] sm:$0xff]
  %v398 = vld [vmem:[%s363 + $0x110] sm:$0xff]
  %v399 = vld [vmem:[%s363 + $0x118] sm:$0xff]
  %v400 = vld [vmem:[%s363 + $0x120] sm:$0xff]
  %v401 = vld [vmem:[%s363 + $0x128] sm:$0xff]
  %v402 = vld [vmem:[%s363 + $0x130] sm:$0xff]
  %v403 = vld [vmem:[%s363 + $0x138] sm:$0xff]
  %v404 = vld [vmem:[%s363 + $0x140] sm:$0xff]
  %v405 = vld [vmem:[%s363 + $0x148] sm:$0xff]
  %v406 = vld [vmem:[%s363 + $0x150] sm:$0xff]
  %v407 = vld [vmem:[%s363 + $0x158] sm:$0xff]
  %v408 = vld [vmem:[%s363 + $0x160] sm:$0xff]
  %v409 = vld [vmem:[%s363 + $0x168] sm:$0xff]
  %v410 = vld [vmem:[%s363 + $0x170] sm:$0xff]
  %v411 = vld [vmem:[%s363 + $0x178] sm:$0xff]
  %v412 = vld [vmem:[%s363 + $0x180] sm:$0xff]
  %v413 = vld [vmem:[%s363 + $0x188] sm:$0xff]
  %v414 = vld [vmem:[%s363 + $0x190] sm:$0xff]
  %v415 = vld [vmem:[%s363 + $0x198] sm:$0xff]
  %v416 = vld [vmem:[%s363 + $0x1a0] sm:$0xff]
  %v417 = vld [vmem:[%s363 + $0x1a8] sm:$0xff]
  %v418 = vld [vmem:[%s363 + $0x1b0] sm:$0xff]
  %v419 = vld [vmem:[%s363 + $0x1b8] sm:$0xff]
  %v420 = vld [vmem:[%s363 + $0x1c0] sm:$0xff]
  %v421 = vld [vmem:[%s363 + $0x1c8] sm:$0xff]
  %v422 = vld [vmem:[%s363 + $0x1d0] sm:$0xff]
  %v423 = vld [vmem:[%s363 + $0x1d8] sm:$0xff]
  %v424 = vld [vmem:[%s363 + $0x1e0] sm:$0xff]
  %v425 = vld [vmem:[%s363 + $0x1e8] sm:$0xff]
  %v426 = vld [vmem:[%s363 + $0x1f0] sm:$0xff]
  %v427 = vld [vmem:[%s363 + $0x1f8] sm:$0xff]
  %v428 = vrot.slane %v74, 4
  %v429 = vrot.slane %v75, 4
  %432 = vmatprep.subr.mxu0 %v365
  %433 = vmatpush1.msra.mxu0 %v364
  %434 = vmatprep.subr.mxu0 %v367
  %435 = vmatpush1.msra.mxu0 %v366
  %436 = vmatprep.subr.mxu0 %v369
  %437 = vmatpush1.msra.mxu0 %v368
  %438 = vmatprep.subr.mxu0 %v371
  %439 = vmatpush1.msra.mxu0 %v370
  %440 = vmatprep.subr.mxu0 %v373
  %441 = vmatpush1.msra.mxu0 %v372
  %442 = vmatprep.subr.mxu0 %v375
  %443 = vmatpush1.msra.mxu0 %v374
  %444 = vmatprep.subr.mxu0 %v377
  %445 = vmatpush1.msra.mxu0 %v376
  %446 = vmatprep.subr.mxu0 %v379
  %447 = vmatpush1.msra.mxu0 %v378
  %448 = vmatprep.subr.mxu0 %v381
  %449 = vmatpush1.msra.mxu0 %v380
  %450 = vmatprep.subr.mxu0 %v383
  %451 = vmatpush1.msra.mxu0 %v382
  %452 = vmatprep.subr.mxu0 %v385
  %453 = vmatpush1.msra.mxu0 %v384
  %454 = vmatprep.subr.mxu0 %v387
  %455 = vmatpush1.msra.mxu0 %v386
  %456 = vmatprep.subr.mxu0 %v389
  %457 = vmatpush1.msra.mxu0 %v388
  %458 = vmatprep.subr.mxu0 %v391
  %459 = vmatpush1.msra.mxu0 %v390
  %460 = vmatprep.subr.mxu0 %v393
  %461 = vmatpush1.msra.mxu0 %v392
  %462 = vmatprep.subr.mxu0 %v395
  %463 = vmatpush1.msra.mxu0 %v394
  %464 = vmatprep.subr.mxu0 %v397
  %465 = vmatpush1.msra.mxu0 %v396
  %466 = vmatprep.subr.mxu0 %v399
  %467 = vmatpush1.msra.mxu0 %v398
  %468 = vmatprep.subr.mxu0 %v401
  %469 = vmatpush1.msra.mxu0 %v400
  %470 = vmatprep.subr.mxu0 %v403
  %471 = vmatpush1.msra.mxu0 %v402
  %472 = vmatprep.subr.mxu0 %v405
  %473 = vmatpush1.msra.mxu0 %v404
  %474 = vmatprep.subr.mxu0 %v407
  %475 = vmatpush1.msra.mxu0 %v406
  %476 = vmatprep.subr.mxu0 %v409
  %477 = vmatpush1.msra.mxu0 %v408
  %478 = vmatprep.subr.mxu0 %v411
  %479 = vmatpush1.msra.mxu0 %v410
  %480 = vmatprep.subr.mxu0 %v413
  %481 = vmatpush1.msra.mxu0 %v412
  %482 = vmatprep.subr.mxu0 %v415
  %483 = vmatpush1.msra.mxu0 %v414
  %484 = vmatprep.subr.mxu0 %v417
  %485 = vmatpush1.msra.mxu0 %v416
  %486 = vmatprep.subr.mxu0 %v419
  %487 = vmatpush1.msra.mxu0 %v418
  %488 = vmatprep.subr.mxu0 %v421
  %489 = vmatpush1.msra.mxu0 %v420
  %490 = vmatprep.subr.mxu0 %v423
  %491 = vmatpush1.msra.mxu0 %v422
  %492 = vmatprep.subr.mxu0 %v425
  %493 = vmatpush1.msra.mxu0 %v424
  %494 = vmatprep.subr.mxu0 %v427
  %495 = vmatpush1.msra.mxu0 %v426
  %496 = vmatprep.mubr.f32.mxu0 %v429
  %497 = vmatmul.mubr.f32.gmra.mrb[0].mxu0 %v428
  %v498 = vpop.f32.mrb[0].mxu0
  %v499 = vadd.f32 0.0, %v498
  %v500 = vpop.f32.mrb[0].mxu0
  %v501 = vadd.f32 0.0, %v500
  %502 = vdwg.mxu0
  %v505 = vrot.slane %v499, 4
  %v506 = vrot.slane %v501, 4
  %509 = vst [vmem:[#allocation2] sm:$0x30] %v505
  %510 = vst [vmem:[#allocation2 + $0x8] sm:$0x30] %v506
  %s511 = scalar_lea.vmem %s1, 1536
  %v512 = vld [vmem:[%s511] sm:$0xff]
  %v513 = vld [vmem:[%s511 + $0x8] sm:$0xff]
  %v514 = vld [vmem:[%s511 + $0x10] sm:$0xff]
  %v515 = vld [vmem:[%s511 + $0x18] sm:$0xff]
  %v516 = vld [vmem:[%s511 + $0x20] sm:$0xff]
  %v517 = vld [vmem:[%s511 + $0x28] sm:$0xff]
  %v518 = vld [vmem:[%s511 + $0x30] sm:$0xff]
  %v519 = vld [vmem:[%s511 + $0x38] sm:$0xff]
  %v520 = vld [vmem:[%s511 + $0x40] sm:$0xff]
  %v521 = vld [vmem:[%s511 + $0x48] sm:$0xff]
  %v522 = vld [vmem:[%s511 + $0x50] sm:$0xff]
  %v523 = vld [vmem:[%s511 + $0x58] sm:$0xff]
  %v524 = vld [vmem:[%s511 + $0x60] sm:$0xff]
  %v525 = vld [vmem:[%s511 + $0x68] sm:$0xff]
  %v526 = vld [vmem:[%s511 + $0x70] sm:$0xff]
  %v527 = vld [vmem:[%s511 + $0x78] sm:$0xff]
  %v528 = vld [vmem:[%s511 + $0x80] sm:$0xff]
  %v529 = vld [vmem:[%s511 + $0x88] sm:$0xff]
  %v530 = vld [vmem:[%s511 + $0x90] sm:$0xff]
  %v531 = vld [vmem:[%s511 + $0x98] sm:$0xff]
  %v532 = vld [vmem:[%s511 + $0xa0] sm:$0xff]
  %v533 = vld [vmem:[%s511 + $0xa8] sm:$0xff]
  %v534 = vld [vmem:[%s511 + $0xb0] sm:$0xff]
  %v535 = vld [vmem:[%s511 + $0xb8] sm:$0xff]
  %v536 = vld [vmem:[%s511 + $0xc0] sm:$0xff]
  %v537 = vld [vmem:[%s511 + $0xc8] sm:$0xff]
  %v538 = vld [vmem:[%s511 + $0xd0] sm:$0xff]
  %v539 = vld [vmem:[%s511 + $0xd8] sm:$0xff]
  %v540 = vld [vmem:[%s511 + $0xe0] sm:$0xff]
  %v541 = vld [vmem:[%s511 + $0xe8] sm:$0xff]
  %v542 = vld [vmem:[%s511 + $0xf0] sm:$0xff]
  %v543 = vld [vmem:[%s511 + $0xf8] sm:$0xff]
  %v544 = vld [vmem:[%s511 + $0x100] sm:$0xff]
  %v545 = vld [vmem:[%s511 + $0x108] sm:$0xff]
  %v546 = vld [vmem:[%s511 + $0x110] sm:$0xff]
  %v547 = vld [vmem:[%s511 + $0x118] sm:$0xff]
  %v548 = vld [vmem:[%s511 + $0x120] sm:$0xff]
  %v549 = vld [vmem:[%s511 + $0x128] sm:$0xff]
  %v550 = vld [vmem:[%s511 + $0x130] sm:$0xff]
  %v551 = vld [vmem:[%s511 + $0x138] sm:$0xff]
  %v552 = vld [vmem:[%s511 + $0x140] sm:$0xff]
  %v553 = vld [vmem:[%s511 + $0x148] sm:$0xff]
  %v554 = vld [vmem:[%s511 + $0x150] sm:$0xff]
  %v555 = vld [vmem:[%s511 + $0x158] sm:$0xff]
  %v556 = vld [vmem:[%s511 + $0x160] sm:$0xff]
  %v557 = vld [vmem:[%s511 + $0x168] sm:$0xff]
  %v558 = vld [vmem:[%s511 + $0x170] sm:$0xff]
  %v559 = vld [vmem:[%s511 + $0x178] sm:$0xff]
  %v560 = vld [vmem:[%s511 + $0x180] sm:$0xff]
  %v561 = vld [vmem:[%s511 + $0x188] sm:$0xff]
  %v562 = vld [vmem:[%s511 + $0x190] sm:$0xff]
  %v563 = vld [vmem:[%s511 + $0x198] sm:$0xff]
  %v564 = vld [vmem:[%s511 + $0x1a0] sm:$0xff]
  %v565 = vld [vmem:[%s511 + $0x1a8] sm:$0xff]
  %v566 = vld [vmem:[%s511 + $0x1b0] sm:$0xff]
  %v567 = vld [vmem:[%s511 + $0x1b8] sm:$0xff]
  %v568 = vld [vmem:[%s511 + $0x1c0] sm:$0xff]
  %v569 = vld [vmem:[%s511 + $0x1c8] sm:$0xff]
  %v570 = vld [vmem:[%s511 + $0x1d0] sm:$0xff]
  %v571 = vld [vmem:[%s511 + $0x1d8] sm:$0xff]
  %v572 = vld [vmem:[%s511 + $0x1e0] sm:$0xff]
  %v573 = vld [vmem:[%s511 + $0x1e8] sm:$0xff]
  %v574 = vld [vmem:[%s511 + $0x1f0] sm:$0xff]
  %v575 = vld [vmem:[%s511 + $0x1f8] sm:$0xff]
  %v576 = vrot.slane %v74, 6
  %v577 = vrot.slane %v75, 6
  %580 = vmatprep.subr.mxu0 %v513
  %581 = vmatpush1.msra.mxu0 %v512
  %582 = vmatprep.subr.mxu0 %v515
  %583 = vmatpush1.msra.mxu0 %v514
  %584 = vmatprep.subr.mxu0 %v517
  %585 = vmatpush1.msra.mxu0 %v516
  %586 = vmatprep.subr.mxu0 %v519
  %587 = vmatpush1.msra.mxu0 %v518
  %588 = vmatprep.subr.mxu0 %v521
  %589 = vmatpush1.msra.mxu0 %v520
  %590 = vmatprep.subr.mxu0 %v523
  %591 = vmatpush1.msra.mxu0 %v522
  %592 = vmatprep.subr.mxu0 %v525
  %593 = vmatpush1.msra.mxu0 %v524
  %594 = vmatprep.subr.mxu0 %v527
  %595 = vmatpush1.msra.mxu0 %v526
  %596 = vmatprep.subr.mxu0 %v529
  %597 = vmatpush1.msra.mxu0 %v528
  %598 = vmatprep.subr.mxu0 %v531
  %599 = vmatpush1.msra.mxu0 %v530
  %600 = vmatprep.subr.mxu0 %v533
  %601 = vmatpush1.msra.mxu0 %v532
  %602 = vmatprep.subr.mxu0 %v535
  %603 = vmatpush1.msra.mxu0 %v534
  %604 = vmatprep.subr.mxu0 %v537
  %605 = vmatpush1.msra.mxu0 %v536
  %606 = vmatprep.subr.mxu0 %v539
  %607 = vmatpush1.msra.mxu0 %v538
  %608 = vmatprep.subr.mxu0 %v541
  %609 = vmatpush1.msra.mxu0 %v540
  %610 = vmatprep.subr.mxu0 %v543
  %611 = vmatpush1.msra.mxu0 %v542
  %612 = vmatprep.subr.mxu0 %v545
  %613 = vmatpush1.msra.mxu0 %v544
  %614 = vmatprep.subr.mxu0 %v547
  %615 = vmatpush1.msra.mxu0 %v546
  %616 = vmatprep.subr.mxu0 %v549
  %617 = vmatpush1.msra.mxu0 %v548
  %618 = vmatprep.subr.mxu0 %v551
  %619 = vmatpush1.msra.mxu0 %v550
  %620 = vmatprep.subr.mxu0 %v553
  %621 = vmatpush1.msra.mxu0 %v552
  %622 = vmatprep.subr.mxu0 %v555
  %623 = vmatpush1.msra.mxu0 %v554
  %624 = vmatprep.subr.mxu0 %v557
  %625 = vmatpush1.msra.mxu0 %v556
  %626 = vmatprep.subr.mxu0 %v559
  %627 = vmatpush1.msra.mxu0 %v558
  %628 = vmatprep.subr.mxu0 %v561
  %629 = vmatpush1.msra.mxu0 %v560
  %630 = vmatprep.subr.mxu0 %v563
  %631 = vmatpush1.msra.mxu0 %v562
  %632 = vmatprep.subr.mxu0 %v565
  %633 = vmatpush1.msra.mxu0 %v564
  %634 = vmatprep.subr.mxu0 %v567
  %635 = vmatpush1.msra.mxu0 %v566
  %636 = vmatprep.subr.mxu0 %v569
  %637 = vmatpush1.msra.mxu0 %v568
  %638 = vmatprep.subr.mxu0 %v571
  %639 = vmatpush1.msra.mxu0 %v570
  %640 = vmatprep.subr.mxu0 %v573
  %641 = vmatpush1.msra.mxu0 %v572
  %642 = vmatprep.subr.mxu0 %v575
  %643 = vmatpush1.msra.mxu0 %v574
  %644 = vmatprep.mubr.f32.mxu0 %v577
  %645 = vmatmul.mubr.f32.gmra.mrb[0].mxu0 %v576
  %v646 = vpop.f32.mrb[0].mxu0
  %v647 = vadd.f32 0.0, %v646
  %v648 = vpop.f32.mrb[0].mxu0
  %v649 = vadd.f32 0.0, %v648
  %650 = vdwg.mxu0
  %v653 = vrot.slane %v647, 2
  %v654 = vrot.slane %v649, 2
  %657 = vst [vmem:[#allocation2] sm:$0xc0] %v653
  %658 = vst [vmem:[#allocation2 + $0x8] sm:$0xc0] %v654
  %v659 = vld [vmem:[#allocation2] sm:$0xff]
  %v660 = vld [vmem:[#allocation2 + $0x8] sm:$0xff]
  %v661 = vld [vmem:[%s3] sm:$0xff]
  %v662 = vld [vmem:[%s4] sm:$0xff]
  %664 = vset.pattern.permute.xlu0 0
  %665 = vperm.xlu0 %664, %v662
  %v666 = vpop.permute.xlu0 %665
  %vm668 = vcmask 64512
  %v670 = vsel %vm668, %v661, 0
  %672 = vmatprep.subr.mxu0 %v660
  %673 = vmatpush1.msra.mxu0 %v659
  %674 = vmatprep.subr.mxu0 0.0
  %675 = vmatpush1.msra.mxu0 0.0
  %676 = vmatprep.subr.mxu0 0.0
  %677 = vmatpush1.msra.mxu0 0.0
  %678 = vmatprep.subr.mxu0 0.0
  %679 = vmatpush1.msra.mxu0 0.0
  %680 = vmatprep.subr.mxu0 0.0
  %681 = vmatpush1.msra.mxu0 0.0
  %682 = vmatprep.subr.mxu0 0.0
  %683 = vmatpush1.msra.mxu0 0.0
  %684 = vmatprep.subr.mxu0 0.0
  %685 = vmatpush1.msra.mxu0 0.0
  %686 = vmatprep.subr.mxu0 0.0
  %687 = vmatpush1.msra.mxu0 0.0
  %688 = vmatprep.subr.mxu0 0.0
  %689 = vmatpush1.msra.mxu0 0.0
  %690 = vmatprep.subr.mxu0 0.0
  %691 = vmatpush1.msra.mxu0 0.0
  %692 = vmatprep.subr.mxu0 0.0
  %693 = vmatpush1.msra.mxu0 0.0
  %694 = vmatprep.subr.mxu0 0.0
  %695 = vmatpush1.msra.mxu0 0.0
  %696 = vmatprep.subr.mxu0 0.0
  %697 = vmatpush1.msra.mxu0 0.0
  %698 = vmatprep.subr.mxu0 0.0
  %699 = vmatpush1.msra.mxu0 0.0
  %700 = vmatprep.subr.mxu0 0.0
  %701 = vmatpush1.msra.mxu0 0.0
  %702 = vmatprep.subr.mxu0 0.0
  %703 = vmatpush1.msra.mxu0 0.0
  %704 = vmatprep.subr.mxu0 0.0
  %705 = vmatpush1.msra.mxu0 0.0
  %706 = vmatprep.subr.mxu0 0.0
  %707 = vmatpush1.msra.mxu0 0.0
  %708 = vmatprep.subr.mxu0 0.0
  %709 = vmatpush1.msra.mxu0 0.0
  %710 = vmatprep.subr.mxu0 0.0
  %711 = vmatpush1.msra.mxu0 0.0
  %712 = vmatprep.subr.mxu0 0.0
  %713 = vmatpush1.msra.mxu0 0.0
  %714 = vmatprep.subr.mxu0 0.0
  %715 = vmatpush1.msra.mxu0 0.0
  %716 = vmatprep.subr.mxu0 0.0
  %717 = vmatpush1.msra.mxu0 0.0
  %718 = vmatprep.subr.mxu0 0.0
  %719 = vmatpush1.msra.mxu0 0.0
  %720 = vmatprep.subr.mxu0 0.0
  %721 = vmatpush1.msra.mxu0 0.0
  %722 = vmatprep.subr.mxu0 0.0
  %723 = vmatpush1.msra.mxu0 0.0
  %724 = vmatprep.subr.mxu0 0.0
  %725 = vmatpush1.msra.mxu0 0.0
  %726 = vmatprep.subr.mxu0 0.0
  %727 = vmatpush1.msra.mxu0 0.0
  %728 = vmatprep.subr.mxu0 0.0
  %729 = vmatpush1.msra.mxu0 0.0
  %730 = vmatprep.subr.mxu0 0.0
  %731 = vmatpush1.msra.mxu0 0.0
  %732 = vmatprep.subr.mxu0 0.0
  %733 = vmatpush1.msra.mxu0 0.0
  %734 = vmatprep.subr.mxu0 0.0
  %735 = vmatpush1.msra.mxu0 0.0
  %736 = vmatprep.mubr.f32.mxu0 0.0
  %737 = vmatmul.mubr.f32.gmra.mrb[0].mxu0 %v670
  %v738 = vpop.f32.mrb[0].mxu0
  %v739 = vadd.f32 %v666, %v738
  %v740 = vpop.f32.mrb[0].mxu0
  %v741 = vadd.f32 %v666, %v740
  %742 = vdwg.mxu0
  %v743 = vmax.f32 %v739, 0.0
  %v744 = vmax.f32 %v741, 0.0
  %v745 = vld [vmem:[%s5] sm:$0xff]
  %v746 = vld [vmem:[%s6] sm:$0xff]
  %748 = vset.pattern.permute.xlu0 0
  %749 = vperm.xlu0 %748, %v746
  %v750 = vpop.permute.xlu0 %749
  %v753 = vsel %vm668, %v745, 0
  %755 = vmatprep.subr.mxu0 %v744
  %756 = vmatpush1.msra.mxu0 %v743
  %757 = vmatprep.subr.mxu0 0.0
  %758 = vmatpush1.msra.mxu0 0.0
  %759 = vmatprep.subr.mxu0 0.0
  %760 = vmatpush1.msra.mxu0 0.0
  %761 = vmatprep.subr.mxu0 0.0
  %762 = vmatpush1.msra.mxu0 0.0
  %763 = vmatprep.subr.mxu0 0.0
  %764 = vmatpush1.msra.mxu0 0.0
  %765 = vmatprep.subr.mxu0 0.0
  %766 = vmatpush1.msra.mxu0 0.0
  %767 = vmatprep.subr.mxu0 0.0
  %768 = vmatpush1.msra.mxu0 0.0
  %769 = vmatprep.subr.mxu0 0.0
  %770 = vmatpush1.msra.mxu0 0.0
  %771 = vmatprep.subr.mxu0 0.0
  %772 = vmatpush1.msra.mxu0 0.0
  %773 = vmatprep.subr.mxu0 0.0
  %774 = vmatpush1.msra.mxu0 0.0
  %775 = vmatprep.subr.mxu0 0.0
  %776 = vmatpush1.msra.mxu0 0.0
  %777 = vmatprep.subr.mxu0 0.0
  %778 = vmatpush1.msra.mxu0 0.0
  %779 = vmatprep.subr.mxu0 0.0
  %780 = vmatpush1.msra.mxu0 0.0
  %781 = vmatprep.subr.mxu0 0.0
  %782 = vmatpush1.msra.mxu0 0.0
  %783 = vmatprep.subr.mxu0 0.0
  %784 = vmatpush1.msra.mxu0 0.0
  %785 = vmatprep.subr.mxu0 0.0
  %786 = vmatpush1.msra.mxu0 0.0
  %787 = vmatprep.subr.mxu0 0.0
  %788 = vmatpush1.msra.mxu0 0.0
  %789 = vmatprep.subr.mxu0 0.0
  %790 = vmatpush1.msra.mxu0 0.0
  %791 = vmatprep.subr.mxu0 0.0
  %792 = vmatpush1.msra.mxu0 0.0
  %793 = vmatprep.subr.mxu0 0.0
  %794 = vmatpush1.msra.mxu0 0.0
  %795 = vmatprep.subr.mxu0 0.0
  %796 = vmatpush1.msra.mxu0 0.0
  %797 = vmatprep.subr.mxu0 0.0
  %798 = vmatpush1.msra.mxu0 0.0
  %799 = vmatprep.subr.mxu0 0.0
  %800 = vmatpush1.msra.mxu0 0.0
  %801 = vmatprep.subr.mxu0 0.0
  %802 = vmatpush1.msra.mxu0 0.0
  %803 = vmatprep.subr.mxu0 0.0
  %804 = vmatpush1.msra.mxu0 0.0
  %805 = vmatprep.subr.mxu0 0.0
  %806 = vmatpush1.msra.mxu0 0.0
  %807 = vmatprep.subr.mxu0 0.0
  %808 = vmatpush1.msra.mxu0 0.0
  %809 = vmatprep.subr.mxu0 0.0
  %810 = vmatpush1.msra.mxu0 0.0
  %811 = vmatprep.subr.mxu0 0.0
  %812 = vmatpush1.msra.mxu0 0.0
  %813 = vmatprep.subr.mxu0 0.0
  %814 = vmatpush1.msra.mxu0 0.0
  %815 = vmatprep.subr.mxu0 0.0
  %816 = vmatpush1.msra.mxu0 0.0
  %817 = vmatprep.subr.mxu0 0.0
  %818 = vmatpush1.msra.mxu0 0.0
  %819 = vmatprep.mubr.f32.mxu0 0.0
  %820 = vmatmul.mubr.f32.gmra.mrb[0].mxu0 %v753
  %v821 = vpop.f32.mrb[0].mxu0
  %v822 = vadd.f32 %v750, %v821
  %v823 = vpop.f32.mrb[0].mxu0
  %v824 = vadd.f32 %v750, %v823
  %825 = vdwg.mxu0
  %v826 = vsub.f32 0.0, %v822
  %v827 = vsub.f32 0.0, %v824
  %v828 = vmul.f32 %v826, 1.442695
  %v829 = vpow.pop %v828
  %v830 = vmul.f32 %v827, 1.442695
  %v831 = vpow.pop %v830
  %v832 = vadd.f32 %v829, 1.0
  %v833 = vadd.f32 %v831, 1.0
  %v834 = vrcp.pop %v832
  %v835 = vrcp.pop %v833
  %v836 = vmul.f32 %v659, %v834
  %v837 = vmul.f32 %v660, %v835
  %v838 = vld [vmem:[%s7] sm:$0xff]
  %v839 = vld [vmem:[%s7 + $0x8] sm:$0xff]
  %v840 = vld [vmem:[%s7 + $0x10] sm:$0xff]
  %v841 = vld [vmem:[%s7 + $0x18] sm:$0xff]
  %v842 = vld [vmem:[%s7 + $0x20] sm:$0xff]
  %v843 = vld [vmem:[%s7 + $0x28] sm:$0xff]
  %v844 = vld [vmem:[%s7 + $0x30] sm:$0xff]
  %v845 = vld [vmem:[%s7 + $0x38] sm:$0xff]
  %v846 = vld [vmem:[%s7 + $0x40] sm:$0xff]
  %v847 = vld [vmem:[%s7 + $0x48] sm:$0xff]
  %v848 = vld [vmem:[%s7 + $0x50] sm:$0xff]
  %v849 = vld [vmem:[%s7 + $0x58] sm:$0xff]
  %v850 = vld [vmem:[%s7 + $0x60] sm:$0xff]
  %v851 = vld [vmem:[%s7 + $0x68] sm:$0xff]
  %v852 = vld [vmem:[%s7 + $0x70] sm:$0xff]
  %v853 = vld [vmem:[%s7 + $0x78] sm:$0xff]
  %v854 = vld [vmem:[%s7 + $0x80] sm:$0xff]
  %v855 = vld [vmem:[%s7 + $0x88] sm:$0xff]
  %v856 = vld [vmem:[%s7 + $0x90] sm:$0xff]
  %v857 = vld [vmem:[%s7 + $0x98] sm:$0xff]
  %v858 = vld [vmem:[%s7 + $0xa0] sm:$0xff]
  %v859 = vld [vmem:[%s7 + $0xa8] sm:$0xff]
  %v860 = vld [vmem:[%s7 + $0xb0] sm:$0xff]
  %v861 = vld [vmem:[%s7 + $0xb8] sm:$0xff]
  %v862 = vld [vmem:[%s7 + $0xc0] sm:$0xff]
  %v863 = vld [vmem:[%s7 + $0xc8] sm:$0xff]
  %v864 = vld [vmem:[%s7 + $0xd0] sm:$0xff]
  %v865 = vld [vmem:[%s7 + $0xd8] sm:$0xff]
  %v866 = vld [vmem:[%s7 + $0xe0] sm:$0xff]
  %v867 = vld [vmem:[%s7 + $0xe8] sm:$0xff]
  %v868 = vld [vmem:[%s7 + $0xf0] sm:$0xff]
  %v869 = vld [vmem:[%s7 + $0xf8] sm:$0xff]
  %870 = vmatprep.subr.mxu0 0.0
  %871 = vmatpush1.msra.mxu0 %v838
  %872 = vmatprep.subr.mxu0 0.0
  %873 = vmatpush1.msra.mxu0 %v839
  %874 = vmatprep.subr.mxu0 0.0
  %875 = vmatpush1.msra.mxu0 %v840
  %876 = vmatprep.subr.mxu0 0.0
  %877 = vmatpush1.msra.mxu0 %v841
  %878 = vmatprep.subr.mxu0 0.0
  %879 = vmatpush1.msra.mxu0 %v842
  %880 = vmatprep.subr.mxu0 0.0
  %881 = vmatpush1.msra.mxu0 %v843
  %882 = vmatprep.subr.mxu0 0.0
  %883 = vmatpush1.msra.mxu0 %v844
  %884 = vmatprep.subr.mxu0 0.0
  %885 = vmatpush1.msra.mxu0 %v845
  %886 = vmatprep.subr.mxu0 0.0
  %887 = vmatpush1.msra.mxu0 %v846
  %888 = vmatprep.subr.mxu0 0.0
  %889 = vmatpush1.msra.mxu0 %v847
  %890 = vmatprep.subr.mxu0 0.0
  %891 = vmatpush1.msra.mxu0 %v848
  %892 = vmatprep.subr.mxu0 0.0
  %893 = vmatpush1.msra.mxu0 %v849
  %894 = vmatprep.subr.mxu0 0.0
  %895 = vmatpush1.msra.mxu0 %v850
  %896 = vmatprep.subr.mxu0 0.0
  %897 = vmatpush1.msra.mxu0 %v851
  %898 = vmatprep.subr.mxu0 0.0
  %899 = vmatpush1.msra.mxu0 %v852
  %900 = vmatprep.subr.mxu0 0.0
  %901 = vmatpush1.msra.mxu0 %v853
  %902 = vmatprep.subr.mxu0 0.0
  %903 = vmatpush1.msra.mxu0 %v854
  %904 = vmatprep.subr.mxu0 0.0
  %905 = vmatpush1.msra.mxu0 %v855
  %906 = vmatprep.subr.mxu0 0.0
  %907 = vmatpush1.msra.mxu0 %v856
  %908 = vmatprep.subr.mxu0 0.0
  %909 = vmatpush1.msra.mxu0 %v857
  %910 = vmatprep.subr.mxu0 0.0
  %911 = vmatpush1.msra.mxu0 %v858
  %912 = vmatprep.subr.mxu0 0.0
  %913 = vmatpush1.msra.mxu0 %v859
  %914 = vmatprep.subr.mxu0 0.0
  %915 = vmatpush1.msra.mxu0 %v860
  %916 = vmatprep.subr.mxu0 0.0
  %917 = vmatpush1.msra.mxu0 %v861
  %918 = vmatprep.subr.mxu0 0.0
  %919 = vmatpush1.msra.mxu0 %v862
  %920 = vmatprep.subr.mxu0 0.0
  %921 = vmatpush1.msra.mxu0 %v863
  %922 = vmatprep.subr.mxu0 0.0
  %923 = vmatpush1.msra.mxu0 %v864
  %924 = vmatprep.subr.mxu0 0.0
  %925 = vmatpush1.msra.mxu0 %v865
  %926 = vmatprep.subr.mxu0 0.0
  %927 = vmatpush1.msra.mxu0 %v866
  %928 = vmatprep.subr.mxu0 0.0
  %929 = vmatpush1.msra.mxu0 %v867
  %930 = vmatprep.subr.mxu0 0.0
  %931 = vmatpush1.msra.mxu0 %v868
  %932 = vmatprep.subr.mxu0 0.0
  %933 = vmatpush1.msra.mxu0 %v869
  %934 = vmatprep.mubr.f32.mxu0 %v75
  %935 = vmatmul.mubr.f32.gmra.mrb[0].mxu0 %v74
  %v936 = vpop.f32.mrb[0].mxu0
  %v937 = vadd.f32 0.0, %v936
  %v938 = vpop.f32.mrb[0].mxu0
  %939 = vdwg.mxu0
  %v940 = vld [vmem:[%s8] sm:$0x3]
  %v941 = vld [vmem:[%s9] sm:$0x3]
  %943 = vset.pattern.permute.xlu0 0
  %944 = vperm.xlu0 %943, %v941
  %v945 = vpop.permute.xlu0 %944
  %v948 = vsel %vm668, %v940, 0
  %950 = vmatprep.subr.mxu0 0.0
  %951 = vmatpush1.msra.mxu0 %v937
  %952 = vmatprep.subr.mxu0 0.0
  %953 = vmatpush1.msra.mxu0 0.0
  %954 = vmatprep.subr.mxu0 0.0
  %955 = vmatpush1.msra.mxu0 0.0
  %956 = vmatprep.subr.mxu0 0.0
  %957 = vmatpush1.msra.mxu0 0.0
  %958 = vmatprep.subr.mxu0 0.0
  %959 = vmatpush1.msra.mxu0 0.0
  %960 = vmatprep.subr.mxu0 0.0
  %961 = vmatpush1.msra.mxu0 0.0
  %962 = vmatprep.subr.mxu0 0.0
  %963 = vmatpush1.msra.mxu0 0.0
  %964 = vmatprep.subr.mxu0 0.0
  %965 = vmatpush1.msra.mxu0 0.0
  %966 = vmatprep.subr.mxu0 0.0
  %967 = vmatpush1.msra.mxu0 0.0
  %968 = vmatprep.subr.mxu0 0.0
  %969 = vmatpush1.msra.mxu0 0.0
  %970 = vmatprep.subr.mxu0 0.0
  %971 = vmatpush1.msra.mxu0 0.0
  %972 = vmatprep.subr.mxu0 0.0
  %973 = vmatpush1.msra.mxu0 0.0
  %974 = vmatprep.subr.mxu0 0.0
  %975 = vmatpush1.msra.mxu0 0.0
  %976 = vmatprep.subr.mxu0 0.0
  %977 = vmatpush1.msra.mxu0 0.0
  %978 = vmatprep.subr.mxu0 0.0
  %979 = vmatpush1.msra.mxu0 0.0
  %980 = vmatprep.subr.mxu0 0.0
  %981 = vmatpush1.msra.mxu0 0.0
  %982 = vmatprep.subr.mxu0 0.0
  %983 = vmatpush1.msra.mxu0 0.0
  %984 = vmatprep.subr.mxu0 0.0
  %985 = vmatpush1.msra.mxu0 0.0
  %986 = vmatprep.subr.mxu0 0.0
  %987 = vmatpush1.msra.mxu0 0.0
  %988 = vmatprep.subr.mxu0 0.0
  %989 = vmatpush1.msra.mxu0 0.0
  %990 = vmatprep.subr.mxu0 0.0
  %991 = vmatpush1.msra.mxu0 0.0
  %992 = vmatprep.subr.mxu0 0.0
  %993 = vmatpush1.msra.mxu0 0.0
  %994 = vmatprep.subr.mxu0 0.0
  %995 = vmatpush1.msra.mxu0 0.0
  %996 = vmatprep.subr.mxu0 0.0
  %997 = vmatpush1.msra.mxu0 0.0
  %998 = vmatprep.subr.mxu0 0.0
  %999 = vmatpush1.msra.mxu0 0.0
  %1000 = vmatprep.subr.mxu0 0.0
  %1001 = vmatpush1.msra.mxu0 0.0
  %1002 = vmatprep.subr.mxu0 0.0
  %1003 = vmatpush1.msra.mxu0 0.0
  %1004 = vmatprep.subr.mxu0 0.0
  %1005 = vmatpush1.msra.mxu0 0.0
  %1006 = vmatprep.subr.mxu0 0.0
  %1007 = vmatpush1.msra.mxu0 0.0
  %1008 = vmatprep.subr.mxu0 0.0
  %1009 = vmatpush1.msra.mxu0 0.0
  %1010 = vmatprep.subr.mxu0 0.0
  %1011 = vmatpush1.msra.mxu0 0.0
  %1012 = vmatprep.subr.mxu0 0.0
  %1013 = vmatpush1.msra.mxu0 0.0
  %1014 = vmatprep.mubr.f32.mxu0 0.0
  %1015 = vmatmul.mubr.f32.gmra.mrb[0].mxu0 %v948
  %v1016 = vpop.f32.mrb[0].mxu0
  %v1017 = vadd.f32 %v945, %v1016
  %v1018 = vpop.f32.mrb[0].mxu0
  %1019 = vdwg.mxu0
  %v1020 = vmax.f32 %v1017, 0.0
  %v1021 = vld [vmem:[%s10] sm:$0xff]
  %v1022 = vld [vmem:[%s11] sm:$0xff]
  %1024 = vset.pattern.permute.xlu0 0
  %1025 = vperm.xlu0 %1024, %v1022
  %v1026 = vpop.permute.xlu0 %1025
  %vm1028 = vcmask 15360
  %v1030 = vsel %vm1028, %v1021, 0
  %vm1032 = vcmask 1041408
  %v1034 = vsel %vm1032, %v1020, 0
  %1036 = vmatprep.subr.mxu0 0.0
  %1037 = vmatpush1.msra.mxu0 %v1034
  %1038 = vmatprep.subr.mxu0 0.0
  %1039 = vmatpush1.msra.mxu0 0.0
  %1040 = vmatprep.subr.mxu0 0.0
  %1041 = vmatpush1.msra.mxu0 0.0
  %1042 = vmatprep.subr.mxu0 0.0
  %1043 = vmatpush1.msra.mxu0 0.0
  %1044 = vmatprep.subr.mxu0 0.0
  %1045 = vmatpush1.msra.mxu0 0.0
  %1046 = vmatprep.subr.mxu0 0.0
  %1047 = vmatpush1.msra.mxu0 0.0
  %1048 = vmatprep.subr.mxu0 0.0
  %1049 = vmatpush1.msra.mxu0 0.0
  %1050 = vmatprep.subr.mxu0 0.0
  %1051 = vmatpush1.msra.mxu0 0.0
  %1052 = vmatprep.subr.mxu0 0.0
  %1053 = vmatpush1.msra.mxu0 0.0
  %1054 = vmatprep.subr.mxu0 0.0
  %1055 = vmatpush1.msra.mxu0 0.0
  %1056 = vmatprep.subr.mxu0 0.0
  %1057 = vmatpush1.msra.mxu0 0.0
  %1058 = vmatprep.subr.mxu0 0.0
  %1059 = vmatpush1.msra.mxu0 0.0
  %1060 = vmatprep.subr.mxu0 0.0
  %1061 = vmatpush1.msra.mxu0 0.0
  %1062 = vmatprep.subr.mxu0 0.0
  %1063 = vmatpush1.msra.mxu0 0.0
  %1064 = vmatprep.subr.mxu0 0.0
  %1065 = vmatpush1.msra.mxu0 0.0
  %1066 = vmatprep.subr.mxu0 0.0
  %1067 = vmatpush1.msra.mxu0 0.0
  %1068 = vmatprep.subr.mxu0 0.0
  %1069 = vmatpush1.msra.mxu0 0.0
  %1070 = vmatprep.subr.mxu0 0.0
  %1071 = vmatpush1.msra.mxu0 0.0
  %1072 = vmatprep.subr.mxu0 0.0
  %1073 = vmatpush1.msra.mxu0 0.0
  %1074 = vmatprep.subr.mxu0 0.0
  %1075 = vmatpush1.msra.mxu0 0.0
  %1076 = vmatprep.subr.mxu0 0.0
  %1077 = vmatpush1.msra.mxu0 0.0
  %1078 = vmatprep.subr.mxu0 0.0
  %1079 = vmatpush1.msra.mxu0 0.0
  %1080 = vmatprep.subr.mxu0 0.0
  %1081 = vmatpush1.msra.mxu0 0.0
  %1082 = vmatprep.subr.mxu0 0.0
  %1083 = vmatpush1.msra.mxu0 0.0
  %1084 = vmatprep.subr.mxu0 0.0
  %1085 = vmatpush1.msra.mxu0 0.0
  %1086 = vmatprep.subr.mxu0 0.0
  %1087 = vmatpush1.msra.mxu0 0.0
  %1088 = vmatprep.subr.mxu0 0.0
  %1089 = vmatpush1.msra.mxu0 0.0
  %1090 = vmatprep.subr.mxu0 0.0
  %1091 = vmatpush1.msra.mxu0 0.0
  %1092 = vmatprep.subr.mxu0 0.0
  %1093 = vmatpush1.msra.mxu0 0.0
  %1094 = vmatprep.subr.mxu0 0.0
  %1095 = vmatpush1.msra.mxu0 0.0
  %1096 = vmatprep.subr.mxu0 0.0
  %1097 = vmatpush1.msra.mxu0 0.0
  %1098 = vmatprep.subr.mxu0 0.0
  %1099 = vmatpush1.msra.mxu0 0.0
  %1100 = vmatprep.mubr.f32.mxu0 0.0
  %1101 = vmatmul.mubr.f32.gmra.mrb[0].mxu0 %v1030
  %v1102 = vpop.f32.mrb[0].mxu0
  %v1103 = vadd.f32 %v1026, %v1102
  %v1104 = vpop.f32.mrb[0].mxu0
  %1105 = vdwg.mxu0
  %v1106 = vsub.f32 0.0, %v1103
  %v1107 = vmul.f32 %v1106, 1.442695
  %v1108 = vpow.pop %v1107
  %v1109 = vadd.f32 %v1108, 1.0
  %v1110 = vrcp.pop %v1109
  %v1111 = vld [vmem:[%s12] sm:$0xff]
  %v1112 = vld [vmem:[%s12 + $0x8] sm:$0xff]
  %v1113 = vld [vmem:[%s12 + $0x10] sm:$0xff]
  %v1114 = vld [vmem:[%s12 + $0x18] sm:$0xff]
  %v1115 = vld [vmem:[%s12 + $0x20] sm:$0xff]
  %v1116 = vld [vmem:[%s12 + $0x28] sm:$0xff]
  %v1117 = vld [vmem:[%s12 + $0x30] sm:$0xff]
  %v1118 = vld [vmem:[%s12 + $0x38] sm:$0xff]
  %v1119 = vld [vmem:[%s12 + $0x40] sm:$0xff]
  %v1120 = vld [vmem:[%s12 + $0x48] sm:$0xff]
  %v1121 = vld [vmem:[%s12 + $0x50] sm:$0xff]
  %v1122 = vld [vmem:[%s12 + $0x58] sm:$0xff]
  %v1123 = vld [vmem:[%s12 + $0x60] sm:$0xff]
  %v1124 = vld [vmem:[%s12 + $0x68] sm:$0xff]
  %v1125 = vld [vmem:[%s12 + $0x70] sm:$0xff]
  %v1126 = vld [vmem:[%s12 + $0x78] sm:$0xff]
  %v1127 = vld [vmem:[%s12 + $0x80] sm:$0xff]
  %v1128 = vld [vmem:[%s12 + $0x88] sm:$0xff]
  %v1129 = vld [vmem:[%s12 + $0x90] sm:$0xff]
  %v1130 = vld [vmem:[%s12 + $0x98] sm:$0xff]
  %v1131 = vld [vmem:[%s12 + $0xa0] sm:$0xff]
  %v1132 = vld [vmem:[%s12 + $0xa8] sm:$0xff]
  %v1133 = vld [vmem:[%s12 + $0xb0] sm:$0xff]
  %v1134 = vld [vmem:[%s12 + $0xb8] sm:$0xff]
  %v1135 = vld [vmem:[%s12 + $0xc0] sm:$0xff]
  %v1136 = vld [vmem:[%s12 + $0xc8] sm:$0xff]
  %v1137 = vld [vmem:[%s12 + $0xd0] sm:$0xff]
  %v1138 = vld [vmem:[%s12 + $0xd8] sm:$0xff]
  %v1139 = vld [vmem:[%s12 + $0xe0] sm:$0xff]
  %v1140 = vld [vmem:[%s12 + $0xe8] sm:$0xff]
  %v1141 = vld [vmem:[%s12 + $0xf0] sm:$0xff]
  %v1142 = vld [vmem:[%s12 + $0xf8] sm:$0xff]
  %s1143 = scalar_lea.vmem %s8, 2
  %v1144 = vld [vmem:[%s1143] sm:$0x3]
  %s1145 = scalar_lea.vmem %s9, 2
  %v1146 = vld [vmem:[%s1145] sm:$0x3]
  %1148 = vset.pattern.permute.xlu0 0
  %1149 = vperm.xlu0 %1148, %v1146
  %v1150 = vpop.permute.xlu0 %1149
  %v1153 = vsel %vm668, %v1144, 0
  %1155 = vmatprep.subr.mxu0 0.0
  %1156 = vmatpush1.msra.mxu0 %v937
  %1157 = vmatprep.subr.mxu0 0.0
  %1158 = vmatpush1.msra.mxu0 0.0
  %1159 = vmatprep.subr.mxu0 0.0
  %1160 = vmatpush1.msra.mxu0 0.0
  %1161 = vmatprep.subr.mxu0 0.0
  %1162 = vmatpush1.msra.mxu0 0.0
  %1163 = vmatprep.subr.mxu0 0.0
  %1164 = vmatpush1.msra.mxu0 0.0
  %1165 = vmatprep.subr.mxu0 0.0
  %1166 = vmatpush1.msra.mxu0 0.0
  %1167 = vmatprep.subr.mxu0 0.0
  %1168 = vmatpush1.msra.mxu0 0.0
  %1169 = vmatprep.subr.mxu0 0.0
  %1170 = vmatpush1.msra.mxu0 0.0
  %1171 = vmatprep.subr.mxu0 0.0
  %1172 = vmatpush1.msra.mxu0 0.0
  %1173 = vmatprep.subr.mxu0 0.0
  %1174 = vmatpush1.msra.mxu0 0.0
  %1175 = vmatprep.subr.mxu0 0.0
  %1176 = vmatpush1.msra.mxu0 0.0
  %1177 = vmatprep.subr.mxu0 0.0
  %1178 = vmatpush1.msra.mxu0 0.0
  %1179 = vmatprep.subr.mxu0 0.0
  %1180 = vmatpush1.msra.mxu0 0.0
  %1181 = vmatprep.subr.mxu0 0.0
  %1182 = vmatpush1.msra.mxu0 0.0
  %1183 = vmatprep.subr.mxu0 0.0
  %1184 = vmatpush1.msra.mxu0 0.0
  %1185 = vmatprep.subr.mxu0 0.0
  %1186 = vmatpush1.msra.mxu0 0.0
  %1187 = vmatprep.subr.mxu0 0.0
  %1188 = vmatpush1.msra.mxu0 0.0
  %1189 = vmatprep.subr.mxu0 0.0
  %1190 = vmatpush1.msra.mxu0 0.0
  %1191 = vmatprep.subr.mxu0 0.0
  %1192 = vmatpush1.msra.mxu0 0.0
  %1193 = vmatprep.subr.mxu0 0.0
  %1194 = vmatpush1.msra.mxu0 0.0
  %1195 = vmatprep.subr.mxu0 0.0
  %1196 = vmatpush1.msra.mxu0 0.0
  %1197 = vmatprep.subr.mxu0 0.0
  %1198 = vmatpush1.msra.mxu0 0.0
  %1199 = vmatprep.subr.mxu0 0.0
  %1200 = vmatpush1.msra.mxu0 0.0
  %1201 = vmatprep.subr.mxu0 0.0
  %1202 = vmatpush1.msra.mxu0 0.0
  %1203 = vmatprep.subr.mxu0 0.0
  %1204 = vmatpush1.msra.mxu0 0.0
  %1205 = vmatprep.subr.mxu0 0.0
  %1206 = vmatpush1.msra.mxu0 0.0
  %1207 = vmatprep.subr.mxu0 0.0
  %1208 = vmatpush1.msra.mxu0 0.0
  %1209 = vmatprep.subr.mxu0 0.0
  %1210 = vmatpush1.msra.mxu0 0.0
  %1211 = vmatprep.subr.mxu0 0.0
  %1212 = vmatpush1.msra.mxu0 0.0
  %1213 = vmatprep.subr.mxu0 0.0
  %1214 = vmatpush1.msra.mxu0 0.0
  %1215 = vmatprep.subr.mxu0 0.0
  %1216 = vmatpush1.msra.mxu0 0.0
  %1217 = vmatprep.subr.mxu0 0.0
  %1218 = vmatpush1.msra.mxu0 0.0
  %1219 = vmatprep.mubr.f32.mxu0 0.0
  %1220 = vmatmul.mubr.f32.gmra.mrb[0].mxu0 %v1153
  %v1221 = vpop.f32.mrb[0].mxu0
  %v1222 = vadd.f32 %v1150, %v1221
  %v1223 = vpop.f32.mrb[0].mxu0
  %1224 = vdwg.mxu0
  %v1225 = vmax.f32 %v1222, 0.0
  %s1226 = scalar_lea.vmem %s10, 8
  %v1227 = vld [vmem:[%s1226] sm:$0xff]
  %s1228 = scalar_lea.vmem %s11, 8
  %v1229 = vld [vmem:[%s1228] sm:$0xff]
  %1231 = vset.pattern.permute.xlu0 0
  %1232 = vperm.xlu0 %1231, %v1229
  %v1233 = vpop.permute.xlu0 %1232
  %v1236 = vsel %vm1028, %v1227, 0
  %v1239 = vsel %vm1032, %v1225, 0
  %1241 = vmatprep.subr.mxu0 0.0
  %1242 = vmatpush1.msra.mxu0 %v1239
  %1243 = vmatprep.subr.mxu0 0.0
  %1244 = vmatpush1.msra.mxu0 0.0
  %1245 = vmatprep.subr.mxu0 0.0
  %1246 = vmatpush1.msra.mxu0 0.0
  %1247 = vmatprep.subr.mxu0 0.0
  %1248 = vmatpush1.msra.mxu0 0.0
  %1249 = vmatprep.subr.mxu0 0.0
  %1250 = vmatpush1.msra.mxu0 0.0
  %1251 = vmatprep.subr.mxu0 0.0
  %1252 = vmatpush1.msra.mxu0 0.0
  %1253 = vmatprep.subr.mxu0 0.0
  %1254 = vmatpush1.msra.mxu0 0.0
  %1255 = vmatprep.subr.mxu0 0.0
  %1256 = vmatpush1.msra.mxu0 0.0
  %1257 = vmatprep.subr.mxu0 0.0
  %1258 = vmatpush1.msra.mxu0 0.0
  %1259 = vmatprep.subr.mxu0 0.0
  %1260 = vmatpush1.msra.mxu0 0.0
  %1261 = vmatprep.subr.mxu0 0.0
  %1262 = vmatpush1.msra.mxu0 0.0
  %1263 = vmatprep.subr.mxu0 0.0
  %1264 = vmatpush1.msra.mxu0 0.0
  %1265 = vmatprep.subr.mxu0 0.0
  %1266 = vmatpush1.msra.mxu0 0.0
  %1267 = vmatprep.subr.mxu0 0.0
  %1268 = vmatpush1.msra.mxu0 0.0
  %1269 = vmatprep.subr.mxu0 0.0
  %1270 = vmatpush1.msra.mxu0 0.0
  %1271 = vmatprep.subr.mxu0 0.0
  %1272 = vmatpush1.msra.mxu0 0.0
  %1273 = vmatprep.subr.mxu0 0.0
  %1274 = vmatpush1.msra.mxu0 0.0
  %1275 = vmatprep.subr.mxu0 0.0
  %1276 = vmatpush1.msra.mxu0 0.0
  %1277 = vmatprep.subr.mxu0 0.0
  %1278 = vmatpush1.msra.mxu0 0.0
  %1279 = vmatprep.subr.mxu0 0.0
  %1280 = vmatpush1.msra.mxu0 0.0
  %1281 = vmatprep.subr.mxu0 0.0
  %1282 = vmatpush1.msra.mxu0 0.0
  %1283 = vmatprep.subr.mxu0 0.0
  %1284 = vmatpush1.msra.mxu0 0.0
  %1285 = vmatprep.subr.mxu0 0.0
  %1286 = vmatpush1.msra.mxu0 0.0
  %1287 = vmatprep.subr.mxu0 0.0
  %1288 = vmatpush1.msra.mxu0 0.0
  %1289 = vmatprep.subr.mxu0 0.0
  %1290 = vmatpush1.msra.mxu0 0.0
  %1291 = vmatprep.subr.mxu0 0.0
  %1292 = vmatpush1.msra.mxu0 0.0
  %1293 = vmatprep.subr.mxu0 0.0
  %1294 = vmatpush1.msra.mxu0 0.0
  %1295 = vmatprep.subr.mxu0 0.0
  %1296 = vmatpush1.msra.mxu0 0.0
  %1297 = vmatprep.subr.mxu0 0.0
  %1298 = vmatpush1.msra.mxu0 0.0
  %1299 = vmatprep.subr.mxu0 0.0
  %1300 = vmatpush1.msra.mxu0 0.0
  %1301 = vmatprep.subr.mxu0 0.0
  %1302 = vmatpush1.msra.mxu0 0.0
  %1303 = vmatprep.subr.mxu0 0.0
  %1304 = vmatpush1.msra.mxu0 0.0
  %1305 = vmatprep.mubr.f32.mxu0 0.0
  %1306 = vmatmul.mubr.f32.gmra.mrb[0].mxu0 %v1236
  %v1307 = vpop.f32.mrb[0].mxu0
  %v1308 = vadd.f32 %v1233, %v1307
  %v1309 = vpop.f32.mrb[0].mxu0
  %1310 = vdwg.mxu0
  %v1311 = vsub.f32 0.0, %v1308
  %v1312 = vmul.f32 %v1311, 1.442695
  %v1313 = vpow.pop %v1312
  %v1314 = vadd.f32 %v1313, 1.0
  %v1315 = vrcp.pop %v1314
  %s1316 = scalar_lea.vmem %s12, 256
  %v1317 = vld [vmem:[%s1316] sm:$0xff]
  %v1318 = vld [vmem:[%s1316 + $0x8] sm:$0xff]
  %v1319 = vld [vmem:[%s1316 + $0x10] sm:$0xff]
  %v1320 = vld [vmem:[%s1316 + $0x18] sm:$0xff]
  %v1321 = vld [vmem:[%s1316 + $0x20] sm:$0xff]
  %v1322 = vld [vmem:[%s1316 + $0x28] sm:$0xff]
  %v1323 = vld [vmem:[%s1316 + $0x30] sm:$0xff]
  %v1324 = vld [vmem:[%s1316 + $0x38] sm:$0xff]
  %v1325 = vld [vmem:[%s1316 + $0x40] sm:$0xff]
  %v1326 = vld [vmem:[%s1316 + $0x48] sm:$0xff]
  %v1327 = vld [vmem:[%s1316 + $0x50] sm:$0xff]
  %v1328 = vld [vmem:[%s1316 + $0x58] sm:$0xff]
  %v1329 = vld [vmem:[%s1316 + $0x60] sm:$0xff]
  %v1330 = vld [vmem:[%s1316 + $0x68] sm:$0xff]
  %v1331 = vld [vmem:[%s1316 + $0x70] sm:$0xff]
  %v1332 = vld [vmem:[%s1316 + $0x78] sm:$0xff]
  %v1333 = vld [vmem:[%s1316 + $0x80] sm:$0xff]
  %v1334 = vld [vmem:[%s1316 + $0x88] sm:$0xff]
  %v1335 = vld [vmem:[%s1316 + $0x90] sm:$0xff]
  %v1336 = vld [vmem:[%s1316 + $0x98] sm:$0xff]
  %v1337 = vld [vmem:[%s1316 + $0xa0] sm:$0xff]
  %v1338 = vld [vmem:[%s1316 + $0xa8] sm:$0xff]
  %v1339 = vld [vmem:[%s1316 + $0xb0] sm:$0xff]
  %v1340 = vld [vmem:[%s1316 + $0xb8] sm:$0xff]
  %v1341 = vld [vmem:[%s1316 + $0xc0] sm:$0xff]
  %v1342 = vld [vmem:[%s1316 + $0xc8] sm:$0xff]
  %v1343 = vld [vmem:[%s1316 + $0xd0] sm:$0xff]
  %v1344 = vld [vmem:[%s1316 + $0xd8] sm:$0xff]
  %v1345 = vld [vmem:[%s1316 + $0xe0] sm:$0xff]
  %v1346 = vld [vmem:[%s1316 + $0xe8] sm:$0xff]
  %v1347 = vld [vmem:[%s1316 + $0xf0] sm:$0xff]
  %v1348 = vld [vmem:[%s1316 + $0xf8] sm:$0xff]
  %1349 = vmatprep.subr.mxu0 %v1318
  %1350 = vmatpush1.msra.mxu0 %v1317
  %1351 = vmatprep.subr.mxu0 %v1320
  %1352 = vmatpush1.msra.mxu0 %v1319
  %1353 = vmatprep.subr.mxu0 %v1322
  %1354 = vmatpush1.msra.mxu0 %v1321
  %1355 = vmatprep.subr.mxu0 %v1324
  %1356 = vmatpush1.msra.mxu0 %v1323
  %1357 = vmatprep.subr.mxu0 %v1326
  %1358 = vmatpush1.msra.mxu0 %v1325
  %1359 = vmatprep.subr.mxu0 %v1328
  %1360 = vmatpush1.msra.mxu0 %v1327
  %1361 = vmatprep.subr.mxu0 %v1330
  %1362 = vmatpush1.msra.mxu0 %v1329
  %1363 = vmatprep.subr.mxu0 %v1332
  %1364 = vmatpush1.msra.mxu0 %v1331
  %1365 = vmatprep.subr.mxu0 %v1334
  %1366 = vmatpush1.msra.mxu0 %v1333
  %1367 = vmatprep.subr.mxu0 %v1336
  %1368 = vmatpush1.msra.mxu0 %v1335
  %1369 = vmatprep.subr.mxu0 %v1338
  %1370 = vmatpush1.msra.mxu0 %v1337
  %1371 = vmatprep.subr.mxu0 %v1340
  %1372 = vmatpush1.msra.mxu0 %v1339
  %1373 = vmatprep.subr.mxu0 %v1342
  %1374 = vmatpush1.msra.mxu0 %v1341
  %1375 = vmatprep.subr.mxu0 %v1344
  %1376 = vmatpush1.msra.mxu0 %v1343
  %1377 = vmatprep.subr.mxu0 %v1346
  %1378 = vmatpush1.msra.mxu0 %v1345
  %1379 = vmatprep.subr.mxu0 %v1348
  %1380 = vmatpush1.msra.mxu0 %v1347
  %1381 = vmatprep.subr.mxu0 0.0
  %1382 = vmatpush1.msra.mxu0 0.0
  %1383 = vmatprep.subr.mxu0 0.0
  %1384 = vmatpush1.msra.mxu0 0.0
  %1385 = vmatprep.subr.mxu0 0.0
  %1386 = vmatpush1.msra.mxu0 0.0
  %1387 = vmatprep.subr.mxu0 0.0
  %1388 = vmatpush1.msra.mxu0 0.0
  %1389 = vmatprep.subr.mxu0 0.0
  %1390 = vmatpush1.msra.mxu0 0.0
  %1391 = vmatprep.subr.mxu0 0.0
  %1392 = vmatpush1.msra.mxu0 0.0
  %1393 = vmatprep.subr.mxu0 0.0
  %1394 = vmatpush1.msra.mxu0 0.0
  %1395 = vmatprep.subr.mxu0 0.0
  %1396 = vmatpush1.msra.mxu0 0.0
  %1397 = vmatprep.subr.mxu0 0.0
  %1398 = vmatpush1.msra.mxu0 0.0
  %1399 = vmatprep.subr.mxu0 0.0
  %1400 = vmatpush1.msra.mxu0 0.0
  %1401 = vmatprep.subr.mxu0 0.0
  %1402 = vmatpush1.msra.mxu0 0.0
  %1403 = vmatprep.subr.mxu0 0.0
  %1404 = vmatpush1.msra.mxu0 0.0
  %1405 = vmatprep.subr.mxu0 0.0
  %1406 = vmatpush1.msra.mxu0 0.0
  %1407 = vmatprep.subr.mxu0 0.0
  %1408 = vmatpush1.msra.mxu0 0.0
  %1409 = vmatprep.subr.mxu0 0.0
  %1410 = vmatpush1.msra.mxu0 0.0
  %1411 = vmatprep.subr.mxu0 0.0
  %1412 = vmatpush1.msra.mxu0 0.0
  %1413 = vmatprep.mubr.f32.mxu0 0.0
  %1414 = vmatmul.mubr.f32.gmra.mrb[0].mxu0 %v1315
  %v1415 = vpop.f32.mrb[0].mxu0
  %v1416 = vadd.f32 0.0, %v1415
  %v1417 = vpop.f32.mrb[0].mxu0
  %v1418 = vadd.f32 0.0, %v1417
  %1419 = vdwg.mxu0
  %1420 = vmatprep.subr.mxu0 %v1112
  %1421 = vmatpush1.msra.mxu0 %v1111
  %1422 = vmatprep.subr.mxu0 %v1114
  %1423 = vmatpush1.msra.mxu0 %v1113
  %1424 = vmatprep.subr.mxu0 %v1116
  %1425 = vmatpush1.msra.mxu0 %v1115
  %1426 = vmatprep.subr.mxu0 %v1118
  %1427 = vmatpush1.msra.mxu0 %v1117
  %1428 = vmatprep.subr.mxu0 %v1120
  %1429 = vmatpush1.msra.mxu0 %v1119
  %1430 = vmatprep.subr.mxu0 %v1122
  %1431 = vmatpush1.msra.mxu0 %v1121
  %1432 = vmatprep.subr.mxu0 %v1124
  %1433 = vmatpush1.msra.mxu0 %v1123
  %1434 = vmatprep.subr.mxu0 %v1126
  %1435 = vmatpush1.msra.mxu0 %v1125
  %1436 = vmatprep.subr.mxu0 %v1128
  %1437 = vmatpush1.msra.mxu0 %v1127
  %1438 = vmatprep.subr.mxu0 %v1130
  %1439 = vmatpush1.msra.mxu0 %v1129
  %1440 = vmatprep.subr.mxu0 %v1132
  %1441 = vmatpush1.msra.mxu0 %v1131
  %1442 = vmatprep.subr.mxu0 %v1134
  %1443 = vmatpush1.msra.mxu0 %v1133
  %1444 = vmatprep.subr.mxu0 %v1136
  %1445 = vmatpush1.msra.mxu0 %v1135
  %1446 = vmatprep.subr.mxu0 %v1138
  %1447 = vmatpush1.msra.mxu0 %v1137
  %1448 = vmatprep.subr.mxu0 %v1140
  %1449 = vmatpush1.msra.mxu0 %v1139
  %1450 = vmatprep.subr.mxu0 %v1142
  %1451 = vmatpush1.msra.mxu0 %v1141
  %1452 = vmatprep.subr.mxu0 0.0
  %1453 = vmatpush1.msra.mxu0 0.0
  %1454 = vmatprep.subr.mxu0 0.0
  %1455 = vmatpush1.msra.mxu0 0.0
  %1456 = vmatprep.subr.mxu0 0.0
  %1457 = vmatpush1.msra.mxu0 0.0
  %1458 = vmatprep.subr.mxu0 0.0
  %1459 = vmatpush1.msra.mxu0 0.0
  %1460 = vmatprep.subr.mxu0 0.0
  %1461 = vmatpush1.msra.mxu0 0.0
  %1462 = vmatprep.subr.mxu0 0.0
  %1463 = vmatpush1.msra.mxu0 0.0
  %1464 = vmatprep.subr.mxu0 0.0
  %1465 = vmatpush1.msra.mxu0 0.0
  %1466 = vmatprep.subr.mxu0 0.0
  %1467 = vmatpush1.msra.mxu0 0.0
  %1468 = vmatprep.subr.mxu0 0.0
  %1469 = vmatpush1.msra.mxu0 0.0
  %1470 = vmatprep.subr.mxu0 0.0
  %1471 = vmatpush1.msra.mxu0 0.0
  %1472 = vmatprep.subr.mxu0 0.0
  %1473 = vmatpush1.msra.mxu0 0.0
  %1474 = vmatprep.subr.mxu0 0.0
  %1475 = vmatpush1.msra.mxu0 0.0
  %1476 = vmatprep.subr.mxu0 0.0
  %1477 = vmatpush1.msra.mxu0 0.0
  %1478 = vmatprep.subr.mxu0 0.0
  %1479 = vmatpush1.msra.mxu0 0.0
  %1480 = vmatprep.subr.mxu0 0.0
  %1481 = vmatpush1.msra.mxu0 0.0
  %1482 = vmatprep.subr.mxu0 0.0
  %1483 = vmatpush1.msra.mxu0 0.0
  %1484 = vmatprep.mubr.f32.mxu0 0.0
  %1485 = vmatmul.mubr.f32.gmra.mrb[0].mxu0 %v1110
  %v1486 = vpop.f32.mrb[0].mxu0
  %v1487 = vadd.f32 %v1416, %v1486
  %v1488 = vpop.f32.mrb[0].mxu0
  %v1489 = vadd.f32 %v1418, %v1488
  %1490 = vdwg.mxu0
  %s1491 = scalar_lea.vmem %s8, 4
  %v1492 = vld [vmem:[%s1491] sm:$0x3]
  %s1493 = scalar_lea.vmem %s9, 4
  %v1494 = vld [vmem:[%s1493] sm:$0x3]
  %1496 = vset.pattern.permute.xlu0 0
  %1497 = vperm.xlu0 %1496, %v1494
  %v1498 = vpop.permute.xlu0 %1497
  %v1501 = vsel %vm668, %v1492, 0
  %1503 = vmatprep.subr.mxu0 0.0
  %1504 = vmatpush1.msra.mxu0 %v937
  %1505 = vmatprep.subr.mxu0 0.0
  %1506 = vmatpush1.msra.mxu0 0.0
  %1507 = vmatprep.subr.mxu0 0.0
  %1508 = vmatpush1.msra.mxu0 0.0
  %1509 = vmatprep.subr.mxu0 0.0
  %1510 = vmatpush1.msra.mxu0 0.0
  %1511 = vmatprep.subr.mxu0 0.0
  %1512 = vmatpush1.msra.mxu0 0.0
  %1513 = vmatprep.subr.mxu0 0.0
  %1514 = vmatpush1.msra.mxu0 0.0
  %1515 = vmatprep.subr.mxu0 0.0
  %1516 = vmatpush1.msra.mxu0 0.0
  %1517 = vmatprep.subr.mxu0 0.0
  %1518 = vmatpush1.msra.mxu0 0.0
  %1519 = vmatprep.subr.mxu0 0.0
  %1520 = vmatpush1.msra.mxu0 0.0
  %1521 = vmatprep.subr.mxu0 0.0
  %1522 = vmatpush1.msra.mxu0 0.0
  %1523 = vmatprep.subr.mxu0 0.0
  %1524 = vmatpush1.msra.mxu0 0.0
  %1525 = vmatprep.subr.mxu0 0.0
  %1526 = vmatpush1.msra.mxu0 0.0
  %1527 = vmatprep.subr.mxu0 0.0
  %1528 = vmatpush1.msra.mxu0 0.0
  %1529 = vmatprep.subr.mxu0 0.0
  %1530 = vmatpush1.msra.mxu0 0.0
  %1531 = vmatprep.subr.mxu0 0.0
  %1532 = vmatpush1.msra.mxu0 0.0
  %1533 = vmatprep.subr.mxu0 0.0
  %1534 = vmatpush1.msra.mxu0 0.0
  %1535 = vmatprep.subr.mxu0 0.0
  %1536 = vmatpush1.msra.mxu0 0.0
  %1537 = vmatprep.subr.mxu0 0.0
  %1538 = vmatpush1.msra.mxu0 0.0
  %1539 = vmatprep.subr.mxu0 0.0
  %1540 = vmatpush1.msra.mxu0 0.0
  %1541 = vmatprep.subr.mxu0 0.0
  %1542 = vmatpush1.msra.mxu0 0.0
  %1543 = vmatprep.subr.mxu0 0.0
  %1544 = vmatpush1.msra.mxu0 0.0
  %1545 = vmatprep.subr.mxu0 0.0
  %1546 = vmatpush1.msra.mxu0 0.0
  %1547 = vmatprep.subr.mxu0 0.0
  %1548 = vmatpush1.msra.mxu0 0.0
  %1549 = vmatprep.subr.mxu0 0.0
  %1550 = vmatpush1.msra.mxu0 0.0
  %1551 = vmatprep.subr.mxu0 0.0
  %1552 = vmatpush1.msra.mxu0 0.0
  %1553 = vmatprep.subr.mxu0 0.0
  %1554 = vmatpush1.msra.mxu0 0.0
  %1555 = vmatprep.subr.mxu0 0.0
  %1556 = vmatpush1.msra.mxu0 0.0
  %1557 = vmatprep.subr.mxu0 0.0
  %1558 = vmatpush1.msra.mxu0 0.0
  %1559 = vmatprep.subr.mxu0 0.0
  %1560 = vmatpush1.msra.mxu0 0.0
  %1561 = vmatprep.subr.mxu0 0.0
  %1562 = vmatpush1.msra.mxu0 0.0
  %1563 = vmatprep.subr.mxu0 0.0
  %1564 = vmatpush1.msra.mxu0 0.0
  %1565 = vmatprep.subr.mxu0 0.0
  %1566 = vmatpush1.msra.mxu0 0.0
  %1567 = vmatprep.mubr.f32.mxu0 0.0
  %1568 = vmatmul.mubr.f32.gmra.mrb[0].mxu0 %v1501
  %v1569 = vpop.f32.mrb[0].mxu0
  %v1570 = vadd.f32 %v1498, %v1569
  %v1571 = vpop.f32.mrb[0].mxu0
  %1572 = vdwg.mxu0
  %v1573 = vmax.f32 %v1570, 0.0
  %s1574 = scalar_lea.vmem %s10, 16
  %v1575 = vld [vmem:[%s1574] sm:$0xff]
  %s1576 = scalar_lea.vmem %s11, 16
  %v1577 = vld [vmem:[%s1576] sm:$0xff]
  %1579 = vset.pattern.permute.xlu0 0
  %1580 = vperm.xlu0 %1579, %v1577
  %v1581 = vpop.permute.xlu0 %1580
  %v1584 = vsel %vm1028, %v1575, 0
  %v1587 = vsel %vm1032, %v1573, 0
  %1589 = vmatprep.subr.mxu0 0.0
  %1590 = vmatpush1.msra.mxu0 %v1587
  %1591 = vmatprep.subr.mxu0 0.0
  %1592 = vmatpush1.msra.mxu0 0.0
  %1593 = vmatprep.subr.mxu0 0.0
  %1594 = vmatpush1.msra.mxu0 0.0
  %1595 = vmatprep.subr.mxu0 0.0
  %1596 = vmatpush1.msra.mxu0 0.0
  %1597 = vmatprep.subr.mxu0 0.0
  %1598 = vmatpush1.msra.mxu0 0.0
  %1599 = vmatprep.subr.mxu0 0.0
  %1600 = vmatpush1.msra.mxu0 0.0
  %1601 = vmatprep.subr.mxu0 0.0
  %1602 = vmatpush1.msra.mxu0 0.0
  %1603 = vmatprep.subr.mxu0 0.0
  %1604 = vmatpush1.msra.mxu0 0.0
  %1605 = vmatprep.subr.mxu0 0.0
  %1606 = vmatpush1.msra.mxu0 0.0
  %1607 = vmatprep.subr.mxu0 0.0
  %1608 = vmatpush1.msra.mxu0 0.0
  %1609 = vmatprep.subr.mxu0 0.0
  %1610 = vmatpush1.msra.mxu0 0.0
  %1611 = vmatprep.subr.mxu0 0.0
  %1612 = vmatpush1.msra.mxu0 0.0
  %1613 = vmatprep.subr.mxu0 0.0
  %1614 = vmatpush1.msra.mxu0 0.0
  %1615 = vmatprep.subr.mxu0 0.0
  %1616 = vmatpush1.msra.mxu0 0.0
  %1617 = vmatprep.subr.mxu0 0.0
  %1618 = vmatpush1.msra.mxu0 0.0
  %1619 = vmatprep.subr.mxu0 0.0
  %1620 = vmatpush1.msra.mxu0 0.0
  %1621 = vmatprep.subr.mxu0 0.0
  %1622 = vmatpush1.msra.mxu0 0.0
  %1623 = vmatprep.subr.mxu0 0.0
  %1624 = vmatpush1.msra.mxu0 0.0
  %1625 = vmatprep.subr.mxu0 0.0
  %1626 = vmatpush1.msra.mxu0 0.0
  %1627 = vmatprep.subr.mxu0 0.0
  %1628 = vmatpush1.msra.mxu0 0.0
  %1629 = vmatprep.subr.mxu0 0.0
  %1630 = vmatpush1.msra.mxu0 0.0
  %1631 = vmatprep.subr.mxu0 0.0
  %1632 = vmatpush1.msra.mxu0 0.0
  %1633 = vmatprep.subr.mxu0 0.0
  %1634 = vmatpush1.msra.mxu0 0.0
  %1635 = vmatprep.subr.mxu0 0.0
  %1636 = vmatpush1.msra.mxu0 0.0
  %1637 = vmatprep.subr.mxu0 0.0
  %1638 = vmatpush1.msra.mxu0 0.0
  %1639 = vmatprep.subr.mxu0 0.0
  %1640 = vmatpush1.msra.mxu0 0.0
  %1641 = vmatprep.subr.mxu0 0.0
  %1642 = vmatpush1.msra.mxu0 0.0
  %1643 = vmatprep.subr.mxu0 0.0
  %1644 = vmatpush1.msra.mxu0 0.0
  %1645 = vmatprep.subr.mxu0 0.0
  %1646 = vmatpush1.msra.mxu0 0.0
  %1647 = vmatprep.subr.mxu0 0.0
  %1648 = vmatpush1.msra.mxu0 0.0
  %1649 = vmatprep.subr.mxu0 0.0
  %1650 = vmatpush1.msra.mxu0 0.0
  %1651 = vmatprep.subr.mxu0 0.0
  %1652 = vmatpush1.msra.mxu0 0.0
  %1653 = vmatprep.mubr.f32.mxu0 0.0
  %1654 = vmatmul.mubr.f32.gmra.mrb[0].mxu0 %v1584
  %v1655 = vpop.f32.mrb[0].mxu0
  %v1656 = vadd.f32 %v1581, %v1655
  %v1657 = vpop.f32.mrb[0].mxu0
  %1658 = vdwg.mxu0
  %v1659 = vsub.f32 0.0, %v1656
  %v1660 = vmul.f32 %v1659, 1.442695
  %v1661 = vpow.pop %v1660
  %v1662 = vadd.f32 %v1661, 1.0
  %v1663 = vrcp.pop %v1662
  %s1664 = scalar_lea.vmem %s12, 512
  %v1665 = vld [vmem:[%s1664] sm:$0xff]
  %v1666 = vld [vmem:[%s1664 + $0x8] sm:$0xff]
  %v1667 = vld [vmem:[%s1664 + $0x10] sm:$0xff]
  %v1668 = vld [vmem:[%s1664 + $0x18] sm:$0xff]
  %v1669 = vld [vmem:[%s1664 + $0x20] sm:$0xff]
  %v1670 = vld [vmem:[%s1664 + $0x28] sm:$0xff]
  %v1671 = vld [vmem:[%s1664 + $0x30] sm:$0xff]
  %v1672 = vld [vmem:[%s1664 + $0x38] sm:$0xff]
  %v1673 = vld [vmem:[%s1664 + $0x40] sm:$0xff]
  %v1674 = vld [vmem:[%s1664 + $0x48] sm:$0xff]
  %v1675 = vld [vmem:[%s1664 + $0x50] sm:$0xff]
  %v1676 = vld [vmem:[%s1664 + $0x58] sm:$0xff]
  %v1677 = vld [vmem:[%s1664 + $0x60] sm:$0xff]
  %v1678 = vld [vmem:[%s1664 + $0x68] sm:$0xff]
  %v1679 = vld [vmem:[%s1664 + $0x70] sm:$0xff]
  %v1680 = vld [vmem:[%s1664 + $0x78] sm:$0xff]
  %v1681 = vld [vmem:[%s1664 + $0x80] sm:$0xff]
  %v1682 = vld [vmem:[%s1664 + $0x88] sm:$0xff]
  %v1683 = vld [vmem:[%s1664 + $0x90] sm:$0xff]
  %v1684 = vld [vmem:[%s1664 + $0x98] sm:$0xff]
  %v1685 = vld [vmem:[%s1664 + $0xa0] sm:$0xff]
  %v1686 = vld [vmem:[%s1664 + $0xa8] sm:$0xff]
  %v1687 = vld [vmem:[%s1664 + $0xb0] sm:$0xff]
  %v1688 = vld [vmem:[%s1664 + $0xb8] sm:$0xff]
  %v1689 = vld [vmem:[%s1664 + $0xc0] sm:$0xff]
  %v1690 = vld [vmem:[%s1664 + $0xc8] sm:$0xff]
  %v1691 = vld [vmem:[%s1664 + $0xd0] sm:$0xff]
  %v1692 = vld [vmem:[%s1664 + $0xd8] sm:$0xff]
  %v1693 = vld [vmem:[%s1664 + $0xe0] sm:$0xff]
  %v1694 = vld [vmem:[%s1664 + $0xe8] sm:$0xff]
  %v1695 = vld [vmem:[%s1664 + $0xf0] sm:$0xff]
  %v1696 = vld [vmem:[%s1664 + $0xf8] sm:$0xff]
  %1697 = vmatprep.subr.mxu0 %v1666
  %1698 = vmatpush1.msra.mxu0 %v1665
  %1699 = vmatprep.subr.mxu0 %v1668
  %1700 = vmatpush1.msra.mxu0 %v1667
  %1701 = vmatprep.subr.mxu0 %v1670
  %1702 = vmatpush1.msra.mxu0 %v1669
  %1703 = vmatprep.subr.mxu0 %v1672
  %1704 = vmatpush1.msra.mxu0 %v1671
  %1705 = vmatprep.subr.mxu0 %v1674
  %1706 = vmatpush1.msra.mxu0 %v1673
  %1707 = vmatprep.subr.mxu0 %v1676
  %1708 = vmatpush1.msra.mxu0 %v1675
  %1709 = vmatprep.subr.mxu0 %v1678
  %1710 = vmatpush1.msra.mxu0 %v1677
  %1711 = vmatprep.subr.mxu0 %v1680
  %1712 = vmatpush1.msra.mxu0 %v1679
  %1713 = vmatprep.subr.mxu0 %v1682
  %1714 = vmatpush1.msra.mxu0 %v1681
  %1715 = vmatprep.subr.mxu0 %v1684
  %1716 = vmatpush1.msra.mxu0 %v1683
  %1717 = vmatprep.subr.mxu0 %v1686
  %1718 = vmatpush1.msra.mxu0 %v1685
  %1719 = vmatprep.subr.mxu0 %v1688
  %1720 = vmatpush1.msra.mxu0 %v1687
  %1721 = vmatprep.subr.mxu0 %v1690
  %1722 = vmatpush1.msra.mxu0 %v1689
  %1723 = vmatprep.subr.mxu0 %v1692
  %1724 = vmatpush1.msra.mxu0 %v1691
  %1725 = vmatprep.subr.mxu0 %v1694
  %1726 = vmatpush1.msra.mxu0 %v1693
  %1727 = vmatprep.subr.mxu0 %v1696
  %1728 = vmatpush1.msra.mxu0 %v1695
  %1729 = vmatprep.subr.mxu0 0.0
  %1730 = vmatpush1.msra.mxu0 0.0
  %1731 = vmatprep.subr.mxu0 0.0
  %1732 = vmatpush1.msra.mxu0 0.0
  %1733 = vmatprep.subr.mxu0 0.0
  %1734 = vmatpush1.msra.mxu0 0.0
  %1735 = vmatprep.subr.mxu0 0.0
  %1736 = vmatpush1.msra.mxu0 0.0
  %1737 = vmatprep.subr.mxu0 0.0
  %1738 = vmatpush1.msra.mxu0 0.0
  %1739 = vmatprep.subr.mxu0 0.0
  %1740 = vmatpush1.msra.mxu0 0.0
  %1741 = vmatprep.subr.mxu0 0.0
  %1742 = vmatpush1.msra.mxu0 0.0
  %1743 = vmatprep.subr.mxu0 0.0
  %1744 = vmatpush1.msra.mxu0 0.0
  %1745 = vmatprep.subr.mxu0 0.0
  %1746 = vmatpush1.msra.mxu0 0.0
  %1747 = vmatprep.subr.mxu0 0.0
  %1748 = vmatpush1.msra.mxu0 0.0
  %1749 = vmatprep.subr.mxu0 0.0
  %1750 = vmatpush1.msra.mxu0 0.0
  %1751 = vmatprep.subr.mxu0 0.0
  %1752 = vmatpush1.msra.mxu0 0.0
  %1753 = vmatprep.subr.mxu0 0.0
  %1754 = vmatpush1.msra.mxu0 0.0
  %1755 = vmatprep.subr.mxu0 0.0
  %1756 = vmatpush1.msra.mxu0 0.0
  %1757 = vmatprep.subr.mxu0 0.0
  %1758 = vmatpush1.msra.mxu0 0.0
  %1759 = vmatprep.subr.mxu0 0.0
  %1760 = vmatpush1.msra.mxu0 0.0
  %1761 = vmatprep.mubr.f32.mxu0 0.0
  %1762 = vmatmul.mubr.f32.gmra.mrb[0].mxu0 %v1663
  %v1763 = vpop.f32.mrb[0].mxu0
  %v1764 = vadd.f32 0.0, %v1763
  %v1765 = vpop.f32.mrb[0].mxu0
  %v1766 = vadd.f32 0.0, %v1765
  %1767 = vdwg.mxu0
  %v1768 = vadd.f32 %v1487, %v1764
  %v1769 = vadd.f32 %v1489, %v1766
  %s1770 = scalar_lea.vmem %s8, 6
  %v1771 = vld [vmem:[%s1770] sm:$0x3]
  %s1772 = scalar_lea.vmem %s9, 6
  %v1773 = vld [vmem:[%s1772] sm:$0x3]
  %1775 = vset.pattern.permute.xlu0 0
  %1776 = vperm.xlu0 %1775, %v1773
  %v1777 = vpop.permute.xlu0 %1776
  %v1780 = vsel %vm668, %v1771, 0
  %1782 = vmatprep.subr.mxu0 0.0
  %1783 = vmatpush1.msra.mxu0 %v937
  %1784 = vmatprep.subr.mxu0 0.0
  %1785 = vmatpush1.msra.mxu0 0.0
  %1786 = vmatprep.subr.mxu0 0.0
  %1787 = vmatpush1.msra.mxu0 0.0
  %1788 = vmatprep.subr.mxu0 0.0
  %1789 = vmatpush1.msra.mxu0 0.0
  %1790 = vmatprep.subr.mxu0 0.0
  %1791 = vmatpush1.msra.mxu0 0.0
  %1792 = vmatprep.subr.mxu0 0.0
  %1793 = vmatpush1.msra.mxu0 0.0
  %1794 = vmatprep.subr.mxu0 0.0
  %1795 = vmatpush1.msra.mxu0 0.0
  %1796 = vmatprep.subr.mxu0 0.0
  %1797 = vmatpush1.msra.mxu0 0.0
  %1798 = vmatprep.subr.mxu0 0.0
  %1799 = vmatpush1.msra.mxu0 0.0
  %1800 = vmatprep.subr.mxu0 0.0
  %1801 = vmatpush1.msra.mxu0 0.0
  %1802 = vmatprep.subr.mxu0 0.0
  %1803 = vmatpush1.msra.mxu0 0.0
  %1804 = vmatprep.subr.mxu0 0.0
  %1805 = vmatpush1.msra.mxu0 0.0
  %1806 = vmatprep.subr.mxu0 0.0
  %1807 = vmatpush1.msra.mxu0 0.0
  %1808 = vmatprep.subr.mxu0 0.0
  %1809 = vmatpush1.msra.mxu0 0.0
  %1810 = vmatprep.subr.mxu0 0.0
  %1811 = vmatpush1.msra.mxu0 0.0
  %1812 = vmatprep.subr.mxu0 0.0
  %1813 = vmatpush1.msra.mxu0 0.0
  %1814 = vmatprep.subr.mxu0 0.0
  %1815 = vmatpush1.msra.mxu0 0.0
  %1816 = vmatprep.subr.mxu0 0.0
  %1817 = vmatpush1.msra.mxu0 0.0
  %1818 = vmatprep.subr.mxu0 0.0
  %1819 = vmatpush1.msra.mxu0 0.0
  %1820 = vmatprep.subr.mxu0 0.0
  %1821 = vmatpush1.msra.mxu0 0.0
  %1822 = vmatprep.subr.mxu0 0.0
  %1823 = vmatpush1.msra.mxu0 0.0
  %1824 = vmatprep.subr.mxu0 0.0
  %1825 = vmatpush1.msra.mxu0 0.0
  %1826 = vmatprep.subr.mxu0 0.0
  %1827 = vmatpush1.msra.mxu0 0.0
  %1828 = vmatprep.subr.mxu0 0.0
  %1829 = vmatpush1.msra.mxu0 0.0
  %1830 = vmatprep.subr.mxu0 0.0
  %1831 = vmatpush1.msra.mxu0 0.0
  %1832 = vmatprep.subr.mxu0 0.0
  %1833 = vmatpush1.msra.mxu0 0.0
  %1834 = vmatprep.subr.mxu0 0.0
  %1835 = vmatpush1.msra.mxu0 0.0
  %1836 = vmatprep.subr.mxu0 0.0
  %1837 = vmatpush1.msra.mxu0 0.0
  %1838 = vmatprep.subr.mxu0 0.0
  %1839 = vmatpush1.msra.mxu0 0.0
  %1840 = vmatprep.subr.mxu0 0.0
  %1841 = vmatpush1.msra.mxu0 0.0
  %1842 = vmatprep.subr.mxu0 0.0
  %1843 = vmatpush1.msra.mxu0 0.0
  %1844 = vmatprep.subr.mxu0 0.0
  %1845 = vmatpush1.msra.mxu0 0.0
  %1846 = vmatprep.mubr.f32.mxu0 0.0
  %1847 = vmatmul.mubr.f32.gmra.mrb[0].mxu0 %v1780
  %v1848 = vpop.f32.mrb[0].mxu0
  %v1849 = vadd.f32 %v1777, %v1848
  %v1850 = vpop.f32.mrb[0].mxu0
  %1851 = vdwg.mxu0
  %v1852 = vmax.f32 %v1849, 0.0
  %s1853 = scalar_lea.vmem %s10, 24
  %v1854 = vld [vmem:[%s1853] sm:$0xff]
  %s1855 = scalar_lea.vmem %s11, 24
  %v1856 = vld [vmem:[%s1855] sm:$0xff]
  %1858 = vset.pattern.permute.xlu0 0
  %1859 = vperm.xlu0 %1858, %v1856
  %v1860 = vpop.permute.xlu0 %1859
  %v1863 = vsel %vm1028, %v1854, 0
  %v1866 = vsel %vm1032, %v1852, 0
  %1868 = vmatprep.subr.mxu0 0.0
  %1869 = vmatpush1.msra.mxu0 %v1866
  %1870 = vmatprep.subr.mxu0 0.0
  %1871 = vmatpush1.msra.mxu0 0.0
  %1872 = vmatprep.subr.mxu0 0.0
  %1873 = vmatpush1.msra.mxu0 0.0
  %1874 = vmatprep.subr.mxu0 0.0
  %1875 = vmatpush1.msra.mxu0 0.0
  %1876 = vmatprep.subr.mxu0 0.0
  %1877 = vmatpush1.msra.mxu0 0.0
  %1878 = vmatprep.subr.mxu0 0.0
  %1879 = vmatpush1.msra.mxu0 0.0
  %1880 = vmatprep.subr.mxu0 0.0
  %1881 = vmatpush1.msra.mxu0 0.0
  %1882 = vmatprep.subr.mxu0 0.0
  %1883 = vmatpush1.msra.mxu0 0.0
  %1884 = vmatprep.subr.mxu0 0.0
  %1885 = vmatpush1.msra.mxu0 0.0
  %1886 = vmatprep.subr.mxu0 0.0
  %1887 = vmatpush1.msra.mxu0 0.0
  %1888 = vmatprep.subr.mxu0 0.0
  %1889 = vmatpush1.msra.mxu0 0.0
  %1890 = vmatprep.subr.mxu0 0.0
  %1891 = vmatpush1.msra.mxu0 0.0
  %1892 = vmatprep.subr.mxu0 0.0
  %1893 = vmatpush1.msra.mxu0 0.0
  %1894 = vmatprep.subr.mxu0 0.0
  %1895 = vmatpush1.msra.mxu0 0.0
  %1896 = vmatprep.subr.mxu0 0.0
  %1897 = vmatpush1.msra.mxu0 0.0
  %1898 = vmatprep.subr.mxu0 0.0
  %1899 = vmatpush1.msra.mxu0 0.0
  %1900 = vmatprep.subr.mxu0 0.0
  %1901 = vmatpush1.msra.mxu0 0.0
  %1902 = vmatprep.subr.mxu0 0.0
  %1903 = vmatpush1.msra.mxu0 0.0
  %1904 = vmatprep.subr.mxu0 0.0
  %1905 = vmatpush1.msra.mxu0 0.0
  %1906 = vmatprep.subr.mxu0 0.0
  %1907 = vmatpush1.msra.mxu0 0.0
  %1908 = vmatprep.subr.mxu0 0.0
  %1909 = vmatpush1.msra.mxu0 0.0
  %1910 = vmatprep.subr.mxu0 0.0
  %1911 = vmatpush1.msra.mxu0 0.0
  %1912 = vmatprep.subr.mxu0 0.0
  %1913 = vmatpush1.msra.mxu0 0.0
  %1914 = vmatprep.subr.mxu0 0.0
  %1915 = vmatpush1.msra.mxu0 0.0
  %1916 = vmatprep.subr.mxu0 0.0
  %1917 = vmatpush1.msra.mxu0 0.0
  %1918 = vmatprep.subr.mxu0 0.0
  %1919 = vmatpush1.msra.mxu0 0.0
  %1920 = vmatprep.subr.mxu0 0.0
  %1921 = vmatpush1.msra.mxu0 0.0
  %1922 = vmatprep.subr.mxu0 0.0
  %1923 = vmatpush1.msra.mxu0 0.0
  %1924 = vmatprep.subr.mxu0 0.0
  %1925 = vmatpush1.msra.mxu0 0.0
  %1926 = vmatprep.subr.mxu0 0.0
  %1927 = vmatpush1.msra.mxu0 0.0
  %1928 = vmatprep.subr.mxu0 0.0
  %1929 = vmatpush1.msra.mxu0 0.0
  %1930 = vmatprep.subr.mxu0 0.0
  %1931 = vmatpush1.msra.mxu0 0.0
  %1932 = vmatprep.mubr.f32.mxu0 0.0
  %1933 = vmatmul.mubr.f32.gmra.mrb[0].mxu0 %v1863
  %v1934 = vpop.f32.mrb[0].mxu0
  %v1935 = vadd.f32 %v1860, %v1934
  %v1936 = vpop.f32.mrb[0].mxu0
  %1937 = vdwg.mxu0
  %v1938 = vsub.f32 0.0, %v1935
  %v1939 = vmul.f32 %v1938, 1.442695
  %v1940 = vpow.pop %v1939
  %v1941 = vadd.f32 %v1940, 1.0
  %v1942 = vrcp.pop %v1941
  %s1943 = scalar_lea.vmem %s12, 768
  %v1944 = vld [vmem:[%s1943] sm:$0xff]
  %v1945 = vld [vmem:[%s1943 + $0x8] sm:$0xff]
  %v1946 = vld [vmem:[%s1943 + $0x10] sm:$0xff]
  %v1947 = vld [vmem:[%s1943 + $0x18] sm:$0xff]
  %v1948 = vld [vmem:[%s1943 + $0x20] sm:$0xff]
  %v1949 = vld [vmem:[%s1943 + $0x28] sm:$0xff]
  %v1950 = vld [vmem:[%s1943 + $0x30] sm:$0xff]
  %v1951 = vld [vmem:[%s1943 + $0x38] sm:$0xff]
  %v1952 = vld [vmem:[%s1943 + $0x40] sm:$0xff]
  %v1953 = vld [vmem:[%s1943 + $0x48] sm:$0xff]
  %v1954 = vld [vmem:[%s1943 + $0x50] sm:$0xff]
  %v1955 = vld [vmem:[%s1943 + $0x58] sm:$0xff]
  %v1956 = vld [vmem:[%s1943 + $0x60] sm:$0xff]
  %v1957 = vld [vmem:[%s1943 + $0x68] sm:$0xff]
  %v1958 = vld [vmem:[%s1943 + $0x70] sm:$0xff]
  %v1959 = vld [vmem:[%s1943 + $0x78] sm:$0xff]
  %v1960 = vld [vmem:[%s1943 + $0x80] sm:$0xff]
  %v1961 = vld [vmem:[%s1943 + $0x88] sm:$0xff]
  %v1962 = vld [vmem:[%s1943 + $0x90] sm:$0xff]
  %v1963 = vld [vmem:[%s1943 + $0x98] sm:$0xff]
  %v1964 = vld [vmem:[%s1943 + $0xa0] sm:$0xff]
  %v1965 = vld [vmem:[%s1943 + $0xa8] sm:$0xff]
  %v1966 = vld [vmem:[%s1943 + $0xb0] sm:$0xff]
  %v1967 = vld [vmem:[%s1943 + $0xb8] sm:$0xff]
  %v1968 = vld [vmem:[%s1943 + $0xc0] sm:$0xff]
  %v1969 = vld [vmem:[%s1943 + $0xc8] sm:$0xff]
  %v1970 = vld [vmem:[%s1943 + $0xd0] sm:$0xff]
  %v1971 = vld [vmem:[%s1943 + $0xd8] sm:$0xff]
  %v1972 = vld [vmem:[%s1943 + $0xe0] sm:$0xff]
  %v1973 = vld [vmem:[%s1943 + $0xe8] sm:$0xff]
  %v1974 = vld [vmem:[%s1943 + $0xf0] sm:$0xff]
  %v1975 = vld [vmem:[%s1943 + $0xf8] sm:$0xff]
  %1976 = vmatprep.subr.mxu0 %v1945
  %1977 = vmatpush1.msra.mxu0 %v1944
  %1978 = vmatprep.subr.mxu0 %v1947
  %1979 = vmatpush1.msra.mxu0 %v1946
  %1980 = vmatprep.subr.mxu0 %v1949
  %1981 = vmatpush1.msra.mxu0 %v1948
  %1982 = vmatprep.subr.mxu0 %v1951
  %1983 = vmatpush1.msra.mxu0 %v1950
  %1984 = vmatprep.subr.mxu0 %v1953
  %1985 = vmatpush1.msra.mxu0 %v1952
  %1986 = vmatprep.subr.mxu0 %v1955
  %1987 = vmatpush1.msra.mxu0 %v1954
  %1988 = vmatprep.subr.mxu0 %v1957
  %1989 = vmatpush1.msra.mxu0 %v1956
  %1990 = vmatprep.subr.mxu0 %v1959
  %1991 = vmatpush1.msra.mxu0 %v1958
  %1992 = vmatprep.subr.mxu0 %v1961
  %1993 = vmatpush1.msra.mxu0 %v1960
  %1994 = vmatprep.subr.mxu0 %v1963
  %1995 = vmatpush1.msra.mxu0 %v1962
  %1996 = vmatprep.subr.mxu0 %v1965
  %1997 = vmatpush1.msra.mxu0 %v1964
  %1998 = vmatprep.subr.mxu0 %v1967
  %1999 = vmatpush1.msra.mxu0 %v1966
  %2000 = vmatprep.subr.mxu0 %v1969
  %2001 = vmatpush1.msra.mxu0 %v1968
  %2002 = vmatprep.subr.mxu0 %v1971
  %2003 = vmatpush1.msra.mxu0 %v1970
  %2004 = vmatprep.subr.mxu0 %v1973
  %2005 = vmatpush1.msra.mxu0 %v1972
  %2006 = vmatprep.subr.mxu0 %v1975
  %2007 = vmatpush1.msra.mxu0 %v1974
  %2008 = vmatprep.subr.mxu0 0.0
  %2009 = vmatpush1.msra.mxu0 0.0
  %2010 = vmatprep.subr.mxu0 0.0
  %2011 = vmatpush1.msra.mxu0 0.0
  %2012 = vmatprep.subr.mxu0 0.0
  %2013 = vmatpush1.msra.mxu0 0.0
  %2014 = vmatprep.subr.mxu0 0.0
  %2015 = vmatpush1.msra.mxu0 0.0
  %2016 = vmatprep.subr.mxu0 0.0
  %2017 = vmatpush1.msra.mxu0 0.0
  %2018 = vmatprep.subr.mxu0 0.0
  %2019 = vmatpush1.msra.mxu0 0.0
  %2020 = vmatprep.subr.mxu0 0.0
  %2021 = vmatpush1.msra.mxu0 0.0
  %2022 = vmatprep.subr.mxu0 0.0
  %2023 = vmatpush1.msra.mxu0 0.0
  %2024 = vmatprep.subr.mxu0 0.0
  %2025 = vmatpush1.msra.mxu0 0.0
  %2026 = vmatprep.subr.mxu0 0.0
  %2027 = vmatpush1.msra.mxu0 0.0
  %2028 = vmatprep.subr.mxu0 0.0
  %2029 = vmatpush1.msra.mxu0 0.0
  %2030 = vmatprep.subr.mxu0 0.0
  %2031 = vmatpush1.msra.mxu0 0.0
  %2032 = vmatprep.subr.mxu0 0.0
  %2033 = vmatpush1.msra.mxu0 0.0
  %2034 = vmatprep.subr.mxu0 0.0
  %2035 = vmatpush1.msra.mxu0 0.0
  %2036 = vmatprep.subr.mxu0 0.0
  %2037 = vmatpush1.msra.mxu0 0.0
  %2038 = vmatprep.subr.mxu0 0.0
  %2039 = vmatpush1.msra.mxu0 0.0
  %2040 = vmatprep.mubr.f32.mxu0 0.0
  %2041 = vmatmul.mubr.f32.gmra.mrb[0].mxu0 %v1942
  %v2042 = vpop.f32.mrb[0].mxu0
  %v2043 = vadd.f32 0.0, %v2042
  %v2044 = vpop.f32.mrb[0].mxu0
  %v2045 = vadd.f32 0.0, %v2044
  %2046 = vdwg.mxu0
  %v2047 = vadd.f32 %v1768, %v2043
  %v2048 = vadd.f32 %v1769, %v2045
  %v2049 = vmul.f32 %v836, %v2047
  %v2050 = vmul.f32 %v837, %v2048
  %v2051 = vld [vmem:[%s13] sm:$0xff]
  %v2052 = vld [vmem:[%s14] sm:$0xff]
  %2054 = vset.pattern.permute.xlu0 0
  %2055 = vperm.xlu0 %2054, %v2052
  %v2056 = vpop.permute.xlu0 %2055
  %v2059 = vsel %vm668, %v2051, 0
  %2061 = vmatprep.subr.mxu0 %v75
  %2062 = vmatpush1.msra.mxu0 %v74
  %2063 = vmatprep.subr.mxu0 0.0
  %2064 = vmatpush1.msra.mxu0 0.0
  %2065 = vmatprep.subr.mxu0 0.0
  %2066 = vmatpush1.msra.mxu0 0.0
  %2067 = vmatprep.subr.mxu0 0.0
  %2068 = vmatpush1.msra.mxu0 0.0
  %2069 = vmatprep.subr.mxu0 0.0
  %2070 = vmatpush1.msra.mxu0 0.0
  %2071 = vmatprep.subr.mxu0 0.0
  %2072 = vmatpush1.msra.mxu0 0.0
  %2073 = vmatprep.subr.mxu0 0.0
  %2074 = vmatpush1.msra.mxu0 0.0
  %2075 = vmatprep.subr.mxu0 0.0
  %2076 = vmatpush1.msra.mxu0 0.0
  %2077 = vmatprep.subr.mxu0 0.0
  %2078 = vmatpush1.msra.mxu0 0.0
  %2079 = vmatprep.subr.mxu0 0.0
  %2080 = vmatpush1.msra.mxu0 0.0
  %2081 = vmatprep.subr.mxu0 0.0
  %2082 = vmatpush1.msra.mxu0 0.0
  %2083 = vmatprep.subr.mxu0 0.0
  %2084 = vmatpush1.msra.mxu0 0.0
  %2085 = vmatprep.subr.mxu0 0.0
  %2086 = vmatpush1.msra.mxu0 0.0
  %2087 = vmatprep.subr.mxu0 0.0
  %2088 = vmatpush1.msra.mxu0 0.0
  %2089 = vmatprep.subr.mxu0 0.0
  %2090 = vmatpush1.msra.mxu0 0.0
  %2091 = vmatprep.subr.mxu0 0.0
  %2092 = vmatpush1.msra.mxu0 0.0
  %2093 = vmatprep.subr.mxu0 0.0
  %2094 = vmatpush1.msra.mxu0 0.0
  %2095 = vmatprep.subr.mxu0 0.0
  %2096 = vmatpush1.msra.mxu0 0.0
  %2097 = vmatprep.subr.mxu0 0.0
  %2098 = vmatpush1.msra.mxu0 0.0
  %2099 = vmatprep.subr.mxu0 0.0
  %2100 = vmatpush1.msra.mxu0 0.0
  %2101 = vmatprep.subr.mxu0 0.0
  %2102 = vmatpush1.msra.mxu0 0.0
  %2103 = vmatprep.subr.mxu0 0.0
  %2104 = vmatpush1.msra.mxu0 0.0
  %2105 = vmatprep.subr.mxu0 0.0
  %2106 = vmatpush1.msra.mxu0 0.0
  %2107 = vmatprep.subr.mxu0 0.0
  %2108 = vmatpush1.msra.mxu0 0.0
  %2109 = vmatprep.subr.mxu0 0.0
  %2110 = vmatpush1.msra.mxu0 0.0
  %2111 = vmatprep.subr.mxu0 0.0
  %2112 = vmatpush1.msra.mxu0 0.0
  %2113 = vmatprep.subr.mxu0 0.0
  %2114 = vmatpush1.msra.mxu0 0.0
  %2115 = vmatprep.subr.mxu0 0.0
  %2116 = vmatpush1.msra.mxu0 0.0
  %2117 = vmatprep.subr.mxu0 0.0
  %2118 = vmatpush1.msra.mxu0 0.0
  %2119 = vmatprep.subr.mxu0 0.0
  %2120 = vmatpush1.msra.mxu0 0.0
  %2121 = vmatprep.subr.mxu0 0.0
  %2122 = vmatpush1.msra.mxu0 0.0
  %2123 = vmatprep.subr.mxu0 0.0
  %2124 = vmatpush1.msra.mxu0 0.0
  %2125 = vmatprep.mubr.f32.mxu0 0.0
  %2126 = vmatmul.mubr.f32.gmra.mrb[0].mxu0 %v2059
  %v2127 = vpop.f32.mrb[0].mxu0
  %v2128 = vadd.f32 %v2056, %v2127
  %v2129 = vpop.f32.mrb[0].mxu0
  %v2130 = vadd.f32 %v2056, %v2129
  %2131 = vdwg.mxu0
  %v2132 = vmax.f32 %v2128, 0.0
  %v2133 = vmax.f32 %v2130, 0.0
  %v2134 = vld [vmem:[%s15] sm:$0xff]
  %v2135 = vld [vmem:[%s16] sm:$0xff]
  %2137 = vset.pattern.permute.xlu0 0
  %2138 = vperm.xlu0 %2137, %v2135
  %v2139 = vpop.permute.xlu0 %2138
  %v2142 = vsel %vm668, %v2134, 0
  %2144 = vmatprep.subr.mxu0 %v2133
  %2145 = vmatpush1.msra.mxu0 %v2132
  %2146 = vmatprep.subr.mxu0 0.0
  %2147 = vmatpush1.msra.mxu0 0.0
  %2148 = vmatprep.subr.mxu0 0.0
  %2149 = vmatpush1.msra.mxu0 0.0
  %2150 = vmatprep.subr.mxu0 0.0
  %2151 = vmatpush1.msra.mxu0 0.0
  %2152 = vmatprep.subr.mxu0 0.0
  %2153 = vmatpush1.msra.mxu0 0.0
  %2154 = vmatprep.subr.mxu0 0.0
  %2155 = vmatpush1.msra.mxu0 0.0
  %2156 = vmatprep.subr.mxu0 0.0
  %2157 = vmatpush1.msra.mxu0 0.0
  %2158 = vmatprep.subr.mxu0 0.0
  %2159 = vmatpush1.msra.mxu0 0.0
  %2160 = vmatprep.subr.mxu0 0.0
  %2161 = vmatpush1.msra.mxu0 0.0
  %2162 = vmatprep.subr.mxu0 0.0
  %2163 = vmatpush1.msra.mxu0 0.0
  %2164 = vmatprep.subr.mxu0 0.0
  %2165 = vmatpush1.msra.mxu0 0.0
  %2166 = vmatprep.subr.mxu0 0.0
  %2167 = vmatpush1.msra.mxu0 0.0
  %2168 = vmatprep.subr.mxu0 0.0
  %2169 = vmatpush1.msra.mxu0 0.0
  %2170 = vmatprep.subr.mxu0 0.0
  %2171 = vmatpush1.msra.mxu0 0.0
  %2172 = vmatprep.subr.mxu0 0.0
  %2173 = vmatpush1.msra.mxu0 0.0
  %2174 = vmatprep.subr.mxu0 0.0
  %2175 = vmatpush1.msra.mxu0 0.0
  %2176 = vmatprep.subr.mxu0 0.0
  %2177 = vmatpush1.msra.mxu0 0.0
  %2178 = vmatprep.subr.mxu0 0.0
  %2179 = vmatpush1.msra.mxu0 0.0
  %2180 = vmatprep.subr.mxu0 0.0
  %2181 = vmatpush1.msra.mxu0 0.0
  %2182 = vmatprep.subr.mxu0 0.0
  %2183 = vmatpush1.msra.mxu0 0.0
  %2184 = vmatprep.subr.mxu0 0.0
  %2185 = vmatpush1.msra.mxu0 0.0
  %2186 = vmatprep.subr.mxu0 0.0
  %2187 = vmatpush1.msra.mxu0 0.0
  %2188 = vmatprep.subr.mxu0 0.0
  %2189 = vmatpush1.msra.mxu0 0.0
  %2190 = vmatprep.subr.mxu0 0.0
  %2191 = vmatpush1.msra.mxu0 0.0
  %2192 = vmatprep.subr.mxu0 0.0
  %2193 = vmatpush1.msra.mxu0 0.0
  %2194 = vmatprep.subr.mxu0 0.0
  %2195 = vmatpush1.msra.mxu0 0.0
  %2196 = vmatprep.subr.mxu0 0.0
  %2197 = vmatpush1.msra.mxu0 0.0
  %2198 = vmatprep.subr.mxu0 0.0
  %2199 = vmatpush1.msra.mxu0 0.0
  %2200 = vmatprep.subr.mxu0 0.0
  %2201 = vmatpush1.msra.mxu0 0.0
  %2202 = vmatprep.subr.mxu0 0.0
  %2203 = vmatpush1.msra.mxu0 0.0
  %2204 = vmatprep.subr.mxu0 0.0
  %2205 = vmatpush1.msra.mxu0 0.0
  %2206 = vmatprep.subr.mxu0 0.0
  %2207 = vmatpush1.msra.mxu0 0.0
  %2208 = vmatprep.mubr.f32.mxu0 0.0
  %2209 = vmatmul.mubr.f32.gmra.mrb[0].mxu0 %v2142
  %v2210 = vpop.f32.mrb[0].mxu0
  %v2211 = vadd.f32 %v2139, %v2210
  %v2212 = vpop.f32.mrb[0].mxu0
  %v2213 = vadd.f32 %v2139, %v2212
  %2214 = vdwg.mxu0
  %v2215 = vsub.f32 0.0, %v2211
  %v2216 = vsub.f32 0.0, %v2213
  %v2217 = vmul.f32 %v2215, 1.442695
  %v2218 = vpow.pop %v2217
  %v2219 = vmul.f32 %v2216, 1.442695
  %v2220 = vpow.pop %v2219
  %v2221 = vadd.f32 %v2218, 1.0
  %v2222 = vadd.f32 %v2220, 1.0
  %v2223 = vrcp.pop %v2221
  %v2224 = vrcp.pop %v2222
  %v2225 = vmul.f32 %v2049, %v2223
  %v2226 = vmul.f32 %v2050, %v2224
  %v2227 = vld [vmem:[%s17] sm:$0xf]
  %v2229 = vsel %vm668, %v2227, 0
  %2231 = vmatprep.subr.mxu0 %v75
  %2232 = vmatpush1.msra.mxu0 %v74
  %2233 = vmatprep.subr.mxu0 0.0
  %2234 = vmatpush1.msra.mxu0 0.0
  %2235 = vmatprep.subr.mxu0 0.0
  %2236 = vmatpush1.msra.mxu0 0.0
  %2237 = vmatprep.subr.mxu0 0.0
  %2238 = vmatpush1.msra.mxu0 0.0
  %2239 = vmatprep.subr.mxu0 0.0
  %2240 = vmatpush1.msra.mxu0 0.0
  %2241 = vmatprep.subr.mxu0 0.0
  %2242 = vmatpush1.msra.mxu0 0.0
  %2243 = vmatprep.subr.mxu0 0.0
  %2244 = vmatpush1.msra.mxu0 0.0
  %2245 = vmatprep.subr.mxu0 0.0
  %2246 = vmatpush1.msra.mxu0 0.0
  %2247 = vmatprep.subr.mxu0 0.0
  %2248 = vmatpush1.msra.mxu0 0.0
  %2249 = vmatprep.subr.mxu0 0.0
  %2250 = vmatpush1.msra.mxu0 0.0
  %2251 = vmatprep.subr.mxu0 0.0
  %2252 = vmatpush1.msra.mxu0 0.0
  %2253 = vmatprep.subr.mxu0 0.0
  %2254 = vmatpush1.msra.mxu0 0.0
  %2255 = vmatprep.subr.mxu0 0.0
  %2256 = vmatpush1.msra.mxu0 0.0
  %2257 = vmatprep.subr.mxu0 0.0
  %2258 = vmatpush1.msra.mxu0 0.0
  %2259 = vmatprep.subr.mxu0 0.0
  %2260 = vmatpush1.msra.mxu0 0.0
  %2261 = vmatprep.subr.mxu0 0.0
  %2262 = vmatpush1.msra.mxu0 0.0
  %2263 = vmatprep.subr.mxu0 0.0
  %2264 = vmatpush1.msra.mxu0 0.0
  %2265 = vmatprep.subr.mxu0 0.0
  %2266 = vmatpush1.msra.mxu0 0.0
  %2267 = vmatprep.subr.mxu0 0.0
  %2268 = vmatpush1.msra.mxu0 0.0
  %2269 = vmatprep.subr.mxu0 0.0
  %2270 = vmatpush1.msra.mxu0 0.0
  %2271 = vmatprep.subr.mxu0 0.0
  %2272 = vmatpush1.msra.mxu0 0.0
  %2273 = vmatprep.subr.mxu0 0.0
  %2274 = vmatpush1.msra.mxu0 0.0
  %2275 = vmatprep.subr.mxu0 0.0
  %2276 = vmatpush1.msra.mxu0 0.0
  %2277 = vmatprep.subr.mxu0 0.0
  %2278 = vmatpush1.msra.mxu0 0.0
  %2279 = vmatprep.subr.mxu0 0.0
  %2280 = vmatpush1.msra.mxu0 0.0
  %2281 = vmatprep.subr.mxu0 0.0
  %2282 = vmatpush1.msra.mxu0 0.0
  %2283 = vmatprep.subr.mxu0 0.0
  %2284 = vmatpush1.msra.mxu0 0.0
  %2285 = vmatprep.subr.mxu0 0.0
  %2286 = vmatpush1.msra.mxu0 0.0
  %2287 = vmatprep.subr.mxu0 0.0
  %2288 = vmatpush1.msra.mxu0 0.0
  %2289 = vmatprep.subr.mxu0 0.0
  %2290 = vmatpush1.msra.mxu0 0.0
  %2291 = vmatprep.subr.mxu0 0.0
  %2292 = vmatpush1.msra.mxu0 0.0
  %2293 = vmatprep.subr.mxu0 0.0
  %2294 = vmatpush1.msra.mxu0 0.0
  %2295 = vmatprep.mubr.f32.mxu0 0.0
  %2296 = vmatmul.mubr.f32.gmra.mrb[0].mxu0 %v2229
  %v2297 = vpop.f32.mrb[0].mxu0
  %v2298 = vadd.f32 0.0, %v2297
  %v2299 = vpop.f32.mrb[0].mxu0
  %v2300 = vadd.f32 0.0, %v2299
  %2301 = vdwg.mxu0
  %2302 = vrot.lane.b32.xlu0 %v2298, 17
  %v2303 = vpop.permute.xlu0 %2302
  %2304 = vrot.lane.b32.xlu0 %v2300, 17
  %v2305 = vpop.permute.xlu0 %2304
  %v2306 = vlaneseq
  %v2307 = vand.u32 %v2306, 127
  %vm2308 = vcmp.lt.s32.totalorder %v2307, 17
  %v2309 = vsel %vm2308, %v2303, %v2305
  %v2310 = vsel %vm2308, %v2305, %v2303
  %v2311 = vld [vmem:[%s2] sm:$0x3]
  %v2313 = vlaneseq
  %v2314 = vshrl.u32 %v2313, 7
  %v2315 = vsub.s32 0, %v2314
  %v2316 = vrot.slane %v2311, %v2315
  %v2317 = vlaneseq
  %v2318 = vshrl.u32 %v2317, 7
  %v2319 = vsub.s32 1, %v2318
  %v2320 = vrot.slane %v2311, %v2319
  %v2323 = vmul.f32 %v2310, %v2316
  %v2324 = vmul.f32 %v2309, %v2320
  %s2325 = scalar_lea.vmem %s17, 4
  %v2326 = vld [vmem:[%s2325] sm:$0xf]
  %v2328 = vsel %vm668, %v2326, 0
  %2330 = vmatprep.subr.mxu0 %v75
  %2331 = vmatpush1.msra.mxu0 %v74
  %2332 = vmatprep.subr.mxu0 0.0
  %2333 = vmatpush1.msra.mxu0 0.0
  %2334 = vmatprep.subr.mxu0 0.0
  %2335 = vmatpush1.msra.mxu0 0.0
  %2336 = vmatprep.subr.mxu0 0.0
  %2337 = vmatpush1.msra.mxu0 0.0
  %2338 = vmatprep.subr.mxu0 0.0
  %2339 = vmatpush1.msra.mxu0 0.0
  %2340 = vmatprep.subr.mxu0 0.0
  %2341 = vmatpush1.msra.mxu0 0.0
  %2342 = vmatprep.subr.mxu0 0.0
  %2343 = vmatpush1.msra.mxu0 0.0
  %2344 = vmatprep.subr.mxu0 0.0
  %2345 = vmatpush1.msra.mxu0 0.0
  %2346 = vmatprep.subr.mxu0 0.0
  %2347 = vmatpush1.msra.mxu0 0.0
  %2348 = vmatprep.subr.mxu0 0.0
  %2349 = vmatpush1.msra.mxu0 0.0
  %2350 = vmatprep.subr.mxu0 0.0
  %2351 = vmatpush1.msra.mxu0 0.0
  %2352 = vmatprep.subr.mxu0 0.0
  %2353 = vmatpush1.msra.mxu0 0.0
  %2354 = vmatprep.subr.mxu0 0.0
  %2355 = vmatpush1.msra.mxu0 0.0
  %2356 = vmatprep.subr.mxu0 0.0
  %2357 = vmatpush1.msra.mxu0 0.0
  %2358 = vmatprep.subr.mxu0 0.0
  %2359 = vmatpush1.msra.mxu0 0.0
  %2360 = vmatprep.subr.mxu0 0.0
  %2361 = vmatpush1.msra.mxu0 0.0
  %2362 = vmatprep.subr.mxu0 0.0
  %2363 = vmatpush1.msra.mxu0 0.0
  %2364 = vmatprep.subr.mxu0 0.0
  %2365 = vmatpush1.msra.mxu0 0.0
  %2366 = vmatprep.subr.mxu0 0.0
  %2367 = vmatpush1.msra.mxu0 0.0
  %2368 = vmatprep.subr.mxu0 0.0
  %2369 = vmatpush1.msra.mxu0 0.0
  %2370 = vmatprep.subr.mxu0 0.0
  %2371 = vmatpush1.msra.mxu0 0.0
  %2372 = vmatprep.subr.mxu0 0.0
  %2373 = vmatpush1.msra.mxu0 0.0
  %2374 = vmatprep.subr.mxu0 0.0
  %2375 = vmatpush1.msra.mxu0 0.0
  %2376 = vmatprep.subr.mxu0 0.0
  %2377 = vmatpush1.msra.mxu0 0.0
  %2378 = vmatprep.subr.mxu0 0.0
  %2379 = vmatpush1.msra.mxu0 0.0
  %2380 = vmatprep.subr.mxu0 0.0
  %2381 = vmatpush1.msra.mxu0 0.0
  %2382 = vmatprep.subr.mxu0 0.0
  %2383 = vmatpush1.msra.mxu0 0.0
  %2384 = vmatprep.subr.mxu0 0.0
  %2385 = vmatpush1.msra.mxu0 0.0
  %2386 = vmatprep.subr.mxu0 0.0
  %2387 = vmatpush1.msra.mxu0 0.0
  %2388 = vmatprep.subr.mxu0 0.0
  %2389 = vmatpush1.msra.mxu0 0.0
  %2390 = vmatprep.subr.mxu0 0.0
  %2391 = vmatpush1.msra.mxu0 0.0
  %2392 = vmatprep.subr.mxu0 0.0
  %2393 = vmatpush1.msra.mxu0 0.0
  %2394 = vmatprep.mubr.f32.mxu0 0.0
  %2395 = vmatmul.mubr.f32.gmra.mrb[0].mxu0 %v2328
  %v2396 = vpop.f32.mrb[0].mxu0
  %v2397 = vadd.f32 0.0, %v2396
  %v2398 = vpop.f32.mrb[0].mxu0
  %v2399 = vadd.f32 0.0, %v2398
  %2400 = vdwg.mxu0
  %2401 = vrot.lane.b32.xlu0 %v2397, 16
  %v2402 = vpop.permute.xlu0 %2401
  %2403 = vrot.lane.b32.xlu0 %v2399, 16
  %v2404 = vpop.permute.xlu0 %2403
  %vm2405 = vcmp.lt.s32.totalorder %v2307, 16
  %v2406 = vsel %vm2405, %v2402, %v2404
  %v2407 = vsel %vm2405, %v2404, %v2402
  %s2408 = scalar_lea.vmem %s2, 2
  %v2409 = vld [vmem:[%s2408] sm:$0x3]
  %v2411 = vlaneseq
  %v2412 = vshrl.u32 %v2411, 7
  %v2413 = vsub.s32 0, %v2412
  %v2414 = vrot.slane %v2409, %v2413
  %v2415 = vlaneseq
  %v2416 = vshrl.u32 %v2415, 7
  %v2417 = vsub.s32 1, %v2416
  %v2418 = vrot.slane %v2409, %v2417
  %v2421 = vmul.f32 %v2407, %v2414
  %v2422 = vmul.f32 %v2406, %v2418
  %v2423 = vadd.f32 %v2323, %v2421
  %v2424 = vadd.f32 %v2324, %v2422
  %s2425 = scalar_lea.vmem %s17, 8
  %v2426 = vld [vmem:[%s2425] sm:$0xf]
  %v2428 = vsel %vm668, %v2426, 0
  %2430 = vmatprep.subr.mxu0 %v75
  %2431 = vmatpush1.msra.mxu0 %v74
  %2432 = vmatprep.subr.mxu0 0.0
  %2433 = vmatpush1.msra.mxu0 0.0
  %2434 = vmatprep.subr.mxu0 0.0
  %2435 = vmatpush1.msra.mxu0 0.0
  %2436 = vmatprep.subr.mxu0 0.0
  %2437 = vmatpush1.msra.mxu0 0.0
  %2438 = vmatprep.subr.mxu0 0.0
  %2439 = vmatpush1.msra.mxu0 0.0
  %2440 = vmatprep.subr.mxu0 0.0
  %2441 = vmatpush1.msra.mxu0 0.0
  %2442 = vmatprep.subr.mxu0 0.0
  %2443 = vmatpush1.msra.mxu0 0.0
  %2444 = vmatprep.subr.mxu0 0.0
  %2445 = vmatpush1.msra.mxu0 0.0
  %2446 = vmatprep.subr.mxu0 0.0
  %2447 = vmatpush1.msra.mxu0 0.0
  %2448 = vmatprep.subr.mxu0 0.0
  %2449 = vmatpush1.msra.mxu0 0.0
  %2450 = vmatprep.subr.mxu0 0.0
  %2451 = vmatpush1.msra.mxu0 0.0
  %2452 = vmatprep.subr.mxu0 0.0
  %2453 = vmatpush1.msra.mxu0 0.0
  %2454 = vmatprep.subr.mxu0 0.0
  %2455 = vmatpush1.msra.mxu0 0.0
  %2456 = vmatprep.subr.mxu0 0.0
  %2457 = vmatpush1.msra.mxu0 0.0
  %2458 = vmatprep.subr.mxu0 0.0
  %2459 = vmatpush1.msra.mxu0 0.0
  %2460 = vmatprep.subr.mxu0 0.0
  %2461 = vmatpush1.msra.mxu0 0.0
  %2462 = vmatprep.subr.mxu0 0.0
  %2463 = vmatpush1.msra.mxu0 0.0
  %2464 = vmatprep.subr.mxu0 0.0
  %2465 = vmatpush1.msra.mxu0 0.0
  %2466 = vmatprep.subr.mxu0 0.0
  %2467 = vmatpush1.msra.mxu0 0.0
  %2468 = vmatprep.subr.mxu0 0.0
  %2469 = vmatpush1.msra.mxu0 0.0
  %2470 = vmatprep.subr.mxu0 0.0
  %2471 = vmatpush1.msra.mxu0 0.0
  %2472 = vmatprep.subr.mxu0 0.0
  %2473 = vmatpush1.msra.mxu0 0.0
  %2474 = vmatprep.subr.mxu0 0.0
  %2475 = vmatpush1.msra.mxu0 0.0
  %2476 = vmatprep.subr.mxu0 0.0
  %2477 = vmatpush1.msra.mxu0 0.0
  %2478 = vmatprep.subr.mxu0 0.0
  %2479 = vmatpush1.msra.mxu0 0.0
  %2480 = vmatprep.subr.mxu0 0.0
  %2481 = vmatpush1.msra.mxu0 0.0
  %2482 = vmatprep.subr.mxu0 0.0
  %2483 = vmatpush1.msra.mxu0 0.0
  %2484 = vmatprep.subr.mxu0 0.0
  %2485 = vmatpush1.msra.mxu0 0.0
  %2486 = vmatprep.subr.mxu0 0.0
  %2487 = vmatpush1.msra.mxu0 0.0
  %2488 = vmatprep.subr.mxu0 0.0
  %2489 = vmatpush1.msra.mxu0 0.0
  %2490 = vmatprep.subr.mxu0 0.0
  %2491 = vmatpush1.msra.mxu0 0.0
  %2492 = vmatprep.subr.mxu0 0.0
  %2493 = vmatpush1.msra.mxu0 0.0
  %2494 = vmatprep.mubr.f32.mxu0 0.0
  %2495 = vmatmul.mubr.f32.gmra.mrb[0].mxu0 %v2428
  %v2496 = vpop.f32.mrb[0].mxu0
  %v2497 = vadd.f32 0.0, %v2496
  %v2498 = vpop.f32.mrb[0].mxu0
  %v2499 = vadd.f32 0.0, %v2498
  %2500 = vdwg.mxu0
  %2501 = vrot.lane.b32.xlu0 %v2497, 15
  %v2502 = vpop.permute.xlu0 %2501
  %2503 = vrot.lane.b32.xlu0 %v2499, 15
  %v2504 = vpop.permute.xlu0 %2503
  %vm2505 = vcmp.lt.s32.totalorder %v2307, 15
  %v2506 = vsel %vm2505, %v2502, %v2504
  %v2507 = vsel %vm2505, %v2504, %v2502
  %s2508 = scalar_lea.vmem %s2, 4
  %v2509 = vld [vmem:[%s2508] sm:$0x3]
  %v2511 = vlaneseq
  %v2512 = vshrl.u32 %v2511, 7
  %v2513 = vsub.s32 0, %v2512
  %v2514 = vrot.slane %v2509, %v2513
  %v2515 = vlaneseq
  %v2516 = vshrl.u32 %v2515, 7
  %v2517 = vsub.s32 1, %v2516
  %v2518 = vrot.slane %v2509, %v2517
  %v2521 = vmul.f32 %v2507, %v2514
  %v2522 = vmul.f32 %v2506, %v2518
  %v2523 = vadd.f32 %v2423, %v2521
  %v2524 = vadd.f32 %v2424, %v2522
  %s2525 = scalar_lea.vmem %s17, 12
  %v2526 = vld [vmem:[%s2525] sm:$0xf]
  %v2528 = vsel %vm668, %v2526, 0
  %2530 = vmatprep.subr.mxu0 %v75
  %2531 = vmatpush1.msra.mxu0 %v74
  %2532 = vmatprep.subr.mxu0 0.0
  %2533 = vmatpush1.msra.mxu0 0.0
  %2534 = vmatprep.subr.mxu0 0.0
  %2535 = vmatpush1.msra.mxu0 0.0
  %2536 = vmatprep.subr.mxu0 0.0
  %2537 = vmatpush1.msra.mxu0 0.0
  %2538 = vmatprep.subr.mxu0 0.0
  %2539 = vmatpush1.msra.mxu0 0.0
  %2540 = vmatprep.subr.mxu0 0.0
  %2541 = vmatpush1.msra.mxu0 0.0
  %2542 = vmatprep.subr.mxu0 0.0
  %2543 = vmatpush1.msra.mxu0 0.0
  %2544 = vmatprep.subr.mxu0 0.0
  %2545 = vmatpush1.msra.mxu0 0.0
  %2546 = vmatprep.subr.mxu0 0.0
  %2547 = vmatpush1.msra.mxu0 0.0
  %2548 = vmatprep.subr.mxu0 0.0
  %2549 = vmatpush1.msra.mxu0 0.0
  %2550 = vmatprep.subr.mxu0 0.0
  %2551 = vmatpush1.msra.mxu0 0.0
  %2552 = vmatprep.subr.mxu0 0.0
  %2553 = vmatpush1.msra.mxu0 0.0
  %2554 = vmatprep.subr.mxu0 0.0
  %2555 = vmatpush1.msra.mxu0 0.0
  %2556 = vmatprep.subr.mxu0 0.0
  %2557 = vmatpush1.msra.mxu0 0.0
  %2558 = vmatprep.subr.mxu0 0.0
  %2559 = vmatpush1.msra.mxu0 0.0
  %2560 = vmatprep.subr.mxu0 0.0
  %2561 = vmatpush1.msra.mxu0 0.0
  %2562 = vmatprep.subr.mxu0 0.0
  %2563 = vmatpush1.msra.mxu0 0.0
  %2564 = vmatprep.subr.mxu0 0.0
  %2565 = vmatpush1.msra.mxu0 0.0
  %2566 = vmatprep.subr.mxu0 0.0
  %2567 = vmatpush1.msra.mxu0 0.0
  %2568 = vmatprep.subr.mxu0 0.0
  %2569 = vmatpush1.msra.mxu0 0.0
  %2570 = vmatprep.subr.mxu0 0.0
  %2571 = vmatpush1.msra.mxu0 0.0
  %2572 = vmatprep.subr.mxu0 0.0
  %2573 = vmatpush1.msra.mxu0 0.0
  %2574 = vmatprep.subr.mxu0 0.0
  %2575 = vmatpush1.msra.mxu0 0.0
  %2576 = vmatprep.subr.mxu0 0.0
  %2577 = vmatpush1.msra.mxu0 0.0
  %2578 = vmatprep.subr.mxu0 0.0
  %2579 = vmatpush1.msra.mxu0 0.0
  %2580 = vmatprep.subr.mxu0 0.0
  %2581 = vmatpush1.msra.mxu0 0.0
  %2582 = vmatprep.subr.mxu0 0.0
  %2583 = vmatpush1.msra.mxu0 0.0
  %2584 = vmatprep.subr.mxu0 0.0
  %2585 = vmatpush1.msra.mxu0 0.0
  %2586 = vmatprep.subr.mxu0 0.0
  %2587 = vmatpush1.msra.mxu0 0.0
  %2588 = vmatprep.subr.mxu0 0.0
  %2589 = vmatpush1.msra.mxu0 0.0
  %2590 = vmatprep.subr.mxu0 0.0
  %2591 = vmatpush1.msra.mxu0 0.0
  %2592 = vmatprep.subr.mxu0 0.0
  %2593 = vmatpush1.msra.mxu0 0.0
  %2594 = vmatprep.mubr.f32.mxu0 0.0
  %2595 = vmatmul.mubr.f32.gmra.mrb[0].mxu0 %v2528
  %v2596 = vpop.f32.mrb[0].mxu0
  %v2597 = vadd.f32 0.0, %v2596
  %v2598 = vpop.f32.mrb[0].mxu0
  %v2599 = vadd.f32 0.0, %v2598
  %2600 = vdwg.mxu0
  %2601 = vrot.lane.b32.xlu0 %v2597, 1
  %v2602 = vpop.permute.xlu0 %2601
  %2603 = vrot.lane.b32.xlu0 %v2599, 1
  %v2604 = vpop.permute.xlu0 %2603
  %vm2605 = vcmp.lt.s32.totalorder %v2307, 1
  %v2606 = vsel %vm2605, %v2602, %v2604
  %v2607 = vsel %vm2605, %v2604, %v2602
  %s2608 = scalar_lea.vmem %s2, 6
  %v2609 = vld [vmem:[%s2608] sm:$0x3]
  %v2611 = vlaneseq
  %v2612 = vshrl.u32 %v2611, 7
  %v2613 = vsub.s32 0, %v2612
  %v2614 = vrot.slane %v2609, %v2613
  %v2615 = vlaneseq
  %v2616 = vshrl.u32 %v2615, 7
  %v2617 = vsub.s32 1, %v2616
  %v2618 = vrot.slane %v2609, %v2617
  %v2621 = vmul.f32 %v2607, %v2614
  %v2622 = vmul.f32 %v2606, %v2618
  %v2623 = vadd.f32 %v2523, %v2621
  %v2624 = vadd.f32 %v2524, %v2622
  %s2625 = scalar_lea.vmem %s17, 16
  %v2626 = vld [vmem:[%s2625] sm:$0xf]
  %v2628 = vsel %vm668, %v2626, 0
  %2630 = vmatprep.subr.mxu0 %v75
  %2631 = vmatpush1.msra.mxu0 %v74
  %2632 = vmatprep.subr.mxu0 0.0
  %2633 = vmatpush1.msra.mxu0 0.0
  %2634 = vmatprep.subr.mxu0 0.0
  %2635 = vmatpush1.msra.mxu0 0.0
  %2636 = vmatprep.subr.mxu0 0.0
  %2637 = vmatpush1.msra.mxu0 0.0
  %2638 = vmatprep.subr.mxu0 0.0
  %2639 = vmatpush1.msra.mxu0 0.0
  %2640 = vmatprep.subr.mxu0 0.0
  %2641 = vmatpush1.msra.mxu0 0.0
  %2642 = vmatprep.subr.mxu0 0.0
  %2643 = vmatpush1.msra.mxu0 0.0
  %2644 = vmatprep.subr.mxu0 0.0
  %2645 = vmatpush1.msra.mxu0 0.0
  %2646 = vmatprep.subr.mxu0 0.0
  %2647 = vmatpush1.msra.mxu0 0.0
  %2648 = vmatprep.subr.mxu0 0.0
  %2649 = vmatpush1.msra.mxu0 0.0
  %2650 = vmatprep.subr.mxu0 0.0
  %2651 = vmatpush1.msra.mxu0 0.0
  %2652 = vmatprep.subr.mxu0 0.0
  %2653 = vmatpush1.msra.mxu0 0.0
  %2654 = vmatprep.subr.mxu0 0.0
  %2655 = vmatpush1.msra.mxu0 0.0
  %2656 = vmatprep.subr.mxu0 0.0
  %2657 = vmatpush1.msra.mxu0 0.0
  %2658 = vmatprep.subr.mxu0 0.0
  %2659 = vmatpush1.msra.mxu0 0.0
  %2660 = vmatprep.subr.mxu0 0.0
  %2661 = vmatpush1.msra.mxu0 0.0
  %2662 = vmatprep.subr.mxu0 0.0
  %2663 = vmatpush1.msra.mxu0 0.0
  %2664 = vmatprep.subr.mxu0 0.0
  %2665 = vmatpush1.msra.mxu0 0.0
  %2666 = vmatprep.subr.mxu0 0.0
  %2667 = vmatpush1.msra.mxu0 0.0
  %2668 = vmatprep.subr.mxu0 0.0
  %2669 = vmatpush1.msra.mxu0 0.0
  %2670 = vmatprep.subr.mxu0 0.0
  %2671 = vmatpush1.msra.mxu0 0.0
  %2672 = vmatprep.subr.mxu0 0.0
  %2673 = vmatpush1.msra.mxu0 0.0
  %2674 = vmatprep.subr.mxu0 0.0
  %2675 = vmatpush1.msra.mxu0 0.0
  %2676 = vmatprep.subr.mxu0 0.0
  %2677 = vmatpush1.msra.mxu0 0.0
  %2678 = vmatprep.subr.mxu0 0.0
  %2679 = vmatpush1.msra.mxu0 0.0
  %2680 = vmatprep.subr.mxu0 0.0
  %2681 = vmatpush1.msra.mxu0 0.0
  %2682 = vmatprep.subr.mxu0 0.0
  %2683 = vmatpush1.msra.mxu0 0.0
  %2684 = vmatprep.subr.mxu0 0.0
  %2685 = vmatpush1.msra.mxu0 0.0
  %2686 = vmatprep.subr.mxu0 0.0
  %2687 = vmatpush1.msra.mxu0 0.0
  %2688 = vmatprep.subr.mxu0 0.0
  %2689 = vmatpush1.msra.mxu0 0.0
  %2690 = vmatprep.subr.mxu0 0.0
  %2691 = vmatpush1.msra.mxu0 0.0
  %2692 = vmatprep.subr.mxu0 0.0
  %2693 = vmatpush1.msra.mxu0 0.0
  %2694 = vmatprep.mubr.f32.mxu0 0.0
  %2695 = vmatmul.mubr.f32.gmra.mrb[0].mxu0 %v2628
  %v2696 = vpop.f32.mrb[0].mxu0
  %v2697 = vadd.f32 0.0, %v2696
  %v2698 = vpop.f32.mrb[0].mxu0
  %v2699 = vadd.f32 0.0, %v2698
  %2700 = vdwg.mxu0
  %v2701 = vadd.f32 %v2623, %v2697
  %v2702 = vadd.f32 %v2624, %v2699
  %s2703 = scalar_lea.vmem %s17, 20
  %v2704 = vld [vmem:[%s2703] sm:$0xf]
  %v2706 = vsel %vm668, %v2704, 0
  %2708 = vmatprep.subr.mxu0 %v75
  %2709 = vmatpush1.msra.mxu0 %v74
  %2710 = vmatprep.subr.mxu0 0.0
  %2711 = vmatpush1.msra.mxu0 0.0
  %2712 = vmatprep.subr.mxu0 0.0
  %2713 = vmatpush1.msra.mxu0 0.0
  %2714 = vmatprep.subr.mxu0 0.0
  %2715 = vmatpush1.msra.mxu0 0.0
  %2716 = vmatprep.subr.mxu0 0.0
  %2717 = vmatpush1.msra.mxu0 0.0
  %2718 = vmatprep.subr.mxu0 0.0
  %2719 = vmatpush1.msra.mxu0 0.0
  %2720 = vmatprep.subr.mxu0 0.0
  %2721 = vmatpush1.msra.mxu0 0.0
  %2722 = vmatprep.subr.mxu0 0.0
  %2723 = vmatpush1.msra.mxu0 0.0
  %2724 = vmatprep.subr.mxu0 0.0
  %2725 = vmatpush1.msra.mxu0 0.0
  %2726 = vmatprep.subr.mxu0 0.0
  %2727 = vmatpush1.msra.mxu0 0.0
  %2728 = vmatprep.subr.mxu0 0.0
  %2729 = vmatpush1.msra.mxu0 0.0
  %2730 = vmatprep.subr.mxu0 0.0
  %2731 = vmatpush1.msra.mxu0 0.0
  %2732 = vmatprep.subr.mxu0 0.0
  %2733 = vmatpush1.msra.mxu0 0.0
  %2734 = vmatprep.subr.mxu0 0.0
  %2735 = vmatpush1.msra.mxu0 0.0
  %2736 = vmatprep.subr.mxu0 0.0
  %2737 = vmatpush1.msra.mxu0 0.0
  %2738 = vmatprep.subr.mxu0 0.0
  %2739 = vmatpush1.msra.mxu0 0.0
  %2740 = vmatprep.subr.mxu0 0.0
  %2741 = vmatpush1.msra.mxu0 0.0
  %2742 = vmatprep.subr.mxu0 0.0
  %2743 = vmatpush1.msra.mxu0 0.0
  %2744 = vmatprep.subr.mxu0 0.0
  %2745 = vmatpush1.msra.mxu0 0.0
  %2746 = vmatprep.subr.mxu0 0.0
  %2747 = vmatpush1.msra.mxu0 0.0
  %2748 = vmatprep.subr.mxu0 0.0
  %2749 = vmatpush1.msra.mxu0 0.0
  %2750 = vmatprep.subr.mxu0 0.0
  %2751 = vmatpush1.msra.mxu0 0.0
  %2752 = vmatprep.subr.mxu0 0.0
  %2753 = vmatpush1.msra.mxu0 0.0
  %2754 = vmatprep.subr.mxu0 0.0
  %2755 = vmatpush1.msra.mxu0 0.0
  %2756 = vmatprep.subr.mxu0 0.0
  %2757 = vmatpush1.msra.mxu0 0.0
  %2758 = vmatprep.subr.mxu0 0.0
  %2759 = vmatpush1.msra.mxu0 0.0
  %2760 = vmatprep.subr.mxu0 0.0
  %2761 = vmatpush1.msra.mxu0 0.0
  %2762 = vmatprep.subr.mxu0 0.0
  %2763 = vmatpush1.msra.mxu0 0.0
  %2764 = vmatprep.subr.mxu0 0.0
  %2765 = vmatpush1.msra.mxu0 0.0
  %2766 = vmatprep.subr.mxu0 0.0
  %2767 = vmatpush1.msra.mxu0 0.0
  %2768 = vmatprep.subr.mxu0 0.0
  %2769 = vmatpush1.msra.mxu0 0.0
  %2770 = vmatprep.subr.mxu0 0.0
  %2771 = vmatpush1.msra.mxu0 0.0
  %2772 = vmatprep.mubr.f32.mxu0 0.0
  %2773 = vmatmul.mubr.f32.gmra.mrb[0].mxu0 %v2706
  %v2774 = vpop.f32.mrb[0].mxu0
  %v2775 = vadd.f32 0.0, %v2774
  %v2776 = vpop.f32.mrb[0].mxu0
  %v2777 = vadd.f32 0.0, %v2776
  %2778 = vdwg.mxu0
  %2779 = vrot.lane.b32.xlu0 %v2775, 127
  %v2780 = vpop.permute.xlu0 %2779
  %2781 = vrot.lane.b32.xlu0 %v2777, 127
  %v2782 = vpop.permute.xlu0 %2781
  %vm2783 = vcmp.lt.s32.totalorder %v2307, 127
  %v2784 = vsel %vm2783, %v2780, %v2782
  %v2785 = vsel %vm2783, %v2782, %v2780
  %s2786 = scalar_lea.vmem %s2, 10
  %v2787 = vld [vmem:[%s2786] sm:$0x3]
  %v2789 = vlaneseq
  %v2790 = vshrl.u32 %v2789, 7
  %v2791 = vsub.s32 0, %v2790
  %v2792 = vrot.slane %v2787, %v2791
  %v2793 = vlaneseq
  %v2794 = vshrl.u32 %v2793, 7
  %v2795 = vsub.s32 1, %v2794
  %v2796 = vrot.slane %v2787, %v2795
  %v2799 = vmul.f32 %v2784, %v2792
  %v2800 = vmul.f32 %v2785, %v2796
  %v2801 = vadd.f32 %v2701, %v2799
  %v2802 = vadd.f32 %v2702, %v2800
  %s2803 = scalar_lea.vmem %s17, 24
  %v2804 = vld [vmem:[%s2803] sm:$0xf]
  %v2806 = vsel %vm668, %v2804, 0
  %2808 = vmatprep.subr.mxu0 %v75
  %2809 = vmatpush1.msra.mxu0 %v74
  %2810 = vmatprep.subr.mxu0 0.0
  %2811 = vmatpush1.msra.mxu0 0.0
  %2812 = vmatprep.subr.mxu0 0.0
  %2813 = vmatpush1.msra.mxu0 0.0
  %2814 = vmatprep.subr.mxu0 0.0
  %2815 = vmatpush1.msra.mxu0 0.0
  %2816 = vmatprep.subr.mxu0 0.0
  %2817 = vmatpush1.msra.mxu0 0.0
  %2818 = vmatprep.subr.mxu0 0.0
  %2819 = vmatpush1.msra.mxu0 0.0
  %2820 = vmatprep.subr.mxu0 0.0
  %2821 = vmatpush1.msra.mxu0 0.0
  %2822 = vmatprep.subr.mxu0 0.0
  %2823 = vmatpush1.msra.mxu0 0.0
  %2824 = vmatprep.subr.mxu0 0.0
  %2825 = vmatpush1.msra.mxu0 0.0
  %2826 = vmatprep.subr.mxu0 0.0
  %2827 = vmatpush1.msra.mxu0 0.0
  %2828 = vmatprep.subr.mxu0 0.0
  %2829 = vmatpush1.msra.mxu0 0.0
  %2830 = vmatprep.subr.mxu0 0.0
  %2831 = vmatpush1.msra.mxu0 0.0
  %2832 = vmatprep.subr.mxu0 0.0
  %2833 = vmatpush1.msra.mxu0 0.0
  %2834 = vmatprep.subr.mxu0 0.0
  %2835 = vmatpush1.msra.mxu0 0.0
  %2836 = vmatprep.subr.mxu0 0.0
  %2837 = vmatpush1.msra.mxu0 0.0
  %2838 = vmatprep.subr.mxu0 0.0
  %2839 = vmatpush1.msra.mxu0 0.0
  %2840 = vmatprep.subr.mxu0 0.0
  %2841 = vmatpush1.msra.mxu0 0.0
  %2842 = vmatprep.subr.mxu0 0.0
  %2843 = vmatpush1.msra.mxu0 0.0
  %2844 = vmatprep.subr.mxu0 0.0
  %2845 = vmatpush1.msra.mxu0 0.0
  %2846 = vmatprep.subr.mxu0 0.0
  %2847 = vmatpush1.msra.mxu0 0.0
  %2848 = vmatprep.subr.mxu0 0.0
  %2849 = vmatpush1.msra.mxu0 0.0
  %2850 = vmatprep.subr.mxu0 0.0
  %2851 = vmatpush1.msra.mxu0 0.0
  %2852 = vmatprep.subr.mxu0 0.0
  %2853 = vmatpush1.msra.mxu0 0.0
  %2854 = vmatprep.subr.mxu0 0.0
  %2855 = vmatpush1.msra.mxu0 0.0
  %2856 = vmatprep.subr.mxu0 0.0
  %2857 = vmatpush1.msra.mxu0 0.0
  %2858 = vmatprep.subr.mxu0 0.0
  %2859 = vmatpush1.msra.mxu0 0.0
  %2860 = vmatprep.subr.mxu0 0.0
  %2861 = vmatpush1.msra.mxu0 0.0
  %2862 = vmatprep.subr.mxu0 0.0
  %2863 = vmatpush1.msra.mxu0 0.0
  %2864 = vmatprep.subr.mxu0 0.0
  %2865 = vmatpush1.msra.mxu0 0.0
  %2866 = vmatprep.subr.mxu0 0.0
  %2867 = vmatpush1.msra.mxu0 0.0
  %2868 = vmatprep.subr.mxu0 0.0
  %2869 = vmatpush1.msra.mxu0 0.0
  %2870 = vmatprep.subr.mxu0 0.0
  %2871 = vmatpush1.msra.mxu0 0.0
  %2872 = vmatprep.mubr.f32.mxu0 0.0
  %2873 = vmatmul.mubr.f32.gmra.mrb[0].mxu0 %v2806
  %v2874 = vpop.f32.mrb[0].mxu0
  %v2875 = vadd.f32 0.0, %v2874
  %v2876 = vpop.f32.mrb[0].mxu0
  %v2877 = vadd.f32 0.0, %v2876
  %2878 = vdwg.mxu0
  %2879 = vrot.lane.b32.xlu0 %v2875, 113
  %v2880 = vpop.permute.xlu0 %2879
  %2881 = vrot.lane.b32.xlu0 %v2877, 113
  %v2882 = vpop.permute.xlu0 %2881
  %vm2883 = vcmp.lt.s32.totalorder %v2307, 113
  %v2884 = vsel %vm2883, %v2880, %v2882
  %v2885 = vsel %vm2883, %v2882, %v2880
  %s2886 = scalar_lea.vmem %s2, 12
  %v2887 = vld [vmem:[%s2886] sm:$0x3]
  %v2889 = vlaneseq
  %v2890 = vshrl.u32 %v2889, 7
  %v2891 = vsub.s32 0, %v2890
  %v2892 = vrot.slane %v2887, %v2891
  %v2893 = vlaneseq
  %v2894 = vshrl.u32 %v2893, 7
  %v2895 = vsub.s32 1, %v2894
  %v2896 = vrot.slane %v2887, %v2895
  %v2899 = vmul.f32 %v2884, %v2892
  %v2900 = vmul.f32 %v2885, %v2896
  %v2901 = vadd.f32 %v2801, %v2899
  %v2902 = vadd.f32 %v2802, %v2900
  %s2903 = scalar_lea.vmem %s17, 28
  %v2904 = vld [vmem:[%s2903] sm:$0xf]
  %v2906 = vsel %vm668, %v2904, 0
  %2908 = vmatprep.subr.mxu0 %v75
  %2909 = vmatpush1.msra.mxu0 %v74
  %2910 = vmatprep.subr.mxu0 0.0
  %2911 = vmatpush1.msra.mxu0 0.0
  %2912 = vmatprep.subr.mxu0 0.0
  %2913 = vmatpush1.msra.mxu0 0.0
  %2914 = vmatprep.subr.mxu0 0.0
  %2915 = vmatpush1.msra.mxu0 0.0
  %2916 = vmatprep.subr.mxu0 0.0
  %2917 = vmatpush1.msra.mxu0 0.0
  %2918 = vmatprep.subr.mxu0 0.0
  %2919 = vmatpush1.msra.mxu0 0.0
  %2920 = vmatprep.subr.mxu0 0.0
  %2921 = vmatpush1.msra.mxu0 0.0
  %2922 = vmatprep.subr.mxu0 0.0
  %2923 = vmatpush1.msra.mxu0 0.0
  %2924 = vmatprep.subr.mxu0 0.0
  %2925 = vmatpush1.msra.mxu0 0.0
  %2926 = vmatprep.subr.mxu0 0.0
  %2927 = vmatpush1.msra.mxu0 0.0
  %2928 = vmatprep.subr.mxu0 0.0
  %2929 = vmatpush1.msra.mxu0 0.0
  %2930 = vmatprep.subr.mxu0 0.0
  %2931 = vmatpush1.msra.mxu0 0.0
  %2932 = vmatprep.subr.mxu0 0.0
  %2933 = vmatpush1.msra.mxu0 0.0
  %2934 = vmatprep.subr.mxu0 0.0
  %2935 = vmatpush1.msra.mxu0 0.0
  %2936 = vmatprep.subr.mxu0 0.0
  %2937 = vmatpush1.msra.mxu0 0.0
  %2938 = vmatprep.subr.mxu0 0.0
  %2939 = vmatpush1.msra.mxu0 0.0
  %2940 = vmatprep.subr.mxu0 0.0
  %2941 = vmatpush1.msra.mxu0 0.0
  %2942 = vmatprep.subr.mxu0 0.0
  %2943 = vmatpush1.msra.mxu0 0.0
  %2944 = vmatprep.subr.mxu0 0.0
  %2945 = vmatpush1.msra.mxu0 0.0
  %2946 = vmatprep.subr.mxu0 0.0
  %2947 = vmatpush1.msra.mxu0 0.0
  %2948 = vmatprep.subr.mxu0 0.0
  %2949 = vmatpush1.msra.mxu0 0.0
  %2950 = vmatprep.subr.mxu0 0.0
  %2951 = vmatpush1.msra.mxu0 0.0
  %2952 = vmatprep.subr.mxu0 0.0
  %2953 = vmatpush1.msra.mxu0 0.0
  %2954 = vmatprep.subr.mxu0 0.0
  %2955 = vmatpush1.msra.mxu0 0.0
  %2956 = vmatprep.subr.mxu0 0.0
  %2957 = vmatpush1.msra.mxu0 0.0
  %2958 = vmatprep.subr.mxu0 0.0
  %2959 = vmatpush1.msra.mxu0 0.0
  %2960 = vmatprep.subr.mxu0 0.0
  %2961 = vmatpush1.msra.mxu0 0.0
  %2962 = vmatprep.subr.mxu0 0.0
  %2963 = vmatpush1.msra.mxu0 0.0
  %2964 = vmatprep.subr.mxu0 0.0
  %2965 = vmatpush1.msra.mxu0 0.0
  %2966 = vmatprep.subr.mxu0 0.0
  %2967 = vmatpush1.msra.mxu0 0.0
  %2968 = vmatprep.subr.mxu0 0.0
  %2969 = vmatpush1.msra.mxu0 0.0
  %2970 = vmatprep.subr.mxu0 0.0
  %2971 = vmatpush1.msra.mxu0 0.0
  %2972 = vmatprep.mubr.f32.mxu0 0.0
  %2973 = vmatmul.mubr.f32.gmra.mrb[0].mxu0 %v2906
  %v2974 = vpop.f32.mrb[0].mxu0
  %v2975 = vadd.f32 0.0, %v2974
  %v2976 = vpop.f32.mrb[0].mxu0
  %v2977 = vadd.f32 0.0, %v2976
  %2978 = vdwg.mxu0
  %2979 = vrot.lane.b32.xlu0 %v2975, 112
  %v2980 = vpop.permute.xlu0 %2979
  %2981 = vrot.lane.b32.xlu0 %v2977, 112
  %v2982 = vpop.permute.xlu0 %2981
  %vm2983 = vcmp.lt.s32.totalorder %v2307, 112
  %v2984 = vsel %vm2983, %v2980, %v2982
  %v2985 = vsel %vm2983, %v2982, %v2980
  %s2986 = scalar_lea.vmem %s2, 14
  %v2987 = vld [vmem:[%s2986] sm:$0x3]
  %v2989 = vlaneseq
  %v2990 = vshrl.u32 %v2989, 7
  %v2991 = vsub.s32 0, %v2990
  %v2992 = vrot.slane %v2987, %v2991
  %v2993 = vlaneseq
  %v2994 = vshrl.u32 %v2993, 7
  %v2995 = vsub.s32 1, %v2994
  %v2996 = vrot.slane %v2987, %v2995
  %v2999 = vmul.f32 %v2984, %v2992
  %v3000 = vmul.f32 %v2985, %v2996
  %v3001 = vadd.f32 %v2901, %v2999
  %v3002 = vadd.f32 %v2902, %v3000
  %s3003 = scalar_lea.vmem %s17, 32
  %v3004 = vld [vmem:[%s3003] sm:$0xf]
  %v3006 = vsel %vm668, %v3004, 0
  %3008 = vmatprep.subr.mxu0 %v75
  %3009 = vmatpush1.msra.mxu0 %v74
  %3010 = vmatprep.subr.mxu0 0.0
  %3011 = vmatpush1.msra.mxu0 0.0
  %3012 = vmatprep.subr.mxu0 0.0
  %3013 = vmatpush1.msra.mxu0 0.0
  %3014 = vmatprep.subr.mxu0 0.0
  %3015 = vmatpush1.msra.mxu0 0.0
  %3016 = vmatprep.subr.mxu0 0.0
  %3017 = vmatpush1.msra.mxu0 0.0
  %3018 = vmatprep.subr.mxu0 0.0
  %3019 = vmatpush1.msra.mxu0 0.0
  %3020 = vmatprep.subr.mxu0 0.0
  %3021 = vmatpush1.msra.mxu0 0.0
  %3022 = vmatprep.subr.mxu0 0.0
  %3023 = vmatpush1.msra.mxu0 0.0
  %3024 = vmatprep.subr.mxu0 0.0
  %3025 = vmatpush1.msra.mxu0 0.0
  %3026 = vmatprep.subr.mxu0 0.0
  %3027 = vmatpush1.msra.mxu0 0.0
  %3028 = vmatprep.subr.mxu0 0.0
  %3029 = vmatpush1.msra.mxu0 0.0
  %3030 = vmatprep.subr.mxu0 0.0
  %3031 = vmatpush1.msra.mxu0 0.0
  %3032 = vmatprep.subr.mxu0 0.0
  %3033 = vmatpush1.msra.mxu0 0.0
  %3034 = vmatprep.subr.mxu0 0.0
  %3035 = vmatpush1.msra.mxu0 0.0
  %3036 = vmatprep.subr.mxu0 0.0
  %3037 = vmatpush1.msra.mxu0 0.0
  %3038 = vmatprep.subr.mxu0 0.0
  %3039 = vmatpush1.msra.mxu0 0.0
  %3040 = vmatprep.subr.mxu0 0.0
  %3041 = vmatpush1.msra.mxu0 0.0
  %3042 = vmatprep.subr.mxu0 0.0
  %3043 = vmatpush1.msra.mxu0 0.0
  %3044 = vmatprep.subr.mxu0 0.0
  %3045 = vmatpush1.msra.mxu0 0.0
  %3046 = vmatprep.subr.mxu0 0.0
  %3047 = vmatpush1.msra.mxu0 0.0
  %3048 = vmatprep.subr.mxu0 0.0
  %3049 = vmatpush1.msra.mxu0 0.0
  %3050 = vmatprep.subr.mxu0 0.0
  %3051 = vmatpush1.msra.mxu0 0.0
  %3052 = vmatprep.subr.mxu0 0.0
  %3053 = vmatpush1.msra.mxu0 0.0
  %3054 = vmatprep.subr.mxu0 0.0
  %3055 = vmatpush1.msra.mxu0 0.0
  %3056 = vmatprep.subr.mxu0 0.0
  %3057 = vmatpush1.msra.mxu0 0.0
  %3058 = vmatprep.subr.mxu0 0.0
  %3059 = vmatpush1.msra.mxu0 0.0
  %3060 = vmatprep.subr.mxu0 0.0
  %3061 = vmatpush1.msra.mxu0 0.0
  %3062 = vmatprep.subr.mxu0 0.0
  %3063 = vmatpush1.msra.mxu0 0.0
  %3064 = vmatprep.subr.mxu0 0.0
  %3065 = vmatpush1.msra.mxu0 0.0
  %3066 = vmatprep.subr.mxu0 0.0
  %3067 = vmatpush1.msra.mxu0 0.0
  %3068 = vmatprep.subr.mxu0 0.0
  %3069 = vmatpush1.msra.mxu0 0.0
  %3070 = vmatprep.subr.mxu0 0.0
  %3071 = vmatpush1.msra.mxu0 0.0
  %3072 = vmatprep.mubr.f32.mxu0 0.0
  %3073 = vmatmul.mubr.f32.gmra.mrb[0].mxu0 %v3006
  %v3074 = vpop.f32.mrb[0].mxu0
  %v3075 = vadd.f32 0.0, %v3074
  %v3076 = vpop.f32.mrb[0].mxu0
  %v3077 = vadd.f32 0.0, %v3076
  %3078 = vdwg.mxu0
  %3079 = vrot.lane.b32.xlu0 %v3075, 111
  %v3080 = vpop.permute.xlu0 %3079
  %3081 = vrot.lane.b32.xlu0 %v3077, 111
  %v3082 = vpop.permute.xlu0 %3081
  %vm3083 = vcmp.lt.s32.totalorder %v2307, 111
  %v3084 = vsel %vm3083, %v3080, %v3082
  %v3085 = vsel %vm3083, %v3082, %v3080
  %s3086 = scalar_lea.vmem %s2, 16
  %v3087 = vld [vmem:[%s3086] sm:$0x3]
  %v3089 = vlaneseq
  %v3090 = vshrl.u32 %v3089, 7
  %v3091 = vsub.s32 0, %v3090
  %v3092 = vrot.slane %v3087, %v3091
  %v3093 = vlaneseq
  %v3094 = vshrl.u32 %v3093, 7
  %v3095 = vsub.s32 1, %v3094
  %v3096 = vrot.slane %v3087, %v3095
  %v3099 = vmul.f32 %v3084, %v3092
  %v3100 = vmul.f32 %v3085, %v3096
  %v3101 = vadd.f32 %v3001, %v3099
  %v3102 = vadd.f32 %v3002, %v3100
  %v3103 = vld [vmem:[%s18] sm:$0xf]
  %3105 = vset.pattern.permute.xlu0 0
  %3106 = vperm.xlu0 %3105, %v3103
  %v3107 = vpop.permute.xlu0 %3106
  %v3109 = vadd.f32 %v3101, %v3107
  %v3110 = vadd.f32 %v3102, %v3107
  %v3111 = vmax.f32 %v3109, 0.0
  %v3112 = vmax.f32 %v3110, 0.0
  %v3113 = vld [vmem:[%s19] sm:$0xff]
  %vm3114 = vcmask 31744
  %v3116 = vsel %vm3114, %v3113, 0
  %vm3118 = vcmask 1043456
  %v3120 = vsel %vm3118, %v3111, 0
  %v3123 = vsel %vm3118, %v3112, 0
  %3125 = vmatprep.subr.mxu0 %v3123
  %3126 = vmatpush1.msra.mxu0 %v3120
  %3127 = vmatprep.subr.mxu0 0.0
  %3128 = vmatpush1.msra.mxu0 0.0
  %3129 = vmatprep.subr.mxu0 0.0
  %3130 = vmatpush1.msra.mxu0 0.0
  %3131 = vmatprep.subr.mxu0 0.0
  %3132 = vmatpush1.msra.mxu0 0.0
  %3133 = vmatprep.subr.mxu0 0.0
  %3134 = vmatpush1.msra.mxu0 0.0
  %3135 = vmatprep.subr.mxu0 0.0
  %3136 = vmatpush1.msra.mxu0 0.0
  %3137 = vmatprep.subr.mxu0 0.0
  %3138 = vmatpush1.msra.mxu0 0.0
  %3139 = vmatprep.subr.mxu0 0.0
  %3140 = vmatpush1.msra.mxu0 0.0
  %3141 = vmatprep.subr.mxu0 0.0
  %3142 = vmatpush1.msra.mxu0 0.0
  %3143 = vmatprep.subr.mxu0 0.0
  %3144 = vmatpush1.msra.mxu0 0.0
  %3145 = vmatprep.subr.mxu0 0.0
  %3146 = vmatpush1.msra.mxu0 0.0
  %3147 = vmatprep.subr.mxu0 0.0
  %3148 = vmatpush1.msra.mxu0 0.0
  %3149 = vmatprep.subr.mxu0 0.0
  %3150 = vmatpush1.msra.mxu0 0.0
  %3151 = vmatprep.subr.mxu0 0.0
  %3152 = vmatpush1.msra.mxu0 0.0
  %3153 = vmatprep.subr.mxu0 0.0
  %3154 = vmatpush1.msra.mxu0 0.0
  %3155 = vmatprep.subr.mxu0 0.0
  %3156 = vmatpush1.msra.mxu0 0.0
  %3157 = vmatprep.subr.mxu0 0.0
  %3158 = vmatpush1.msra.mxu0 0.0
  %3159 = vmatprep.subr.mxu0 0.0
  %3160 = vmatpush1.msra.mxu0 0.0
  %3161 = vmatprep.subr.mxu0 0.0
  %3162 = vmatpush1.msra.mxu0 0.0
  %3163 = vmatprep.subr.mxu0 0.0
  %3164 = vmatpush1.msra.mxu0 0.0
  %3165 = vmatprep.subr.mxu0 0.0
  %3166 = vmatpush1.msra.mxu0 0.0
  %3167 = vmatprep.subr.mxu0 0.0
  %3168 = vmatpush1.msra.mxu0 0.0
  %3169 = vmatprep.subr.mxu0 0.0
  %3170 = vmatpush1.msra.mxu0 0.0
  %3171 = vmatprep.subr.mxu0 0.0
  %3172 = vmatpush1.msra.mxu0 0.0
  %3173 = vmatprep.subr.mxu0 0.0
  %3174 = vmatpush1.msra.mxu0 0.0
  %3175 = vmatprep.subr.mxu0 0.0
  %3176 = vmatpush1.msra.mxu0 0.0
  %3177 = vmatprep.subr.mxu0 0.0
  %3178 = vmatpush1.msra.mxu0 0.0
  %3179 = vmatprep.subr.mxu0 0.0
  %3180 = vmatpush1.msra.mxu0 0.0
  %3181 = vmatprep.subr.mxu0 0.0
  %3182 = vmatpush1.msra.mxu0 0.0
  %3183 = vmatprep.subr.mxu0 0.0
  %3184 = vmatpush1.msra.mxu0 0.0
  %3185 = vmatprep.subr.mxu0 0.0
  %3186 = vmatpush1.msra.mxu0 0.0
  %3187 = vmatprep.subr.mxu0 0.0
  %3188 = vmatpush1.msra.mxu0 0.0
  %3189 = vmatprep.mubr.f32.mxu0 0.0
  %3190 = vmatmul.mubr.f32.gmra.mrb[0].mxu0 %v3116
  %v3191 = vpop.f32.mrb[0].mxu0
  %v3192 = vadd.f32 0.0, %v3191
  %v3193 = vpop.f32.mrb[0].mxu0
  %v3194 = vadd.f32 0.0, %v3193
  %3195 = vdwg.mxu0
  %3196 = vrot.lane.b32.xlu0 %v3192, 17
  %v3197 = vpop.permute.xlu0 %3196
  %3198 = vrot.lane.b32.xlu0 %v3194, 17
  %v3199 = vpop.permute.xlu0 %3198
  %v3200 = vsel %vm2308, %v3197, %v3199
  %v3201 = vsel %vm2308, %v3199, %v3197
  %v3202 = vmul.f32 %v3201, %v2316
  %v3203 = vmul.f32 %v3200, %v2320
  %s3204 = scalar_lea.vmem %s19, 8
  %v3205 = vld [vmem:[%s3204] sm:$0xff]
  %v3207 = vsel %vm3114, %v3205, 0
  %3209 = vmatprep.subr.mxu0 %v3123
  %3210 = vmatpush1.msra.mxu0 %v3120
  %3211 = vmatprep.subr.mxu0 0.0
  %3212 = vmatpush1.msra.mxu0 0.0
  %3213 = vmatprep.subr.mxu0 0.0
  %3214 = vmatpush1.msra.mxu0 0.0
  %3215 = vmatprep.subr.mxu0 0.0
  %3216 = vmatpush1.msra.mxu0 0.0
  %3217 = vmatprep.subr.mxu0 0.0
  %3218 = vmatpush1.msra.mxu0 0.0
  %3219 = vmatprep.subr.mxu0 0.0
  %3220 = vmatpush1.msra.mxu0 0.0
  %3221 = vmatprep.subr.mxu0 0.0
  %3222 = vmatpush1.msra.mxu0 0.0
  %3223 = vmatprep.subr.mxu0 0.0
  %3224 = vmatpush1.msra.mxu0 0.0
  %3225 = vmatprep.subr.mxu0 0.0
  %3226 = vmatpush1.msra.mxu0 0.0
  %3227 = vmatprep.subr.mxu0 0.0
  %3228 = vmatpush1.msra.mxu0 0.0
  %3229 = vmatprep.subr.mxu0 0.0
  %3230 = vmatpush1.msra.mxu0 0.0
  %3231 = vmatprep.subr.mxu0 0.0
  %3232 = vmatpush1.msra.mxu0 0.0
  %3233 = vmatprep.subr.mxu0 0.0
  %3234 = vmatpush1.msra.mxu0 0.0
  %3235 = vmatprep.subr.mxu0 0.0
  %3236 = vmatpush1.msra.mxu0 0.0
  %3237 = vmatprep.subr.mxu0 0.0
  %3238 = vmatpush1.msra.mxu0 0.0
  %3239 = vmatprep.subr.mxu0 0.0
  %3240 = vmatpush1.msra.mxu0 0.0
  %3241 = vmatprep.subr.mxu0 0.0
  %3242 = vmatpush1.msra.mxu0 0.0
  %3243 = vmatprep.subr.mxu0 0.0
  %3244 = vmatpush1.msra.mxu0 0.0
  %3245 = vmatprep.subr.mxu0 0.0
  %3246 = vmatpush1.msra.mxu0 0.0
  %3247 = vmatprep.subr.mxu0 0.0
  %3248 = vmatpush1.msra.mxu0 0.0
  %3249 = vmatprep.subr.mxu0 0.0
  %3250 = vmatpush1.msra.mxu0 0.0
  %3251 = vmatprep.subr.mxu0 0.0
  %3252 = vmatpush1.msra.mxu0 0.0
  %3253 = vmatprep.subr.mxu0 0.0
  %3254 = vmatpush1.msra.mxu0 0.0
  %3255 = vmatprep.subr.mxu0 0.0
  %3256 = vmatpush1.msra.mxu0 0.0
  %3257 = vmatprep.subr.mxu0 0.0
  %3258 = vmatpush1.msra.mxu0 0.0
  %3259 = vmatprep.subr.mxu0 0.0
  %3260 = vmatpush1.msra.mxu0 0.0
  %3261 = vmatprep.subr.mxu0 0.0
  %3262 = vmatpush1.msra.mxu0 0.0
  %3263 = vmatprep.subr.mxu0 0.0
  %3264 = vmatpush1.msra.mxu0 0.0
  %3265 = vmatprep.subr.mxu0 0.0
  %3266 = vmatpush1.msra.mxu0 0.0
  %3267 = vmatprep.subr.mxu0 0.0
  %3268 = vmatpush1.msra.mxu0 0.0
  %3269 = vmatprep.subr.mxu0 0.0
  %3270 = vmatpush1.msra.mxu0 0.0
  %3271 = vmatprep.subr.mxu0 0.0
  %3272 = vmatpush1.msra.mxu0 0.0
  %3273 = vmatprep.mubr.f32.mxu0 0.0
  %3274 = vmatmul.mubr.f32.gmra.mrb[0].mxu0 %v3207
  %v3275 = vpop.f32.mrb[0].mxu0
  %v3276 = vadd.f32 0.0, %v3275
  %v3277 = vpop.f32.mrb[0].mxu0
  %v3278 = vadd.f32 0.0, %v3277
  %3279 = vdwg.mxu0
  %3280 = vrot.lane.b32.xlu0 %v3276, 16
  %v3281 = vpop.permute.xlu0 %3280
  %3282 = vrot.lane.b32.xlu0 %v3278, 16
  %v3283 = vpop.permute.xlu0 %3282
  %v3284 = vsel %vm2405, %v3281, %v3283
  %v3285 = vsel %vm2405, %v3283, %v3281
  %v3286 = vmul.f32 %v3285, %v2414
  %v3287 = vmul.f32 %v3284, %v2418
  %v3288 = vadd.f32 %v3202, %v3286
  %v3289 = vadd.f32 %v3203, %v3287
  %s3290 = scalar_lea.vmem %s19, 16
  %v3291 = vld [vmem:[%s3290] sm:$0xff]
  %v3293 = vsel %vm3114, %v3291, 0
  %3295 = vmatprep.subr.mxu0 %v3123
  %3296 = vmatpush1.msra.mxu0 %v3120
  %3297 = vmatprep.subr.mxu0 0.0
  %3298 = vmatpush1.msra.mxu0 0.0
  %3299 = vmatprep.subr.mxu0 0.0
  %3300 = vmatpush1.msra.mxu0 0.0
  %3301 = vmatprep.subr.mxu0 0.0
  %3302 = vmatpush1.msra.mxu0 0.0
  %3303 = vmatprep.subr.mxu0 0.0
  %3304 = vmatpush1.msra.mxu0 0.0
  %3305 = vmatprep.subr.mxu0 0.0
  %3306 = vmatpush1.msra.mxu0 0.0
  %3307 = vmatprep.subr.mxu0 0.0
  %3308 = vmatpush1.msra.mxu0 0.0
  %3309 = vmatprep.subr.mxu0 0.0
  %3310 = vmatpush1.msra.mxu0 0.0
  %3311 = vmatprep.subr.mxu0 0.0
  %3312 = vmatpush1.msra.mxu0 0.0
  %3313 = vmatprep.subr.mxu0 0.0
  %3314 = vmatpush1.msra.mxu0 0.0
  %3315 = vmatprep.subr.mxu0 0.0
  %3316 = vmatpush1.msra.mxu0 0.0
  %3317 = vmatprep.subr.mxu0 0.0
  %3318 = vmatpush1.msra.mxu0 0.0
  %3319 = vmatprep.subr.mxu0 0.0
  %3320 = vmatpush1.msra.mxu0 0.0
  %3321 = vmatprep.subr.mxu0 0.0
  %3322 = vmatpush1.msra.mxu0 0.0
  %3323 = vmatprep.subr.mxu0 0.0
  %3324 = vmatpush1.msra.mxu0 0.0
  %3325 = vmatprep.subr.mxu0 0.0
  %3326 = vmatpush1.msra.mxu0 0.0
  %3327 = vmatprep.subr.mxu0 0.0
  %3328 = vmatpush1.msra.mxu0 0.0
  %3329 = vmatprep.subr.mxu0 0.0
  %3330 = vmatpush1.msra.mxu0 0.0
  %3331 = vmatprep.subr.mxu0 0.0
  %3332 = vmatpush1.msra.mxu0 0.0
  %3333 = vmatprep.subr.mxu0 0.0
  %3334 = vmatpush1.msra.mxu0 0.0
  %3335 = vmatprep.subr.mxu0 0.0
  %3336 = vmatpush1.msra.mxu0 0.0
  %3337 = vmatprep.subr.mxu0 0.0
  %3338 = vmatpush1.msra.mxu0 0.0
  %3339 = vmatprep.subr.mxu0 0.0
  %3340 = vmatpush1.msra.mxu0 0.0
  %3341 = vmatprep.subr.mxu0 0.0
  %3342 = vmatpush1.msra.mxu0 0.0
  %3343 = vmatprep.subr.mxu0 0.0
  %3344 = vmatpush1.msra.mxu0 0.0
  %3345 = vmatprep.subr.mxu0 0.0
  %3346 = vmatpush1.msra.mxu0 0.0
  %3347 = vmatprep.subr.mxu0 0.0
  %3348 = vmatpush1.msra.mxu0 0.0
  %3349 = vmatprep.subr.mxu0 0.0
  %3350 = vmatpush1.msra.mxu0 0.0
  %3351 = vmatprep.subr.mxu0 0.0
  %3352 = vmatpush1.msra.mxu0 0.0
  %3353 = vmatprep.subr.mxu0 0.0
  %3354 = vmatpush1.msra.mxu0 0.0
  %3355 = vmatprep.subr.mxu0 0.0
  %3356 = vmatpush1.msra.mxu0 0.0
  %3357 = vmatprep.subr.mxu0 0.0
  %3358 = vmatpush1.msra.mxu0 0.0
  %3359 = vmatprep.mubr.f32.mxu0 0.0
  %3360 = vmatmul.mubr.f32.gmra.mrb[0].mxu0 %v3293
  %v3361 = vpop.f32.mrb[0].mxu0
  %v3362 = vadd.f32 0.0, %v3361
  %v3363 = vpop.f32.mrb[0].mxu0
  %v3364 = vadd.f32 0.0, %v3363
  %3365 = vdwg.mxu0
  %3366 = vrot.lane.b32.xlu0 %v3362, 15
  %v3367 = vpop.permute.xlu0 %3366
  %3368 = vrot.lane.b32.xlu0 %v3364, 15
  %v3369 = vpop.permute.xlu0 %3368
  %v3370 = vsel %vm2505, %v3367, %v3369
  %v3371 = vsel %vm2505, %v3369, %v3367
  %v3372 = vmul.f32 %v3371, %v2514
  %v3373 = vmul.f32 %v3370, %v2518
  %v3374 = vadd.f32 %v3288, %v3372
  %v3375 = vadd.f32 %v3289, %v3373
  %s3376 = scalar_lea.vmem %s19, 24
  %v3377 = vld [vmem:[%s3376] sm:$0xff]
  %v3379 = vsel %vm3114, %v3377, 0
  %3381 = vmatprep.subr.mxu0 %v3123
  %3382 = vmatpush1.msra.mxu0 %v3120
  %3383 = vmatprep.subr.mxu0 0.0
  %3384 = vmatpush1.msra.mxu0 0.0
  %3385 = vmatprep.subr.mxu0 0.0
  %3386 = vmatpush1.msra.mxu0 0.0
  %3387 = vmatprep.subr.mxu0 0.0
  %3388 = vmatpush1.msra.mxu0 0.0
  %3389 = vmatprep.subr.mxu0 0.0
  %3390 = vmatpush1.msra.mxu0 0.0
  %3391 = vmatprep.subr.mxu0 0.0
  %3392 = vmatpush1.msra.mxu0 0.0
  %3393 = vmatprep.subr.mxu0 0.0
  %3394 = vmatpush1.msra.mxu0 0.0
  %3395 = vmatprep.subr.mxu0 0.0
  %3396 = vmatpush1.msra.mxu0 0.0
  %3397 = vmatprep.subr.mxu0 0.0
  %3398 = vmatpush1.msra.mxu0 0.0
  %3399 = vmatprep.subr.mxu0 0.0
  %3400 = vmatpush1.msra.mxu0 0.0
  %3401 = vmatprep.subr.mxu0 0.0
  %3402 = vmatpush1.msra.mxu0 0.0
  %3403 = vmatprep.subr.mxu0 0.0
  %3404 = vmatpush1.msra.mxu0 0.0
  %3405 = vmatprep.subr.mxu0 0.0
  %3406 = vmatpush1.msra.mxu0 0.0
  %3407 = vmatprep.subr.mxu0 0.0
  %3408 = vmatpush1.msra.mxu0 0.0
  %3409 = vmatprep.subr.mxu0 0.0
  %3410 = vmatpush1.msra.mxu0 0.0
  %3411 = vmatprep.subr.mxu0 0.0
  %3412 = vmatpush1.msra.mxu0 0.0
  %3413 = vmatprep.subr.mxu0 0.0
  %3414 = vmatpush1.msra.mxu0 0.0
  %3415 = vmatprep.subr.mxu0 0.0
  %3416 = vmatpush1.msra.mxu0 0.0
  %3417 = vmatprep.subr.mxu0 0.0
  %3418 = vmatpush1.msra.mxu0 0.0
  %3419 = vmatprep.subr.mxu0 0.0
  %3420 = vmatpush1.msra.mxu0 0.0
  %3421 = vmatprep.subr.mxu0 0.0
  %3422 = vmatpush1.msra.mxu0 0.0
  %3423 = vmatprep.subr.mxu0 0.0
  %3424 = vmatpush1.msra.mxu0 0.0
  %3425 = vmatprep.subr.mxu0 0.0
  %3426 = vmatpush1.msra.mxu0 0.0
  %3427 = vmatprep.subr.mxu0 0.0
  %3428 = vmatpush1.msra.mxu0 0.0
  %3429 = vmatprep.subr.mxu0 0.0
  %3430 = vmatpush1.msra.mxu0 0.0
  %3431 = vmatprep.subr.mxu0 0.0
  %3432 = vmatpush1.msra.mxu0 0.0
  %3433 = vmatprep.subr.mxu0 0.0
  %3434 = vmatpush1.msra.mxu0 0.0
  %3435 = vmatprep.subr.mxu0 0.0
  %3436 = vmatpush1.msra.mxu0 0.0
  %3437 = vmatprep.subr.mxu0 0.0
  %3438 = vmatpush1.msra.mxu0 0.0
  %3439 = vmatprep.subr.mxu0 0.0
  %3440 = vmatpush1.msra.mxu0 0.0
  %3441 = vmatprep.subr.mxu0 0.0
  %3442 = vmatpush1.msra.mxu0 0.0
  %3443 = vmatprep.subr.mxu0 0.0
  %3444 = vmatpush1.msra.mxu0 0.0
  %3445 = vmatprep.mubr.f32.mxu0 0.0
  %3446 = vmatmul.mubr.f32.gmra.mrb[0].mxu0 %v3379
  %v3447 = vpop.f32.mrb[0].mxu0
  %v3448 = vadd.f32 0.0, %v3447
  %v3449 = vpop.f32.mrb[0].mxu0
  %v3450 = vadd.f32 0.0, %v3449
  %3451 = vdwg.mxu0
  %3452 = vrot.lane.b32.xlu0 %v3448, 1
  %v3453 = vpop.permute.xlu0 %3452
  %3454 = vrot.lane.b32.xlu0 %v3450, 1
  %v3455 = vpop.permute.xlu0 %3454
  %v3456 = vsel %vm2605, %v3453, %v3455
  %v3457 = vsel %vm2605, %v3455, %v3453
  %v3458 = vmul.f32 %v3457, %v2614
  %v3459 = vmul.f32 %v3456, %v2618
  %v3460 = vadd.f32 %v3374, %v3458
  %v3461 = vadd.f32 %v3375, %v3459
  %s3462 = scalar_lea.vmem %s19, 32
  %v3463 = vld [vmem:[%s3462] sm:$0xff]
  %v3465 = vsel %vm3114, %v3463, 0
  %3467 = vmatprep.subr.mxu0 %v3123
  %3468 = vmatpush1.msra.mxu0 %v3120
  %3469 = vmatprep.subr.mxu0 0.0
  %3470 = vmatpush1.msra.mxu0 0.0
  %3471 = vmatprep.subr.mxu0 0.0
  %3472 = vmatpush1.msra.mxu0 0.0
  %3473 = vmatprep.subr.mxu0 0.0
  %3474 = vmatpush1.msra.mxu0 0.0
  %3475 = vmatprep.subr.mxu0 0.0
  %3476 = vmatpush1.msra.mxu0 0.0
  %3477 = vmatprep.subr.mxu0 0.0
  %3478 = vmatpush1.msra.mxu0 0.0
  %3479 = vmatprep.subr.mxu0 0.0
  %3480 = vmatpush1.msra.mxu0 0.0
  %3481 = vmatprep.subr.mxu0 0.0
  %3482 = vmatpush1.msra.mxu0 0.0
  %3483 = vmatprep.subr.mxu0 0.0
  %3484 = vmatpush1.msra.mxu0 0.0
  %3485 = vmatprep.subr.mxu0 0.0
  %3486 = vmatpush1.msra.mxu0 0.0
  %3487 = vmatprep.subr.mxu0 0.0
  %3488 = vmatpush1.msra.mxu0 0.0
  %3489 = vmatprep.subr.mxu0 0.0
  %3490 = vmatpush1.msra.mxu0 0.0
  %3491 = vmatprep.subr.mxu0 0.0
  %3492 = vmatpush1.msra.mxu0 0.0
  %3493 = vmatprep.subr.mxu0 0.0
  %3494 = vmatpush1.msra.mxu0 0.0
  %3495 = vmatprep.subr.mxu0 0.0
  %3496 = vmatpush1.msra.mxu0 0.0
  %3497 = vmatprep.subr.mxu0 0.0
  %3498 = vmatpush1.msra.mxu0 0.0
  %3499 = vmatprep.subr.mxu0 0.0
  %3500 = vmatpush1.msra.mxu0 0.0
  %3501 = vmatprep.subr.mxu0 0.0
  %3502 = vmatpush1.msra.mxu0 0.0
  %3503 = vmatprep.subr.mxu0 0.0
  %3504 = vmatpush1.msra.mxu0 0.0
  %3505 = vmatprep.subr.mxu0 0.0
  %3506 = vmatpush1.msra.mxu0 0.0
  %3507 = vmatprep.subr.mxu0 0.0
  %3508 = vmatpush1.msra.mxu0 0.0
  %3509 = vmatprep.subr.mxu0 0.0
  %3510 = vmatpush1.msra.mxu0 0.0
  %3511 = vmatprep.subr.mxu0 0.0
  %3512 = vmatpush1.msra.mxu0 0.0
  %3513 = vmatprep.subr.mxu0 0.0
  %3514 = vmatpush1.msra.mxu0 0.0
  %3515 = vmatprep.subr.mxu0 0.0
  %3516 = vmatpush1.msra.mxu0 0.0
  %3517 = vmatprep.subr.mxu0 0.0
  %3518 = vmatpush1.msra.mxu0 0.0
  %3519 = vmatprep.subr.mxu0 0.0
  %3520 = vmatpush1.msra.mxu0 0.0
  %3521 = vmatprep.subr.mxu0 0.0
  %3522 = vmatpush1.msra.mxu0 0.0
  %3523 = vmatprep.subr.mxu0 0.0
  %3524 = vmatpush1.msra.mxu0 0.0
  %3525 = vmatprep.subr.mxu0 0.0
  %3526 = vmatpush1.msra.mxu0 0.0
  %3527 = vmatprep.subr.mxu0 0.0
  %3528 = vmatpush1.msra.mxu0 0.0
  %3529 = vmatprep.subr.mxu0 0.0
  %3530 = vmatpush1.msra.mxu0 0.0
  %3531 = vmatprep.mubr.f32.mxu0 0.0
  %3532 = vmatmul.mubr.f32.gmra.mrb[0].mxu0 %v3465
  %v3533 = vpop.f32.mrb[0].mxu0
  %v3534 = vadd.f32 0.0, %v3533
  %v3535 = vpop.f32.mrb[0].mxu0
  %v3536 = vadd.f32 0.0, %v3535
  %3537 = vdwg.mxu0
  %v3538 = vadd.f32 %v3460, %v3534
  %v3539 = vadd.f32 %v3461, %v3536
  %s3540 = scalar_lea.vmem %s19, 40
  %v3541 = vld [vmem:[%s3540] sm:$0xff]
  %v3543 = vsel %vm3114, %v3541, 0
  %3545 = vmatprep.subr.mxu0 %v3123
  %3546 = vmatpush1.msra.mxu0 %v3120
  %3547 = vmatprep.subr.mxu0 0.0
  %3548 = vmatpush1.msra.mxu0 0.0
  %3549 = vmatprep.subr.mxu0 0.0
  %3550 = vmatpush1.msra.mxu0 0.0
  %3551 = vmatprep.subr.mxu0 0.0
  %3552 = vmatpush1.msra.mxu0 0.0
  %3553 = vmatprep.subr.mxu0 0.0
  %3554 = vmatpush1.msra.mxu0 0.0
  %3555 = vmatprep.subr.mxu0 0.0
  %3556 = vmatpush1.msra.mxu0 0.0
  %3557 = vmatprep.subr.mxu0 0.0
  %3558 = vmatpush1.msra.mxu0 0.0
  %3559 = vmatprep.subr.mxu0 0.0
  %3560 = vmatpush1.msra.mxu0 0.0
  %3561 = vmatprep.subr.mxu0 0.0
  %3562 = vmatpush1.msra.mxu0 0.0
  %3563 = vmatprep.subr.mxu0 0.0
  %3564 = vmatpush1.msra.mxu0 0.0
  %3565 = vmatprep.subr.mxu0 0.0
  %3566 = vmatpush1.msra.mxu0 0.0
  %3567 = vmatprep.subr.mxu0 0.0
  %3568 = vmatpush1.msra.mxu0 0.0
  %3569 = vmatprep.subr.mxu0 0.0
  %3570 = vmatpush1.msra.mxu0 0.0
  %3571 = vmatprep.subr.mxu0 0.0
  %3572 = vmatpush1.msra.mxu0 0.0
  %3573 = vmatprep.subr.mxu0 0.0
  %3574 = vmatpush1.msra.mxu0 0.0
  %3575 = vmatprep.subr.mxu0 0.0
  %3576 = vmatpush1.msra.mxu0 0.0
  %3577 = vmatprep.subr.mxu0 0.0
  %3578 = vmatpush1.msra.mxu0 0.0
  %3579 = vmatprep.subr.mxu0 0.0
  %3580 = vmatpush1.msra.mxu0 0.0
  %3581 = vmatprep.subr.mxu0 0.0
  %3582 = vmatpush1.msra.mxu0 0.0
  %3583 = vmatprep.subr.mxu0 0.0
  %3584 = vmatpush1.msra.mxu0 0.0
  %3585 = vmatprep.subr.mxu0 0.0
  %3586 = vmatpush1.msra.mxu0 0.0
  %3587 = vmatprep.subr.mxu0 0.0
  %3588 = vmatpush1.msra.mxu0 0.0
  %3589 = vmatprep.subr.mxu0 0.0
  %3590 = vmatpush1.msra.mxu0 0.0
  %3591 = vmatprep.subr.mxu0 0.0
  %3592 = vmatpush1.msra.mxu0 0.0
  %3593 = vmatprep.subr.mxu0 0.0
  %3594 = vmatpush1.msra.mxu0 0.0
  %3595 = vmatprep.subr.mxu0 0.0
  %3596 = vmatpush1.msra.mxu0 0.0
  %3597 = vmatprep.subr.mxu0 0.0
  %3598 = vmatpush1.msra.mxu0 0.0
  %3599 = vmatprep.subr.mxu0 0.0
  %3600 = vmatpush1.msra.mxu0 0.0
  %3601 = vmatprep.subr.mxu0 0.0
  %3602 = vmatpush1.msra.mxu0 0.0
  %3603 = vmatprep.subr.mxu0 0.0
  %3604 = vmatpush1.msra.mxu0 0.0
  %3605 = vmatprep.subr.mxu0 0.0
  %3606 = vmatpush1.msra.mxu0 0.0
  %3607 = vmatprep.subr.mxu0 0.0
  %3608 = vmatpush1.msra.mxu0 0.0
  %3609 = vmatprep.mubr.f32.mxu0 0.0
  %3610 = vmatmul.mubr.f32.gmra.mrb[0].mxu0 %v3543
  %v3611 = vpop.f32.mrb[0].mxu0
  %v3612 = vadd.f32 0.0, %v3611
  %v3613 = vpop.f32.mrb[0].mxu0
  %v3614 = vadd.f32 0.0, %v3613
  %3615 = vdwg.mxu0
  %3616 = vrot.lane.b32.xlu0 %v3612, 127
  %v3617 = vpop.permute.xlu0 %3616
  %3618 = vrot.lane.b32.xlu0 %v3614, 127
  %v3619 = vpop.permute.xlu0 %3618
  %v3620 = vsel %vm2783, %v3617, %v3619
  %v3621 = vsel %vm2783, %v3619, %v3617
  %v3622 = vmul.f32 %v3620, %v2792
  %v3623 = vmul.f32 %v3621, %v2796
  %v3624 = vadd.f32 %v3538, %v3622
  %v3625 = vadd.f32 %v3539, %v3623
  %s3626 = scalar_lea.vmem %s19, 48
  %v3627 = vld [vmem:[%s3626] sm:$0xff]
  %v3629 = vsel %vm3114, %v3627, 0
  %3631 = vmatprep.subr.mxu0 %v3123
  %3632 = vmatpush1.msra.mxu0 %v3120
  %3633 = vmatprep.subr.mxu0 0.0
  %3634 = vmatpush1.msra.mxu0 0.0
  %3635 = vmatprep.subr.mxu0 0.0
  %3636 = vmatpush1.msra.mxu0 0.0
  %3637 = vmatprep.subr.mxu0 0.0
  %3638 = vmatpush1.msra.mxu0 0.0
  %3639 = vmatprep.subr.mxu0 0.0
  %3640 = vmatpush1.msra.mxu0 0.0
  %3641 = vmatprep.subr.mxu0 0.0
  %3642 = vmatpush1.msra.mxu0 0.0
  %3643 = vmatprep.subr.mxu0 0.0
  %3644 = vmatpush1.msra.mxu0 0.0
  %3645 = vmatprep.subr.mxu0 0.0
  %3646 = vmatpush1.msra.mxu0 0.0
  %3647 = vmatprep.subr.mxu0 0.0
  %3648 = vmatpush1.msra.mxu0 0.0
  %3649 = vmatprep.subr.mxu0 0.0
  %3650 = vmatpush1.msra.mxu0 0.0
  %3651 = vmatprep.subr.mxu0 0.0
  %3652 = vmatpush1.msra.mxu0 0.0
  %3653 = vmatprep.subr.mxu0 0.0
  %3654 = vmatpush1.msra.mxu0 0.0
  %3655 = vmatprep.subr.mxu0 0.0
  %3656 = vmatpush1.msra.mxu0 0.0
  %3657 = vmatprep.subr.mxu0 0.0
  %3658 = vmatpush1.msra.mxu0 0.0
  %3659 = vmatprep.subr.mxu0 0.0
  %3660 = vmatpush1.msra.mxu0 0.0
  %3661 = vmatprep.subr.mxu0 0.0
  %3662 = vmatpush1.msra.mxu0 0.0
  %3663 = vmatprep.subr.mxu0 0.0
  %3664 = vmatpush1.msra.mxu0 0.0
  %3665 = vmatprep.subr.mxu0 0.0
  %3666 = vmatpush1.msra.mxu0 0.0
  %3667 = vmatprep.subr.mxu0 0.0
  %3668 = vmatpush1.msra.mxu0 0.0
  %3669 = vmatprep.subr.mxu0 0.0
  %3670 = vmatpush1.msra.mxu0 0.0
  %3671 = vmatprep.subr.mxu0 0.0
  %3672 = vmatpush1.msra.mxu0 0.0
  %3673 = vmatprep.subr.mxu0 0.0
  %3674 = vmatpush1.msra.mxu0 0.0
  %3675 = vmatprep.subr.mxu0 0.0
  %3676 = vmatpush1.msra.mxu0 0.0
  %3677 = vmatprep.subr.mxu0 0.0
  %3678 = vmatpush1.msra.mxu0 0.0
  %3679 = vmatprep.subr.mxu0 0.0
  %3680 = vmatpush1.msra.mxu0 0.0
  %3681 = vmatprep.subr.mxu0 0.0
  %3682 = vmatpush1.msra.mxu0 0.0
  %3683 = vmatprep.subr.mxu0 0.0
  %3684 = vmatpush1.msra.mxu0 0.0
  %3685 = vmatprep.subr.mxu0 0.0
  %3686 = vmatpush1.msra.mxu0 0.0
  %3687 = vmatprep.subr.mxu0 0.0
  %3688 = vmatpush1.msra.mxu0 0.0
  %3689 = vmatprep.subr.mxu0 0.0
  %3690 = vmatpush1.msra.mxu0 0.0
  %3691 = vmatprep.subr.mxu0 0.0
  %3692 = vmatpush1.msra.mxu0 0.0
  %3693 = vmatprep.subr.mxu0 0.0
  %3694 = vmatpush1.msra.mxu0 0.0
  %3695 = vmatprep.mubr.f32.mxu0 0.0
  %3696 = vmatmul.mubr.f32.gmra.mrb[0].mxu0 %v3629
  %v3697 = vpop.f32.mrb[0].mxu0
  %v3698 = vadd.f32 0.0, %v3697
  %v3699 = vpop.f32.mrb[0].mxu0
  %v3700 = vadd.f32 0.0, %v3699
  %3701 = vdwg.mxu0
  %3702 = vrot.lane.b32.xlu0 %v3698, 113
  %v3703 = vpop.permute.xlu0 %3702
  %3704 = vrot.lane.b32.xlu0 %v3700, 113
  %v3705 = vpop.permute.xlu0 %3704
  %v3706 = vsel %vm2883, %v3703, %v3705
  %v3707 = vsel %vm2883, %v3705, %v3703
  %v3708 = vmul.f32 %v3706, %v2892
  %v3709 = vmul.f32 %v3707, %v2896
  %v3710 = vadd.f32 %v3624, %v3708
  %v3711 = vadd.f32 %v3625, %v3709
  %s3712 = scalar_lea.vmem %s19, 56
  %v3713 = vld [vmem:[%s3712] sm:$0xff]
  %v3715 = vsel %vm3114, %v3713, 0
  %3717 = vmatprep.subr.mxu0 %v3123
  %3718 = vmatpush1.msra.mxu0 %v3120
  %3719 = vmatprep.subr.mxu0 0.0
  %3720 = vmatpush1.msra.mxu0 0.0
  %3721 = vmatprep.subr.mxu0 0.0
  %3722 = vmatpush1.msra.mxu0 0.0
  %3723 = vmatprep.subr.mxu0 0.0
  %3724 = vmatpush1.msra.mxu0 0.0
  %3725 = vmatprep.subr.mxu0 0.0
  %3726 = vmatpush1.msra.mxu0 0.0
  %3727 = vmatprep.subr.mxu0 0.0
  %3728 = vmatpush1.msra.mxu0 0.0
  %3729 = vmatprep.subr.mxu0 0.0
  %3730 = vmatpush1.msra.mxu0 0.0
  %3731 = vmatprep.subr.mxu0 0.0
  %3732 = vmatpush1.msra.mxu0 0.0
  %3733 = vmatprep.subr.mxu0 0.0
  %3734 = vmatpush1.msra.mxu0 0.0
  %3735 = vmatprep.subr.mxu0 0.0
  %3736 = vmatpush1.msra.mxu0 0.0
  %3737 = vmatprep.subr.mxu0 0.0
  %3738 = vmatpush1.msra.mxu0 0.0
  %3739 = vmatprep.subr.mxu0 0.0
  %3740 = vmatpush1.msra.mxu0 0.0
  %3741 = vmatprep.subr.mxu0 0.0
  %3742 = vmatpush1.msra.mxu0 0.0
  %3743 = vmatprep.subr.mxu0 0.0
  %3744 = vmatpush1.msra.mxu0 0.0
  %3745 = vmatprep.subr.mxu0 0.0
  %3746 = vmatpush1.msra.mxu0 0.0
  %3747 = vmatprep.subr.mxu0 0.0
  %3748 = vmatpush1.msra.mxu0 0.0
  %3749 = vmatprep.subr.mxu0 0.0
  %3750 = vmatpush1.msra.mxu0 0.0
  %3751 = vmatprep.subr.mxu0 0.0
  %3752 = vmatpush1.msra.mxu0 0.0
  %3753 = vmatprep.subr.mxu0 0.0
  %3754 = vmatpush1.msra.mxu0 0.0
  %3755 = vmatprep.subr.mxu0 0.0
  %3756 = vmatpush1.msra.mxu0 0.0
  %3757 = vmatprep.subr.mxu0 0.0
  %3758 = vmatpush1.msra.mxu0 0.0
  %3759 = vmatprep.subr.mxu0 0.0
  %3760 = vmatpush1.msra.mxu0 0.0
  %3761 = vmatprep.subr.mxu0 0.0
  %3762 = vmatpush1.msra.mxu0 0.0
  %3763 = vmatprep.subr.mxu0 0.0
  %3764 = vmatpush1.msra.mxu0 0.0
  %3765 = vmatprep.subr.mxu0 0.0
  %3766 = vmatpush1.msra.mxu0 0.0
  %3767 = vmatprep.subr.mxu0 0.0
  %3768 = vmatpush1.msra.mxu0 0.0
  %3769 = vmatprep.subr.mxu0 0.0
  %3770 = vmatpush1.msra.mxu0 0.0
  %3771 = vmatprep.subr.mxu0 0.0
  %3772 = vmatpush1.msra.mxu0 0.0
  %3773 = vmatprep.subr.mxu0 0.0
  %3774 = vmatpush1.msra.mxu0 0.0
  %3775 = vmatprep.subr.mxu0 0.0
  %3776 = vmatpush1.msra.mxu0 0.0
  %3777 = vmatprep.subr.mxu0 0.0
  %3778 = vmatpush1.msra.mxu0 0.0
  %3779 = vmatprep.subr.mxu0 0.0
  %3780 = vmatpush1.msra.mxu0 0.0
  %3781 = vmatprep.mubr.f32.mxu0 0.0
  %3782 = vmatmul.mubr.f32.gmra.mrb[0].mxu0 %v3715
  %v3783 = vpop.f32.mrb[0].mxu0
  %v3784 = vadd.f32 0.0, %v3783
  %v3785 = vpop.f32.mrb[0].mxu0
  %v3786 = vadd.f32 0.0, %v3785
  %3787 = vdwg.mxu0
  %3788 = vrot.lane.b32.xlu0 %v3784, 112
  %v3789 = vpop.permute.xlu0 %3788
  %3790 = vrot.lane.b32.xlu0 %v3786, 112
  %v3791 = vpop.permute.xlu0 %3790
  %v3792 = vsel %vm2983, %v3789, %v3791
  %v3793 = vsel %vm2983, %v3791, %v3789
  %v3794 = vmul.f32 %v3792, %v2992
  %v3795 = vmul.f32 %v3793, %v2996
  %v3796 = vadd.f32 %v3710, %v3794
  %v3797 = vadd.f32 %v3711, %v3795
  %s3798 = scalar_lea.vmem %s19, 64
  %v3799 = vld [vmem:[%s3798] sm:$0xff]
  %v3801 = vsel %vm3114, %v3799, 0
  %3803 = vmatprep.subr.mxu0 %v3123
  %3804 = vmatpush1.msra.mxu0 %v3120
  %3805 = vmatprep.subr.mxu0 0.0
  %3806 = vmatpush1.msra.mxu0 0.0
  %3807 = vmatprep.subr.mxu0 0.0
  %3808 = vmatpush1.msra.mxu0 0.0
  %3809 = vmatprep.subr.mxu0 0.0
  %3810 = vmatpush1.msra.mxu0 0.0
  %3811 = vmatprep.subr.mxu0 0.0
  %3812 = vmatpush1.msra.mxu0 0.0
  %3813 = vmatprep.subr.mxu0 0.0
  %3814 = vmatpush1.msra.mxu0 0.0
  %3815 = vmatprep.subr.mxu0 0.0
  %3816 = vmatpush1.msra.mxu0 0.0
  %3817 = vmatprep.subr.mxu0 0.0
  %3818 = vmatpush1.msra.mxu0 0.0
  %3819 = vmatprep.subr.mxu0 0.0
  %3820 = vmatpush1.msra.mxu0 0.0
  %3821 = vmatprep.subr.mxu0 0.0
  %3822 = vmatpush1.msra.mxu0 0.0
  %3823 = vmatprep.subr.mxu0 0.0
  %3824 = vmatpush1.msra.mxu0 0.0
  %3825 = vmatprep.subr.mxu0 0.0
  %3826 = vmatpush1.msra.mxu0 0.0
  %3827 = vmatprep.subr.mxu0 0.0
  %3828 = vmatpush1.msra.mxu0 0.0
  %3829 = vmatprep.subr.mxu0 0.0
  %3830 = vmatpush1.msra.mxu0 0.0
  %3831 = vmatprep.subr.mxu0 0.0
  %3832 = vmatpush1.msra.mxu0 0.0
  %3833 = vmatprep.subr.mxu0 0.0
  %3834 = vmatpush1.msra.mxu0 0.0
  %3835 = vmatprep.subr.mxu0 0.0
  %3836 = vmatpush1.msra.mxu0 0.0
  %3837 = vmatprep.subr.mxu0 0.0
  %3838 = vmatpush1.msra.mxu0 0.0
  %3839 = vmatprep.subr.mxu0 0.0
  %3840 = vmatpush1.msra.mxu0 0.0
  %3841 = vmatprep.subr.mxu0 0.0
  %3842 = vmatpush1.msra.mxu0 0.0
  %3843 = vmatprep.subr.mxu0 0.0
  %3844 = vmatpush1.msra.mxu0 0.0
  %3845 = vmatprep.subr.mxu0 0.0
  %3846 = vmatpush1.msra.mxu0 0.0
  %3847 = vmatprep.subr.mxu0 0.0
  %3848 = vmatpush1.msra.mxu0 0.0
  %3849 = vmatprep.subr.mxu0 0.0
  %3850 = vmatpush1.msra.mxu0 0.0
  %3851 = vmatprep.subr.mxu0 0.0
  %3852 = vmatpush1.msra.mxu0 0.0
  %3853 = vmatprep.subr.mxu0 0.0
  %3854 = vmatpush1.msra.mxu0 0.0
  %3855 = vmatprep.subr.mxu0 0.0
  %3856 = vmatpush1.msra.mxu0 0.0
  %3857 = vmatprep.subr.mxu0 0.0
  %3858 = vmatpush1.msra.mxu0 0.0
  %3859 = vmatprep.subr.mxu0 0.0
  %3860 = vmatpush1.msra.mxu0 0.0
  %3861 = vmatprep.subr.mxu0 0.0
  %3862 = vmatpush1.msra.mxu0 0.0
  %3863 = vmatprep.subr.mxu0 0.0
  %3864 = vmatpush1.msra.mxu0 0.0
  %3865 = vmatprep.subr.mxu0 0.0
  %3866 = vmatpush1.msra.mxu0 0.0
  %3867 = vmatprep.mubr.f32.mxu0 0.0
  %3868 = vmatmul.mubr.f32.gmra.mrb[0].mxu0 %v3801
  %v3869 = vpop.f32.mrb[0].mxu0
  %v3870 = vadd.f32 0.0, %v3869
  %v3871 = vpop.f32.mrb[0].mxu0
  %v3872 = vadd.f32 0.0, %v3871
  %3873 = vdwg.mxu0
  %3874 = vrot.lane.b32.xlu0 %v3870, 111
  %v3875 = vpop.permute.xlu0 %3874
  %3876 = vrot.lane.b32.xlu0 %v3872, 111
  %v3877 = vpop.permute.xlu0 %3876
  %v3878 = vsel %vm3083, %v3875, %v3877
  %v3879 = vsel %vm3083, %v3877, %v3875
  %v3880 = vmul.f32 %v3878, %v3092
  %v3881 = vmul.f32 %v3879, %v3096
  %v3882 = vadd.f32 %v3796, %v3880
  %v3883 = vadd.f32 %v3797, %v3881
  %v3884 = vld [vmem:[%s20] sm:$0xff]
  %3886 = vset.pattern.permute.xlu0 0
  %3887 = vperm.xlu0 %3886, %v3884
  %v3888 = vpop.permute.xlu0 %3887
  %v3890 = vadd.f32 %v3882, %v3888
  %v3891 = vadd.f32 %v3883, %v3888
  %v3892 = vsub.f32 0.0, %v3890
  %v3893 = vsub.f32 0.0, %v3891
  %v3894 = vmul.f32 %v3892, 1.442695
  %v3895 = vpow.pop %v3894
  %v3896 = vmul.f32 %v3893, 1.442695
  %v3897 = vpow.pop %v3896
  %v3898 = vadd.f32 %v3895, 1.0
  %v3899 = vadd.f32 %v3897, 1.0
  %v3900 = vrcp.pop %v3898
  %v3901 = vrcp.pop %v3899
  %v3902 = vmul.f32 %v2225, %v3900
  %v3903 = vmul.f32 %v2226, %v3901
  %v3904 = vadd.f32 %v74, %v3902
  %v3905 = vadd.f32 %v75, %v3903
  %v3906 = vld [vmem:[%s21] sm:$0xff]
  %v3908 = vsel %vm668, %v3906, 0
  %3910 = vmatprep.subr.mxu0 %v3905
  %3911 = vmatpush1.msra.mxu0 %v3904
  %3912 = vmatprep.subr.mxu0 0.0
  %3913 = vmatpush1.msra.mxu0 0.0
  %3914 = vmatprep.subr.mxu0 0.0
  %3915 = vmatpush1.msra.mxu0 0.0
  %3916 = vmatprep.subr.mxu0 0.0
  %3917 = vmatpush1.msra.mxu0 0.0
  %3918 = vmatprep.subr.mxu0 0.0
  %3919 = vmatpush1.msra.mxu0 0.0
  %3920 = vmatprep.subr.mxu0 0.0
  %3921 = vmatpush1.msra.mxu0 0.0
  %3922 = vmatprep.subr.mxu0 0.0
  %3923 = vmatpush1.msra.mxu0 0.0
  %3924 = vmatprep.subr.mxu0 0.0
  %3925 = vmatpush1.msra.mxu0 0.0
  %3926 = vmatprep.subr.mxu0 0.0
  %3927 = vmatpush1.msra.mxu0 0.0
  %3928 = vmatprep.subr.mxu0 0.0
  %3929 = vmatpush1.msra.mxu0 0.0
  %3930 = vmatprep.subr.mxu0 0.0
  %3931 = vmatpush1.msra.mxu0 0.0
  %3932 = vmatprep.subr.mxu0 0.0
  %3933 = vmatpush1.msra.mxu0 0.0
  %3934 = vmatprep.subr.mxu0 0.0
  %3935 = vmatpush1.msra.mxu0 0.0
  %3936 = vmatprep.subr.mxu0 0.0
  %3937 = vmatpush1.msra.mxu0 0.0
  %3938 = vmatprep.subr.mxu0 0.0
  %3939 = vmatpush1.msra.mxu0 0.0
  %3940 = vmatprep.subr.mxu0 0.0
  %3941 = vmatpush1.msra.mxu0 0.0
  %3942 = vmatprep.subr.mxu0 0.0
  %3943 = vmatpush1.msra.mxu0 0.0
  %3944 = vmatprep.subr.mxu0 0.0
  %3945 = vmatpush1.msra.mxu0 0.0
  %3946 = vmatprep.subr.mxu0 0.0
  %3947 = vmatpush1.msra.mxu0 0.0
  %3948 = vmatprep.subr.mxu0 0.0
  %3949 = vmatpush1.msra.mxu0 0.0
  %3950 = vmatprep.subr.mxu0 0.0
  %3951 = vmatpush1.msra.mxu0 0.0
  %3952 = vmatprep.subr.mxu0 0.0
  %3953 = vmatpush1.msra.mxu0 0.0
  %3954 = vmatprep.subr.mxu0 0.0
  %3955 = vmatpush1.msra.mxu0 0.0
  %3956 = vmatprep.subr.mxu0 0.0
  %3957 = vmatpush1.msra.mxu0 0.0
  %3958 = vmatprep.subr.mxu0 0.0
  %3959 = vmatpush1.msra.mxu0 0.0
  %3960 = vmatprep.subr.mxu0 0.0
  %3961 = vmatpush1.msra.mxu0 0.0
  %3962 = vmatprep.subr.mxu0 0.0
  %3963 = vmatpush1.msra.mxu0 0.0
  %3964 = vmatprep.subr.mxu0 0.0
  %3965 = vmatpush1.msra.mxu0 0.0
  %3966 = vmatprep.subr.mxu0 0.0
  %3967 = vmatpush1.msra.mxu0 0.0
  %3968 = vmatprep.subr.mxu0 0.0
  %3969 = vmatpush1.msra.mxu0 0.0
  %3970 = vmatprep.subr.mxu0 0.0
  %3971 = vmatpush1.msra.mxu0 0.0
  %3972 = vmatprep.subr.mxu0 0.0
  %3973 = vmatpush1.msra.mxu0 0.0
  %3974 = vmatprep.mubr.f32.mxu0 0.0
  %3975 = vmatmul.mubr.f32.gmra.mrb[0].mxu0 %v3908
  %v3976 = vpop.f32.mrb[0].mxu0
  %v3977 = vadd.f32 0.0, %v3976
  %v3978 = vpop.f32.mrb[0].mxu0
  %v3979 = vadd.f32 0.0, %v3978
  %3980 = vdwg.mxu0
  %3981 = vrot.lane.b32.xlu0 %v3977, 17
  %v3982 = vpop.permute.xlu0 %3981
  %3983 = vrot.lane.b32.xlu0 %v3979, 17
  %v3984 = vpop.permute.xlu0 %3983
  %v3985 = vsel %vm2308, %v3982, %v3984
  %v3986 = vsel %vm2308, %v3984, %v3982
  %v3987 = vmul.f32 %v3986, %v2316
  %v3988 = vmul.f32 %v3985, %v2320
  %s3989 = scalar_lea.vmem %s21, 8
  %v3990 = vld [vmem:[%s3989] sm:$0xff]
  %v3992 = vsel %vm668, %v3990, 0
  %3994 = vmatprep.subr.mxu0 %v3905
  %3995 = vmatpush1.msra.mxu0 %v3904
  %3996 = vmatprep.subr.mxu0 0.0
  %3997 = vmatpush1.msra.mxu0 0.0
  %3998 = vmatprep.subr.mxu0 0.0
  %3999 = vmatpush1.msra.mxu0 0.0
  %4000 = vmatprep.subr.mxu0 0.0
  %4001 = vmatpush1.msra.mxu0 0.0
  %4002 = vmatprep.subr.mxu0 0.0
  %4003 = vmatpush1.msra.mxu0 0.0
  %4004 = vmatprep.subr.mxu0 0.0
  %4005 = vmatpush1.msra.mxu0 0.0
  %4006 = vmatprep.subr.mxu0 0.0
  %4007 = vmatpush1.msra.mxu0 0.0
  %4008 = vmatprep.subr.mxu0 0.0
  %4009 = vmatpush1.msra.mxu0 0.0
  %4010 = vmatprep.subr.mxu0 0.0
  %4011 = vmatpush1.msra.mxu0 0.0
  %4012 = vmatprep.subr.mxu0 0.0
  %4013 = vmatpush1.msra.mxu0 0.0
  %4014 = vmatprep.subr.mxu0 0.0
  %4015 = vmatpush1.msra.mxu0 0.0
  %4016 = vmatprep.subr.mxu0 0.0
  %4017 = vmatpush1.msra.mxu0 0.0
  %4018 = vmatprep.subr.mxu0 0.0
  %4019 = vmatpush1.msra.mxu0 0.0
  %4020 = vmatprep.subr.mxu0 0.0
  %4021 = vmatpush1.msra.mxu0 0.0
  %4022 = vmatprep.subr.mxu0 0.0
  %4023 = vmatpush1.msra.mxu0 0.0
  %4024 = vmatprep.subr.mxu0 0.0
  %4025 = vmatpush1.msra.mxu0 0.0
  %4026 = vmatprep.subr.mxu0 0.0
  %4027 = vmatpush1.msra.mxu0 0.0
  %4028 = vmatprep.subr.mxu0 0.0
  %4029 = vmatpush1.msra.mxu0 0.0
  %4030 = vmatprep.subr.mxu0 0.0
  %4031 = vmatpush1.msra.mxu0 0.0
  %4032 = vmatprep.subr.mxu0 0.0
  %4033 = vmatpush1.msra.mxu0 0.0
  %4034 = vmatprep.subr.mxu0 0.0
  %4035 = vmatpush1.msra.mxu0 0.0
  %4036 = vmatprep.subr.mxu0 0.0
  %4037 = vmatpush1.msra.mxu0 0.0
  %4038 = vmatprep.subr.mxu0 0.0
  %4039 = vmatpush1.msra.mxu0 0.0
  %4040 = vmatprep.subr.mxu0 0.0
  %4041 = vmatpush1.msra.mxu0 0.0
  %4042 = vmatprep.subr.mxu0 0.0
  %4043 = vmatpush1.msra.mxu0 0.0
  %4044 = vmatprep.subr.mxu0 0.0
  %4045 = vmatpush1.msra.mxu0 0.0
  %4046 = vmatprep.subr.mxu0 0.0
  %4047 = vmatpush1.msra.mxu0 0.0
  %4048 = vmatprep.subr.mxu0 0.0
  %4049 = vmatpush1.msra.mxu0 0.0
  %4050 = vmatprep.subr.mxu0 0.0
  %4051 = vmatpush1.msra.mxu0 0.0
  %4052 = vmatprep.subr.mxu0 0.0
  %4053 = vmatpush1.msra.mxu0 0.0
  %4054 = vmatprep.subr.mxu0 0.0
  %4055 = vmatpush1.msra.mxu0 0.0
  %4056 = vmatprep.subr.mxu0 0.0
  %4057 = vmatpush1.msra.mxu0 0.0
  %4058 = vmatprep.mubr.f32.mxu0 0.0
  %4059 = vmatmul.mubr.f32.gmra.mrb[0].mxu0 %v3992
  %v4060 = vpop.f32.mrb[0].mxu0
  %v4061 = vadd.f32 0.0, %v4060
  %v4062 = vpop.f32.mrb[0].mxu0
  %v4063 = vadd.f32 0.0, %v4062
  %4064 = vdwg.mxu0
  %4065 = vrot.lane.b32.xlu0 %v4061, 16
  %v4066 = vpop.permute.xlu0 %4065
  %4067 = vrot.lane.b32.xlu0 %v4063, 16
  %v4068 = vpop.permute.xlu0 %4067
  %v4069 = vsel %vm2405, %v4066, %v4068
  %v4070 = vsel %vm2405, %v4068, %v4066
  %v4071 = vmul.f32 %v4070, %v2414
  %v4072 = vmul.f32 %v4069, %v2418
  %v4073 = vadd.f32 %v3987, %v4071
  %v4074 = vadd.f32 %v3988, %v4072
  %s4075 = scalar_lea.vmem %s21, 16
  %v4076 = vld [vmem:[%s4075] sm:$0xff]
  %v4078 = vsel %vm668, %v4076, 0
  %4080 = vmatprep.subr.mxu0 %v3905
  %4081 = vmatpush1.msra.mxu0 %v3904
  %4082 = vmatprep.subr.mxu0 0.0
  %4083 = vmatpush1.msra.mxu0 0.0
  %4084 = vmatprep.subr.mxu0 0.0
  %4085 = vmatpush1.msra.mxu0 0.0
  %4086 = vmatprep.subr.mxu0 0.0
  %4087 = vmatpush1.msra.mxu0 0.0
  %4088 = vmatprep.subr.mxu0 0.0
  %4089 = vmatpush1.msra.mxu0 0.0
  %4090 = vmatprep.subr.mxu0 0.0
  %4091 = vmatpush1.msra.mxu0 0.0
  %4092 = vmatprep.subr.mxu0 0.0
  %4093 = vmatpush1.msra.mxu0 0.0
  %4094 = vmatprep.subr.mxu0 0.0
  %4095 = vmatpush1.msra.mxu0 0.0
  %4096 = vmatprep.subr.mxu0 0.0
  %4097 = vmatpush1.msra.mxu0 0.0
  %4098 = vmatprep.subr.mxu0 0.0
  %4099 = vmatpush1.msra.mxu0 0.0
  %4100 = vmatprep.subr.mxu0 0.0
  %4101 = vmatpush1.msra.mxu0 0.0
  %4102 = vmatprep.subr.mxu0 0.0
  %4103 = vmatpush1.msra.mxu0 0.0
  %4104 = vmatprep.subr.mxu0 0.0
  %4105 = vmatpush1.msra.mxu0 0.0
  %4106 = vmatprep.subr.mxu0 0.0
  %4107 = vmatpush1.msra.mxu0 0.0
  %4108 = vmatprep.subr.mxu0 0.0
  %4109 = vmatpush1.msra.mxu0 0.0
  %4110 = vmatprep.subr.mxu0 0.0
  %4111 = vmatpush1.msra.mxu0 0.0
  %4112 = vmatprep.subr.mxu0 0.0
  %4113 = vmatpush1.msra.mxu0 0.0
  %4114 = vmatprep.subr.mxu0 0.0
  %4115 = vmatpush1.msra.mxu0 0.0
  %4116 = vmatprep.subr.mxu0 0.0
  %4117 = vmatpush1.msra.mxu0 0.0
  %4118 = vmatprep.subr.mxu0 0.0
  %4119 = vmatpush1.msra.mxu0 0.0
  %4120 = vmatprep.subr.mxu0 0.0
  %4121 = vmatpush1.msra.mxu0 0.0
  %4122 = vmatprep.subr.mxu0 0.0
  %4123 = vmatpush1.msra.mxu0 0.0
  %4124 = vmatprep.subr.mxu0 0.0
  %4125 = vmatpush1.msra.mxu0 0.0
  %4126 = vmatprep.subr.mxu0 0.0
  %4127 = vmatpush1.msra.mxu0 0.0
  %4128 = vmatprep.subr.mxu0 0.0
  %4129 = vmatpush1.msra.mxu0 0.0
  %4130 = vmatprep.subr.mxu0 0.0
  %4131 = vmatpush1.msra.mxu0 0.0
  %4132 = vmatprep.subr.mxu0 0.0
  %4133 = vmatpush1.msra.mxu0 0.0
  %4134 = vmatprep.subr.mxu0 0.0
  %4135 = vmatpush1.msra.mxu0 0.0
  %4136 = vmatprep.subr.mxu0 0.0
  %4137 = vmatpush1.msra.mxu0 0.0
  %4138 = vmatprep.subr.mxu0 0.0
  %4139 = vmatpush1.msra.mxu0 0.0
  %4140 = vmatprep.subr.mxu0 0.0
  %4141 = vmatpush1.msra.mxu0 0.0
  %4142 = vmatprep.subr.mxu0 0.0
  %4143 = vmatpush1.msra.mxu0 0.0
  %4144 = vmatprep.mubr.f32.mxu0 0.0
  %4145 = vmatmul.mubr.f32.gmra.mrb[0].mxu0 %v4078
  %v4146 = vpop.f32.mrb[0].mxu0
  %v4147 = vadd.f32 0.0, %v4146
  %v4148 = vpop.f32.mrb[0].mxu0
  %v4149 = vadd.f32 0.0, %v4148
  %4150 = vdwg.mxu0
  %4151 = vrot.lane.b32.xlu0 %v4147, 15
  %v4152 = vpop.permute.xlu0 %4151
  %4153 = vrot.lane.b32.xlu0 %v4149, 15
  %v4154 = vpop.permute.xlu0 %4153
  %v4155 = vsel %vm2505, %v4152, %v4154
  %v4156 = vsel %vm2505, %v4154, %v4152
  %v4157 = vmul.f32 %v4156, %v2514
  %v4158 = vmul.f32 %v4155, %v2518
  %v4159 = vadd.f32 %v4073, %v4157
  %v4160 = vadd.f32 %v4074, %v4158
  %s4161 = scalar_lea.vmem %s21, 24
  %v4162 = vld [vmem:[%s4161] sm:$0xff]
  %v4164 = vsel %vm668, %v4162, 0
  %4166 = vmatprep.subr.mxu0 %v3905
  %4167 = vmatpush1.msra.mxu0 %v3904
  %4168 = vmatprep.subr.mxu0 0.0
  %4169 = vmatpush1.msra.mxu0 0.0
  %4170 = vmatprep.subr.mxu0 0.0
  %4171 = vmatpush1.msra.mxu0 0.0
  %4172 = vmatprep.subr.mxu0 0.0
  %4173 = vmatpush1.msra.mxu0 0.0
  %4174 = vmatprep.subr.mxu0 0.0
  %4175 = vmatpush1.msra.mxu0 0.0
  %4176 = vmatprep.subr.mxu0 0.0
  %4177 = vmatpush1.msra.mxu0 0.0
  %4178 = vmatprep.subr.mxu0 0.0
  %4179 = vmatpush1.msra.mxu0 0.0
  %4180 = vmatprep.subr.mxu0 0.0
  %4181 = vmatpush1.msra.mxu0 0.0
  %4182 = vmatprep.subr.mxu0 0.0
  %4183 = vmatpush1.msra.mxu0 0.0
  %4184 = vmatprep.subr.mxu0 0.0
  %4185 = vmatpush1.msra.mxu0 0.0
  %4186 = vmatprep.subr.mxu0 0.0
  %4187 = vmatpush1.msra.mxu0 0.0
  %4188 = vmatprep.subr.mxu0 0.0
  %4189 = vmatpush1.msra.mxu0 0.0
  %4190 = vmatprep.subr.mxu0 0.0
  %4191 = vmatpush1.msra.mxu0 0.0
  %4192 = vmatprep.subr.mxu0 0.0
  %4193 = vmatpush1.msra.mxu0 0.0
  %4194 = vmatprep.subr.mxu0 0.0
  %4195 = vmatpush1.msra.mxu0 0.0
  %4196 = vmatprep.subr.mxu0 0.0
  %4197 = vmatpush1.msra.mxu0 0.0
  %4198 = vmatprep.subr.mxu0 0.0
  %4199 = vmatpush1.msra.mxu0 0.0
  %4200 = vmatprep.subr.mxu0 0.0
  %4201 = vmatpush1.msra.mxu0 0.0
  %4202 = vmatprep.subr.mxu0 0.0
  %4203 = vmatpush1.msra.mxu0 0.0
  %4204 = vmatprep.subr.mxu0 0.0
  %4205 = vmatpush1.msra.mxu0 0.0
  %4206 = vmatprep.subr.mxu0 0.0
  %4207 = vmatpush1.msra.mxu0 0.0
  %4208 = vmatprep.subr.mxu0 0.0
  %4209 = vmatpush1.msra.mxu0 0.0
  %4210 = vmatprep.subr.mxu0 0.0
  %4211 = vmatpush1.msra.mxu0 0.0
  %4212 = vmatprep.subr.mxu0 0.0
  %4213 = vmatpush1.msra.mxu0 0.0
  %4214 = vmatprep.subr.mxu0 0.0
  %4215 = vmatpush1.msra.mxu0 0.0
  %4216 = vmatprep.subr.mxu0 0.0
  %4217 = vmatpush1.msra.mxu0 0.0
  %4218 = vmatprep.subr.mxu0 0.0
  %4219 = vmatpush1.msra.mxu0 0.0
  %4220 = vmatprep.subr.mxu0 0.0
  %4221 = vmatpush1.msra.mxu0 0.0
  %4222 = vmatprep.subr.mxu0 0.0
  %4223 = vmatpush1.msra.mxu0 0.0
  %4224 = vmatprep.subr.mxu0 0.0
  %4225 = vmatpush1.msra.mxu0 0.0
  %4226 = vmatprep.subr.mxu0 0.0
  %4227 = vmatpush1.msra.mxu0 0.0
  %4228 = vmatprep.subr.mxu0 0.0
  %4229 = vmatpush1.msra.mxu0 0.0
  %4230 = vmatprep.mubr.f32.mxu0 0.0
  %4231 = vmatmul.mubr.f32.gmra.mrb[0].mxu0 %v4164
  %v4232 = vpop.f32.mrb[0].mxu0
  %v4233 = vadd.f32 0.0, %v4232
  %v4234 = vpop.f32.mrb[0].mxu0
  %v4235 = vadd.f32 0.0, %v4234
  %4236 = vdwg.mxu0
  %4237 = vrot.lane.b32.xlu0 %v4233, 1
  %v4238 = vpop.permute.xlu0 %4237
  %4239 = vrot.lane.b32.xlu0 %v4235, 1
  %v4240 = vpop.permute.xlu0 %4239
  %v4241 = vsel %vm2605, %v4238, %v4240
  %v4242 = vsel %vm2605, %v4240, %v4238
  %v4243 = vmul.f32 %v4242, %v2614
  %v4244 = vmul.f32 %v4241, %v2618
  %v4245 = vadd.f32 %v4159, %v4243
  %v4246 = vadd.f32 %v4160, %v4244
  %s4247 = scalar_lea.vmem %s21, 32
  %v4248 = vld [vmem:[%s4247] sm:$0xff]
  %v4250 = vsel %vm668, %v4248, 0
  %4252 = vmatprep.subr.mxu0 %v3905
  %4253 = vmatpush1.msra.mxu0 %v3904
  %4254 = vmatprep.subr.mxu0 0.0
  %4255 = vmatpush1.msra.mxu0 0.0
  %4256 = vmatprep.subr.mxu0 0.0
  %4257 = vmatpush1.msra.mxu0 0.0
  %4258 = vmatprep.subr.mxu0 0.0
  %4259 = vmatpush1.msra.mxu0 0.0
  %4260 = vmatprep.subr.mxu0 0.0
  %4261 = vmatpush1.msra.mxu0 0.0
  %4262 = vmatprep.subr.mxu0 0.0
  %4263 = vmatpush1.msra.mxu0 0.0
  %4264 = vmatprep.subr.mxu0 0.0
  %4265 = vmatpush1.msra.mxu0 0.0
  %4266 = vmatprep.subr.mxu0 0.0
  %4267 = vmatpush1.msra.mxu0 0.0
  %4268 = vmatprep.subr.mxu0 0.0
  %4269 = vmatpush1.msra.mxu0 0.0
  %4270 = vmatprep.subr.mxu0 0.0
  %4271 = vmatpush1.msra.mxu0 0.0
  %4272 = vmatprep.subr.mxu0 0.0
  %4273 = vmatpush1.msra.mxu0 0.0
  %4274 = vmatprep.subr.mxu0 0.0
  %4275 = vmatpush1.msra.mxu0 0.0
  %4276 = vmatprep.subr.mxu0 0.0
  %4277 = vmatpush1.msra.mxu0 0.0
  %4278 = vmatprep.subr.mxu0 0.0
  %4279 = vmatpush1.msra.mxu0 0.0
  %4280 = vmatprep.subr.mxu0 0.0
  %4281 = vmatpush1.msra.mxu0 0.0
  %4282 = vmatprep.subr.mxu0 0.0
  %4283 = vmatpush1.msra.mxu0 0.0
  %4284 = vmatprep.subr.mxu0 0.0
  %4285 = vmatpush1.msra.mxu0 0.0
  %4286 = vmatprep.subr.mxu0 0.0
  %4287 = vmatpush1.msra.mxu0 0.0
  %4288 = vmatprep.subr.mxu0 0.0
  %4289 = vmatpush1.msra.mxu0 0.0
  %4290 = vmatprep.subr.mxu0 0.0
  %4291 = vmatpush1.msra.mxu0 0.0
  %4292 = vmatprep.subr.mxu0 0.0
  %4293 = vmatpush1.msra.mxu0 0.0
  %4294 = vmatprep.subr.mxu0 0.0
  %4295 = vmatpush1.msra.mxu0 0.0
  %4296 = vmatprep.subr.mxu0 0.0
  %4297 = vmatpush1.msra.mxu0 0.0
  %4298 = vmatprep.subr.mxu0 0.0
  %4299 = vmatpush1.msra.mxu0 0.0
  %4300 = vmatprep.subr.mxu0 0.0
  %4301 = vmatpush1.msra.mxu0 0.0
  %4302 = vmatprep.subr.mxu0 0.0
  %4303 = vmatpush1.msra.mxu0 0.0
  %4304 = vmatprep.subr.mxu0 0.0
  %4305 = vmatpush1.msra.mxu0 0.0
  %4306 = vmatprep.subr.mxu0 0.0
  %4307 = vmatpush1.msra.mxu0 0.0
  %4308 = vmatprep.subr.mxu0 0.0
  %4309 = vmatpush1.msra.mxu0 0.0
  %4310 = vmatprep.subr.mxu0 0.0
  %4311 = vmatpush1.msra.mxu0 0.0
  %4312 = vmatprep.subr.mxu0 0.0
  %4313 = vmatpush1.msra.mxu0 0.0
  %4314 = vmatprep.subr.mxu0 0.0
  %4315 = vmatpush1.msra.mxu0 0.0
  %4316 = vmatprep.mubr.f32.mxu0 0.0
  %4317 = vmatmul.mubr.f32.gmra.mrb[0].mxu0 %v4250
  %v4318 = vpop.f32.mrb[0].mxu0
  %v4319 = vadd.f32 0.0, %v4318
  %v4320 = vpop.f32.mrb[0].mxu0
  %v4321 = vadd.f32 0.0, %v4320
  %4322 = vdwg.mxu0
  %v4323 = vadd.f32 %v4245, %v4319
  %v4324 = vadd.f32 %v4246, %v4321
  %s4325 = scalar_lea.vmem %s21, 40
  %v4326 = vld [vmem:[%s4325] sm:$0xff]
  %v4328 = vsel %vm668, %v4326, 0
  %4330 = vmatprep.subr.mxu0 %v3905
  %4331 = vmatpush1.msra.mxu0 %v3904
  %4332 = vmatprep.subr.mxu0 0.0
  %4333 = vmatpush1.msra.mxu0 0.0
  %4334 = vmatprep.subr.mxu0 0.0
  %4335 = vmatpush1.msra.mxu0 0.0
  %4336 = vmatprep.subr.mxu0 0.0
  %4337 = vmatpush1.msra.mxu0 0.0
  %4338 = vmatprep.subr.mxu0 0.0
  %4339 = vmatpush1.msra.mxu0 0.0
  %4340 = vmatprep.subr.mxu0 0.0
  %4341 = vmatpush1.msra.mxu0 0.0
  %4342 = vmatprep.subr.mxu0 0.0
  %4343 = vmatpush1.msra.mxu0 0.0
  %4344 = vmatprep.subr.mxu0 0.0
  %4345 = vmatpush1.msra.mxu0 0.0
  %4346 = vmatprep.subr.mxu0 0.0
  %4347 = vmatpush1.msra.mxu0 0.0
  %4348 = vmatprep.subr.mxu0 0.0
  %4349 = vmatpush1.msra.mxu0 0.0
  %4350 = vmatprep.subr.mxu0 0.0
  %4351 = vmatpush1.msra.mxu0 0.0
  %4352 = vmatprep.subr.mxu0 0.0
  %4353 = vmatpush1.msra.mxu0 0.0
  %4354 = vmatprep.subr.mxu0 0.0
  %4355 = vmatpush1.msra.mxu0 0.0
  %4356 = vmatprep.subr.mxu0 0.0
  %4357 = vmatpush1.msra.mxu0 0.0
  %4358 = vmatprep.subr.mxu0 0.0
  %4359 = vmatpush1.msra.mxu0 0.0
  %4360 = vmatprep.subr.mxu0 0.0
  %4361 = vmatpush1.msra.mxu0 0.0
  %4362 = vmatprep.subr.mxu0 0.0
  %4363 = vmatpush1.msra.mxu0 0.0
  %4364 = vmatprep.subr.mxu0 0.0
  %4365 = vmatpush1.msra.mxu0 0.0
  %4366 = vmatprep.subr.mxu0 0.0
  %4367 = vmatpush1.msra.mxu0 0.0
  %4368 = vmatprep.subr.mxu0 0.0
  %4369 = vmatpush1.msra.mxu0 0.0
  %4370 = vmatprep.subr.mxu0 0.0
  %4371 = vmatpush1.msra.mxu0 0.0
  %4372 = vmatprep.subr.mxu0 0.0
  %4373 = vmatpush1.msra.mxu0 0.0
  %4374 = vmatprep.subr.mxu0 0.0
  %4375 = vmatpush1.msra.mxu0 0.0
  %4376 = vmatprep.subr.mxu0 0.0
  %4377 = vmatpush1.msra.mxu0 0.0
  %4378 = vmatprep.subr.mxu0 0.0
  %4379 = vmatpush1.msra.mxu0 0.0
  %4380 = vmatprep.subr.mxu0 0.0
  %4381 = vmatpush1.msra.mxu0 0.0
  %4382 = vmatprep.subr.mxu0 0.0
  %4383 = vmatpush1.msra.mxu0 0.0
  %4384 = vmatprep.subr.mxu0 0.0
  %4385 = vmatpush1.msra.mxu0 0.0
  %4386 = vmatprep.subr.mxu0 0.0
  %4387 = vmatpush1.msra.mxu0 0.0
  %4388 = vmatprep.subr.mxu0 0.0
  %4389 = vmatpush1.msra.mxu0 0.0
  %4390 = vmatprep.subr.mxu0 0.0
  %4391 = vmatpush1.msra.mxu0 0.0
  %4392 = vmatprep.subr.mxu0 0.0
  %4393 = vmatpush1.msra.mxu0 0.0
  %4394 = vmatprep.mubr.f32.mxu0 0.0
  %4395 = vmatmul.mubr.f32.gmra.mrb[0].mxu0 %v4328
  %v4396 = vpop.f32.mrb[0].mxu0
  %v4397 = vadd.f32 0.0, %v4396
  %v4398 = vpop.f32.mrb[0].mxu0
  %v4399 = vadd.f32 0.0, %v4398
  %4400 = vdwg.mxu0
  %4401 = vrot.lane.b32.xlu0 %v4397, 127
  %v4402 = vpop.permute.xlu0 %4401
  %4403 = vrot.lane.b32.xlu0 %v4399, 127
  %v4404 = vpop.permute.xlu0 %4403
  %v4405 = vsel %vm2783, %v4402, %v4404
  %v4406 = vsel %vm2783, %v4404, %v4402
  %v4407 = vmul.f32 %v4405, %v2792
  %v4408 = vmul.f32 %v4406, %v2796
  %v4409 = vadd.f32 %v4323, %v4407
  %v4410 = vadd.f32 %v4324, %v4408
  %s4411 = scalar_lea.vmem %s21, 48
  %v4412 = vld [vmem:[%s4411] sm:$0xff]
  %v4414 = vsel %vm668, %v4412, 0
  %4416 = vmatprep.subr.mxu0 %v3905
  %4417 = vmatpush1.msra.mxu0 %v3904
  %4418 = vmatprep.subr.mxu0 0.0
  %4419 = vmatpush1.msra.mxu0 0.0
  %4420 = vmatprep.subr.mxu0 0.0
  %4421 = vmatpush1.msra.mxu0 0.0
  %4422 = vmatprep.subr.mxu0 0.0
  %4423 = vmatpush1.msra.mxu0 0.0
  %4424 = vmatprep.subr.mxu0 0.0
  %4425 = vmatpush1.msra.mxu0 0.0
  %4426 = vmatprep.subr.mxu0 0.0
  %4427 = vmatpush1.msra.mxu0 0.0
  %4428 = vmatprep.subr.mxu0 0.0
  %4429 = vmatpush1.msra.mxu0 0.0
  %4430 = vmatprep.subr.mxu0 0.0
  %4431 = vmatpush1.msra.mxu0 0.0
  %4432 = vmatprep.subr.mxu0 0.0
  %4433 = vmatpush1.msra.mxu0 0.0
  %4434 = vmatprep.subr.mxu0 0.0
  %4435 = vmatpush1.msra.mxu0 0.0
  %4436 = vmatprep.subr.mxu0 0.0
  %4437 = vmatpush1.msra.mxu0 0.0
  %4438 = vmatprep.subr.mxu0 0.0
  %4439 = vmatpush1.msra.mxu0 0.0
  %4440 = vmatprep.subr.mxu0 0.0
  %4441 = vmatpush1.msra.mxu0 0.0
  %4442 = vmatprep.subr.mxu0 0.0
  %4443 = vmatpush1.msra.mxu0 0.0
  %4444 = vmatprep.subr.mxu0 0.0
  %4445 = vmatpush1.msra.mxu0 0.0
  %4446 = vmatprep.subr.mxu0 0.0
  %4447 = vmatpush1.msra.mxu0 0.0
  %4448 = vmatprep.subr.mxu0 0.0
  %4449 = vmatpush1.msra.mxu0 0.0
  %4450 = vmatprep.subr.mxu0 0.0
  %4451 = vmatpush1.msra.mxu0 0.0
  %4452 = vmatprep.subr.mxu0 0.0
  %4453 = vmatpush1.msra.mxu0 0.0
  %4454 = vmatprep.subr.mxu0 0.0
  %4455 = vmatpush1.msra.mxu0 0.0
  %4456 = vmatprep.subr.mxu0 0.0
  %4457 = vmatpush1.msra.mxu0 0.0
  %4458 = vmatprep.subr.mxu0 0.0
  %4459 = vmatpush1.msra.mxu0 0.0
  %4460 = vmatprep.subr.mxu0 0.0
  %4461 = vmatpush1.msra.mxu0 0.0
  %4462 = vmatprep.subr.mxu0 0.0
  %4463 = vmatpush1.msra.mxu0 0.0
  %4464 = vmatprep.subr.mxu0 0.0
  %4465 = vmatpush1.msra.mxu0 0.0
  %4466 = vmatprep.subr.mxu0 0.0
  %4467 = vmatpush1.msra.mxu0 0.0
  %4468 = vmatprep.subr.mxu0 0.0
  %4469 = vmatpush1.msra.mxu0 0.0
  %4470 = vmatprep.subr.mxu0 0.0
  %4471 = vmatpush1.msra.mxu0 0.0
  %4472 = vmatprep.subr.mxu0 0.0
  %4473 = vmatpush1.msra.mxu0 0.0
  %4474 = vmatprep.subr.mxu0 0.0
  %4475 = vmatpush1.msra.mxu0 0.0
  %4476 = vmatprep.subr.mxu0 0.0
  %4477 = vmatpush1.msra.mxu0 0.0
  %4478 = vmatprep.subr.mxu0 0.0
  %4479 = vmatpush1.msra.mxu0 0.0
  %4480 = vmatprep.mubr.f32.mxu0 0.0
  %4481 = vmatmul.mubr.f32.gmra.mrb[0].mxu0 %v4414
  %v4482 = vpop.f32.mrb[0].mxu0
  %v4483 = vadd.f32 0.0, %v4482
  %v4484 = vpop.f32.mrb[0].mxu0
  %v4485 = vadd.f32 0.0, %v4484
  %4486 = vdwg.mxu0
  %4487 = vrot.lane.b32.xlu0 %v4483, 113
  %v4488 = vpop.permute.xlu0 %4487
  %4489 = vrot.lane.b32.xlu0 %v4485, 113
  %v4490 = vpop.permute.xlu0 %4489
  %v4491 = vsel %vm2883, %v4488, %v4490
  %v4492 = vsel %vm2883, %v4490, %v4488
  %v4493 = vmul.f32 %v4491, %v2892
  %v4494 = vmul.f32 %v4492, %v2896
  %v4495 = vadd.f32 %v4409, %v4493
  %v4496 = vadd.f32 %v4410, %v4494
  %s4497 = scalar_lea.vmem %s21, 56
  %v4498 = vld [vmem:[%s4497] sm:$0xff]
  %v4500 = vsel %vm668, %v4498, 0
  %4502 = vmatprep.subr.mxu0 %v3905
  %4503 = vmatpush1.msra.mxu0 %v3904
  %4504 = vmatprep.subr.mxu0 0.0
  %4505 = vmatpush1.msra.mxu0 0.0
  %4506 = vmatprep.subr.mxu0 0.0
  %4507 = vmatpush1.msra.mxu0 0.0
  %4508 = vmatprep.subr.mxu0 0.0
  %4509 = vmatpush1.msra.mxu0 0.0
  %4510 = vmatprep.subr.mxu0 0.0
  %4511 = vmatpush1.msra.mxu0 0.0
  %4512 = vmatprep.subr.mxu0 0.0
  %4513 = vmatpush1.msra.mxu0 0.0
  %4514 = vmatprep.subr.mxu0 0.0
  %4515 = vmatpush1.msra.mxu0 0.0
  %4516 = vmatprep.subr.mxu0 0.0
  %4517 = vmatpush1.msra.mxu0 0.0
  %4518 = vmatprep.subr.mxu0 0.0
  %4519 = vmatpush1.msra.mxu0 0.0
  %4520 = vmatprep.subr.mxu0 0.0
  %4521 = vmatpush1.msra.mxu0 0.0
  %4522 = vmatprep.subr.mxu0 0.0
  %4523 = vmatpush1.msra.mxu0 0.0
  %4524 = vmatprep.subr.mxu0 0.0
  %4525 = vmatpush1.msra.mxu0 0.0
  %4526 = vmatprep.subr.mxu0 0.0
  %4527 = vmatpush1.msra.mxu0 0.0
  %4528 = vmatprep.subr.mxu0 0.0
  %4529 = vmatpush1.msra.mxu0 0.0
  %4530 = vmatprep.subr.mxu0 0.0
  %4531 = vmatpush1.msra.mxu0 0.0
  %4532 = vmatprep.subr.mxu0 0.0
  %4533 = vmatpush1.msra.mxu0 0.0
  %4534 = vmatprep.subr.mxu0 0.0
  %4535 = vmatpush1.msra.mxu0 0.0
  %4536 = vmatprep.subr.mxu0 0.0
  %4537 = vmatpush1.msra.mxu0 0.0
  %4538 = vmatprep.subr.mxu0 0.0
  %4539 = vmatpush1.msra.mxu0 0.0
  %4540 = vmatprep.subr.mxu0 0.0
  %4541 = vmatpush1.msra.mxu0 0.0
  %4542 = vmatprep.subr.mxu0 0.0
  %4543 = vmatpush1.msra.mxu0 0.0
  %4544 = vmatprep.subr.mxu0 0.0
  %4545 = vmatpush1.msra.mxu0 0.0
  %4546 = vmatprep.subr.mxu0 0.0
  %4547 = vmatpush1.msra.mxu0 0.0
  %4548 = vmatprep.subr.mxu0 0.0
  %4549 = vmatpush1.msra.mxu0 0.0
  %4550 = vmatprep.subr.mxu0 0.0
  %4551 = vmatpush1.msra.mxu0 0.0
  %4552 = vmatprep.subr.mxu0 0.0
  %4553 = vmatpush1.msra.mxu0 0.0
  %4554 = vmatprep.subr.mxu0 0.0
  %4555 = vmatpush1.msra.mxu0 0.0
  %4556 = vmatprep.subr.mxu0 0.0
  %4557 = vmatpush1.msra.mxu0 0.0
  %4558 = vmatprep.subr.mxu0 0.0
  %4559 = vmatpush1.msra.mxu0 0.0
  %4560 = vmatprep.subr.mxu0 0.0
  %4561 = vmatpush1.msra.mxu0 0.0
  %4562 = vmatprep.subr.mxu0 0.0
  %4563 = vmatpush1.msra.mxu0 0.0
  %4564 = vmatprep.subr.mxu0 0.0
  %4565 = vmatpush1.msra.mxu0 0.0
  %4566 = vmatprep.mubr.f32.mxu0 0.0
  %4567 = vmatmul.mubr.f32.gmra.mrb[0].mxu0 %v4500
  %v4568 = vpop.f32.mrb[0].mxu0
  %v4569 = vadd.f32 0.0, %v4568
  %v4570 = vpop.f32.mrb[0].mxu0
  %v4571 = vadd.f32 0.0, %v4570
  %4572 = vdwg.mxu0
  %4573 = vrot.lane.b32.xlu0 %v4569, 112
  %v4574 = vpop.permute.xlu0 %4573
  %4575 = vrot.lane.b32.xlu0 %v4571, 112
  %v4576 = vpop.permute.xlu0 %4575
  %v4577 = vsel %vm2983, %v4574, %v4576
  %v4578 = vsel %vm2983, %v4576, %v4574
  %v4579 = vmul.f32 %v4577, %v2992
  %v4580 = vmul.f32 %v4578, %v2996
  %v4581 = vadd.f32 %v4495, %v4579
  %v4582 = vadd.f32 %v4496, %v4580
  %s4583 = scalar_lea.vmem %s21, 64
  %v4584 = vld [vmem:[%s4583] sm:$0xff]
  %v4586 = vsel %vm668, %v4584, 0
  %4588 = vmatprep.subr.mxu0 %v3905
  %4589 = vmatpush1.msra.mxu0 %v3904
  %4590 = vmatprep.subr.mxu0 0.0
  %4591 = vmatpush1.msra.mxu0 0.0
  %4592 = vmatprep.subr.mxu0 0.0
  %4593 = vmatpush1.msra.mxu0 0.0
  %4594 = vmatprep.subr.mxu0 0.0
  %4595 = vmatpush1.msra.mxu0 0.0
  %4596 = vmatprep.subr.mxu0 0.0
  %4597 = vmatpush1.msra.mxu0 0.0
  %4598 = vmatprep.subr.mxu0 0.0
  %4599 = vmatpush1.msra.mxu0 0.0
  %4600 = vmatprep.subr.mxu0 0.0
  %4601 = vmatpush1.msra.mxu0 0.0
  %4602 = vmatprep.subr.mxu0 0.0
  %4603 = vmatpush1.msra.mxu0 0.0
  %4604 = vmatprep.subr.mxu0 0.0
  %4605 = vmatpush1.msra.mxu0 0.0
  %4606 = vmatprep.subr.mxu0 0.0
  %4607 = vmatpush1.msra.mxu0 0.0
  %4608 = vmatprep.subr.mxu0 0.0
  %4609 = vmatpush1.msra.mxu0 0.0
  %4610 = vmatprep.subr.mxu0 0.0
  %4611 = vmatpush1.msra.mxu0 0.0
  %4612 = vmatprep.subr.mxu0 0.0
  %4613 = vmatpush1.msra.mxu0 0.0
  %4614 = vmatprep.subr.mxu0 0.0
  %4615 = vmatpush1.msra.mxu0 0.0
  %4616 = vmatprep.subr.mxu0 0.0
  %4617 = vmatpush1.msra.mxu0 0.0
  %4618 = vmatprep.subr.mxu0 0.0
  %4619 = vmatpush1.msra.mxu0 0.0
  %4620 = vmatprep.subr.mxu0 0.0
  %4621 = vmatpush1.msra.mxu0 0.0
  %4622 = vmatprep.subr.mxu0 0.0
  %4623 = vmatpush1.msra.mxu0 0.0
  %4624 = vmatprep.subr.mxu0 0.0
  %4625 = vmatpush1.msra.mxu0 0.0
  %4626 = vmatprep.subr.mxu0 0.0
  %4627 = vmatpush1.msra.mxu0 0.0
  %4628 = vmatprep.subr.mxu0 0.0
  %4629 = vmatpush1.msra.mxu0 0.0
  %4630 = vmatprep.subr.mxu0 0.0
  %4631 = vmatpush1.msra.mxu0 0.0
  %4632 = vmatprep.subr.mxu0 0.0
  %4633 = vmatpush1.msra.mxu0 0.0
  %4634 = vmatprep.subr.mxu0 0.0
  %4635 = vmatpush1.msra.mxu0 0.0
  %4636 = vmatprep.subr.mxu0 0.0
  %4637 = vmatpush1.msra.mxu0 0.0
  %4638 = vmatprep.subr.mxu0 0.0
  %4639 = vmatpush1.msra.mxu0 0.0
  %4640 = vmatprep.subr.mxu0 0.0
  %4641 = vmatpush1.msra.mxu0 0.0
  %4642 = vmatprep.subr.mxu0 0.0
  %4643 = vmatpush1.msra.mxu0 0.0
  %4644 = vmatprep.subr.mxu0 0.0
  %4645 = vmatpush1.msra.mxu0 0.0
  %4646 = vmatprep.subr.mxu0 0.0
  %4647 = vmatpush1.msra.mxu0 0.0
  %4648 = vmatprep.subr.mxu0 0.0
  %4649 = vmatpush1.msra.mxu0 0.0
  %4650 = vmatprep.subr.mxu0 0.0
  %4651 = vmatpush1.msra.mxu0 0.0
  %4652 = vmatprep.mubr.f32.mxu0 0.0
  %4653 = vmatmul.mubr.f32.gmra.mrb[0].mxu0 %v4586
  %v4654 = vpop.f32.mrb[0].mxu0
  %v4655 = vadd.f32 0.0, %v4654
  %v4656 = vpop.f32.mrb[0].mxu0
  %v4657 = vadd.f32 0.0, %v4656
  %4658 = vdwg.mxu0
  %4659 = vrot.lane.b32.xlu0 %v4655, 111
  %v4660 = vpop.permute.xlu0 %4659
  %4661 = vrot.lane.b32.xlu0 %v4657, 111
  %v4662 = vpop.permute.xlu0 %4661
  %v4663 = vsel %vm3083, %v4660, %v4662
  %v4664 = vsel %vm3083, %v4662, %v4660
  %v4665 = vmul.f32 %v4663, %v3092
  %v4666 = vmul.f32 %v4664, %v3096
  %v4667 = vadd.f32 %v4581, %v4665
  %v4668 = vadd.f32 %v4582, %v4666
  %v4669 = vld [vmem:[%s22] sm:$0xff]
  %4671 = vset.pattern.permute.xlu0 0
  %4672 = vperm.xlu0 %4671, %v4669
  %v4673 = vpop.permute.xlu0 %4672
  %v4675 = vadd.f32 %v4667, %v4673
  %v4676 = vadd.f32 %v4668, %v4673
  %4677 = vst [vmem:[%s23] sm:$0xff] %v4675
  %4678 = vst [vmem:[%s23 + $0x8] sm:$0xff] %v4676
  // Predicated region
  $region94: #{avif_freq_aware_block.1} parent=0 // pred_check
    _
  $region95: #{avif_freq_aware_block.1} parent=0 // pred_check_branch
    %4680 = sbr.rel (0) target = $region97
  $region96: #{avif_freq_aware_block.1} parent=0 // pred_region
    _
  $region97: #{avif_freq_aware_block.1} parent=0 // pred_fallthru
    _
  // Predicated region
  $region98: #{avif_freq_aware_block.1} parent=0 // pred_check
    _
  $region99: #{avif_freq_aware_block.1} parent=0 // pred_check_branch
    %4682 = sbr.rel (0) target = $region101
  $region100: #{avif_freq_aware_block.1} parent=0 // pred_region
    _
  $region101: #{avif_freq_aware_block.1} parent=0 // pred_fallthru
    _

</llo_original>
